<compile_context>
chip_gen: v7x
topology: tpu7x:2x2x1
jax: 0.10.0
libtpu: 0.0.40
codegen_flags: <defaults>
</compile_context>

<pallas_src>
from functools import partial

import jax
import jax.numpy as jnp
import numpy as np
from jax.experimental import pallas as pl
from jax.experimental.pallas import tpu as pltpu

L = 194          # sequence length (== BatchNorm1d num_features)
L_PAD = 256      # lane-aligned per-sample slot width
C_IN = 32        # input channels (Conv1d hard-coded in_channels)
C_OUT = 64       # out_dim (!= inp_dim -> skip_layer is used)
C_HALF = C_OUT // 2
EPS = 1e-5       # BatchNorm eps


def _bn_relu(h, gamma, beta):
    # PyTorch BatchNorm1d (training mode, 2-D input): biased stats over dim 0.
    # One-pass stats with a non-negativity clamp; folded affine fused with ReLU.
    mean = jnp.mean(h, axis=0, keepdims=True)
    mean_sq = jnp.mean(h * h, axis=0, keepdims=True)
    var = jnp.maximum(mean_sq - mean * mean, 0.0)
    scale = gamma * jax.lax.rsqrt(var + EPS)
    offset = beta - mean * scale
    return jnp.maximum(h * scale + offset, 0.0)


def residual_kernel(x_ref, bn_ref, w_ref, b_ref, out_ref):
    x = x_ref[...]                         # (32, W) f32, padded lanes are exact 0
    bn = bn_ref[...]                       # (8, W): g1,be1,g2,be2,g3,be3,0,0 (tiled per sample)
    w = w_ref[...]                         # (256, 32) bf16: [w1; w2_t0; w2_t1; w2_t2; w3; wsk]
    biases = b_ref[...]                    # (64, 3) f32: [b1|0, b2|0, b3+bsk]
    b1 = biases[0:C_HALF, 0:1]             # (32, 1)
    b2 = biases[0:C_HALF, 1:2]             # (32, 1)
    b34 = biases[:, 2:3]                   # (64, 1)

    w1 = w[0:C_HALF, :]                    # (32, 32)
    w2stk = w[C_HALF:4 * C_HALF, :]        # (96, 32)  three k=3 taps stacked along M
    w3 = w[4 * C_HALF:4 * C_HALF + C_OUT, :]   # (64, 32)
    wsk = w[4 * C_HALF + C_OUT:, :]        # (64, 32)

    # bn1 + relu, then conv1 (k=1). Padded lanes stay exactly 0 after every
    # bn+relu because the padded gamma/beta lanes are zero.
    h = _bn_relu(x, bn[0:1, :], bn[1:2, :])
    h = jnp.dot(w1, h.astype(jnp.bfloat16), preferred_element_type=jnp.float32) + b1

    # bn2 + relu
    h = _bn_relu(h, bn[2:3, :], bn[3:4, :])

    # conv2 (k=3, pad=1) as roll-AFTER-matmul: one K=32 dot computes all three
    # taps (stacked along M); the two edge shifts go to the XLU via roll.
    # Zero padded lanes per sample make the circular rolls exact at every
    # sample boundary (including the block wrap-around).
    p = jnp.dot(w2stk, h.astype(jnp.bfloat16), preferred_element_type=jnp.float32)  # (96, W)
    wlanes = p.shape[1]
    h = (pltpu.roll(p[0:C_HALF, :], shift=1, axis=1)             # tap 0: h[:, l-1]
         + p[C_HALF:2 * C_HALF, :]                               # tap 1: h[:, l]
         + pltpu.roll(p[2 * C_HALF:3 * C_HALF, :], shift=wlanes - 1, axis=1)  # tap 2: h[:, l+1]
         + b2)

    # bn3 + relu, then conv3 (k=1) and the skip 1x1 conv as two dots summed
    # in f32 (no (64, W) concat on the critical path).
    h = _bn_relu(h, bn[4:5, :], bn[5:6, :])
    out_ref[...] = (
        jnp.dot(w3, h.astype(jnp.bfloat16), preferred_element_type=jnp.float32)
        + jnp.dot(wsk, x.astype(jnp.bfloat16), preferred_element_type=jnp.float32)
        + b34)


def prepare_params(params, chunk=4):
    """One-time packing of the 14 PyTorch tensors into 3 kernel operands."""
    (g1, be1, w1, b1, g2, be2, w2, b2, g3, be3, w3, b3, wsk, bsk) = params

    def row(v):  # (L,) -> (L_PAD,) zero-padded per-column BN affine param
        return jnp.pad(v, (0, L_PAD - L))

    zero_row = jnp.zeros((L_PAD,), jnp.float32)
    base = jnp.stack([row(g1), row(be1), row(g2), row(be2),
                      row(g3), row(be3), zero_row, zero_row], axis=0)       # (8, 256)
    bn_rows = jnp.tile(base, (1, chunk))                                    # (8, chunk*256)

    wpack = jnp.concatenate(
        [w1[:, :, 0],                                                       # (32, 32)
         w2[:, :, 0], w2[:, :, 1], w2[:, :, 2],                             # (96, 32)
         w3[:, :, 0],                                                       # (64, 32)
         wsk[:, :, 0]],                                                     # (64, 32)
        axis=0).astype(jnp.bfloat16)                                        # (256, 32) bf16

    biases = jnp.stack([jnp.pad(b1, (0, C_OUT - C_HALF)),
                        jnp.pad(b2, (0, C_OUT - C_HALF)),
                        b3 + bsk], axis=1)                                  # (64, 3) f32
    return (bn_rows, wpack, biases)


@partial(jax.jit, static_argnames=("chunk",))
def residual_forward(x, prepped, chunk=4):
    """Batched forward. x: (32, 194) or (B, 32, 194).

    Returns the lane-packed (C_OUT, ceil(B/chunk)*chunk*L_PAD) slab; columns
    >= 194 inside every 256-lane sample slot are scratch (use unpack_output).
    """
    bn_rows, wpack, biases = prepped
    if x.ndim == 2:
        x = x[None]
    B = x.shape[0]
    bp = ((B + chunk - 1) // chunk) * chunk
    wlanes = chunk * L_PAD
    assert bn_rows.shape == (8, wlanes), "prepped chunk mismatch"

    # Per-sample zero lane padding (194 -> 256): keeps the padded lanes exactly
    # 0 through every bn+relu, which the conv2 rolls rely on. Pad + transpose +
    # reshape to the lane-batched (32, B*256) slab the kernel consumes.
    xp = jnp.pad(x, ((0, bp - B), (0, 0), (0, L_PAD - L)))                  # (Bp, 32, 256)
    xp = jnp.transpose(xp, (1, 0, 2)).reshape(C_IN, bp * L_PAD)             # (32, Bp*256)

    return pl.pallas_call(
        residual_kernel,
        out_shape=jax.ShapeDtypeStruct((C_OUT, bp * L_PAD), jnp.float32),
        grid=(bp // chunk,),
        in_specs=[
            pl.BlockSpec((C_IN, wlanes), lambda c: (0, c)),        # x lanes per chunk
            pl.BlockSpec((8, wlanes), lambda c: (0, 0)),           # BN rows (resident)
            pl.BlockSpec((4 * C_OUT, C_IN), lambda c: (0, 0)),     # packed weights
            pl.BlockSpec((C_OUT, 3), lambda c: (0, 0)),            # packed biases
        ],
        out_specs=pl.BlockSpec((C_OUT, wlanes), lambda c: (0, c)),
        compiler_params=pltpu.CompilerParams(
            dimension_semantics=("parallel",),          # both TCs on v7x
            vmem_limit_bytes=32 * 1024 * 1024,          # tiny footprint; explicit & safe on v7x
        ),
    )(xp, bn_rows, wpack, biases)


def unpack_output(out, batch):
    """(C_OUT, Bp*L_PAD) packed slab -> tight (batch, C_OUT, L)."""
    bp = out.shape[1] // L_PAD
    o = out.reshape(C_OUT, bp, L_PAD)
    return jnp.transpose(o, (1, 0, 2))[:batch, :, :L]


def ref_forward(x, params):
    # Pure-JAX reference of the exact PyTorch forward (training-mode BN), one sample.
    (g1, be1, w1, b1, g2, be2, w2, b2, g3, be3, w3, b3, wsk, bsk) = params

    def bn(h, g, b):
        m = h.mean(axis=0, keepdims=True)
        v = ((h - m) ** 2).mean(axis=0, keepdims=True)
        return (h - m) / jnp.sqrt(v + EPS) * g[None, :] + b[None, :]

    residual = wsk[:, :, 0] @ x + bsk[:, None]
    h = jnp.maximum(bn(x, g1, be1), 0.0)
    h = w1[:, :, 0] @ h + b1[:, None]
    h = jnp.maximum(bn(h, g2, be2), 0.0)
    hp = jnp.pad(h, ((0, 0), (1, 1)))
    h = (w2[:, :, 0] @ hp[:, 0:L] + w2[:, :, 1] @ hp[:, 1:L + 1]
         + w2[:, :, 2] @ hp[:, 2:L + 2] + b2[:, None])
    h = jnp.maximum(bn(h, g3, be3), 0.0)
    h = w3[:, :, 0] @ h + b3[:, None]
    return h + residual


def make_params(key):
    ks = jax.random.split(key, 15)
    g1 = 1.0 + 0.1 * jax.random.normal(ks[0], (L,), jnp.float32)
    be1 = 0.1 * jax.random.normal(ks[1], (L,), jnp.float32)
    w1 = 0.2 * jax.random.normal(ks[2], (C_HALF, C_IN, 1), jnp.float32)
    b1 = 0.1 * jax.random.normal(ks[3], (C_HALF,), jnp.float32)
    g2 = 1.0 + 0.1 * jax.random.normal(ks[4], (L,), jnp.float32)
    be2 = 0.1 * jax.random.normal(ks[5], (L,), jnp.float32)
    w2 = 0.2 * jax.random.normal(ks[6], (C_HALF, C_HALF, 3), jnp.float32)
    b2 = 0.1 * jax.random.normal(ks[7], (C_HALF,), jnp.float32)
    g3 = 1.0 + 0.1 * jax.random.normal(ks[8], (L,), jnp.float32)
    be3 = 0.1 * jax.random.normal(ks[9], (L,), jnp.float32)
    w3 = 0.2 * jax.random.normal(ks[10], (C_OUT, C_HALF, 1), jnp.float32)
    b3 = 0.1 * jax.random.normal(ks[11], (C_OUT,), jnp.float32)
    wsk = 0.2 * jax.random.normal(ks[12], (C_OUT, C_IN, 1), jnp.float32)
    bsk = 0.1 * jax.random.normal(ks[13], (C_OUT,), jnp.float32)
    return (g1, be1, w1, b1, g2, be2, w2, b2, g3, be3, w3, b3, wsk, bsk)


if __name__ == "__main__":
    key = jax.random.PRNGKey(0)
    pkey, xkey = jax.random.split(key)
    params = make_params(pkey)

    BATCH, CHUNK = 8, 4                      # 2 grid steps of 4 lane-batched samples
    xb = jax.random.normal(xkey, (BATCH, C_IN, L), jnp.float32)

    prepped = prepare_params(params, chunk=CHUNK)   # one-time param packing
    out = jax.block_until_ready(residual_forward(xb, prepped, chunk=CHUNK))
    assert out.shape == (C_OUT, BATCH * L_PAD), out.shape

    got = np.asarray(unpack_output(out, BATCH))                     # (B, 64, 194)
    ref = np.stack([np.asarray(ref_forward(xb[i], params)) for i in range(BATCH)], axis=0)
    np.testing.assert_allclose(got, ref, rtol=5e-2, atol=5e-2)
    print("KERNEL_OK")
</pallas_src>

<mosaic_0001>
module attributes {stable_mosaic.version = 11 : i64} {
  func.func @residual_kernel(%arg0: i32, %arg1: memref<32x1024xf32, #tpu.memory_space<vmem>>, %arg2: memref<8x1024xf32, #tpu.memory_space<vmem>>, %arg3: memref<256x32xbf16, #tpu.memory_space<vmem>>, %arg4: memref<64x3xf32, #tpu.memory_space<vmem>>, %arg5: memref<64x1024xf32, #tpu.memory_space<vmem>>) attributes {dimension_semantics = [#tpu.dimension_semantics<parallel>], iteration_bounds = array<i64: 2>, scalar_prefetch = 0 : i64, scratch_operands = 0 : i64, tpu.core_type = #tpu.core_type<tc>, window_params = [{transform_indices = @transform_0, window_bounds = array<i64: 32, 1024>}, {pipeline_mode = #tpu.pipeline_mode<synchronous>, transform_indices = @transform_1, window_bounds = array<i64: 8, 1024>}, {pipeline_mode = #tpu.pipeline_mode<synchronous>, transform_indices = @transform_2, window_bounds = array<i64: 256, 32>}, {pipeline_mode = #tpu.pipeline_mode<synchronous>, transform_indices = @transform_3, window_bounds = array<i64: 64, 3>}, {transform_indices = @transform_4, window_bounds = array<i64: 64, 1024>}]} {
    %c0 = arith.constant 0 : index
    %c0_0 = arith.constant 0 : index
    %0 = vector.load %arg1[%c0, %c0_0] : memref<32x1024xf32, #tpu.memory_space<vmem>>, vector<32x1024xf32>
    %c0_1 = arith.constant 0 : index
    %c0_2 = arith.constant 0 : index
    %1 = vector.load %arg2[%c0_1, %c0_2] : memref<8x1024xf32, #tpu.memory_space<vmem>>, vector<8x1024xf32>
    %c0_3 = arith.constant 0 : index
    %c0_4 = arith.constant 0 : index
    %2 = vector.load %arg3[%c0_3, %c0_4] : memref<256x32xbf16, #tpu.memory_space<vmem>>, vector<256x32xbf16>
    %c0_5 = arith.constant 0 : index
    %c0_6 = arith.constant 0 : index
    %3 = vector.load %arg4[%c0_5, %c0_6] : memref<64x3xf32, #tpu.memory_space<vmem>>, vector<64x3xf32>
    %4 = vector.extract_strided_slice %3 {offsets = [0, 0], sizes = [32, 1], strides = [1, 1]} : vector<64x3xf32> to vector<32x1xf32>
    %5 = vector.extract_strided_slice %3 {offsets = [0, 1], sizes = [32, 1], strides = [1, 1]} : vector<64x3xf32> to vector<32x1xf32>
    %6 = vector.extract_strided_slice %3 {offsets = [0, 2], sizes = [64, 1], strides = [1, 1]} : vector<64x3xf32> to vector<64x1xf32>
    %7 = vector.extract_strided_slice %2 {offsets = [0, 0], sizes = [32, 32], strides = [1, 1]} : vector<256x32xbf16> to vector<32x32xbf16>
    %8 = vector.extract_strided_slice %2 {offsets = [32, 0], sizes = [96, 32], strides = [1, 1]} : vector<256x32xbf16> to vector<96x32xbf16>
    %9 = vector.extract_strided_slice %2 {offsets = [128, 0], sizes = [64, 32], strides = [1, 1]} : vector<256x32xbf16> to vector<64x32xbf16>
    %10 = vector.extract_strided_slice %2 {offsets = [192, 0], sizes = [64, 32], strides = [1, 1]} : vector<256x32xbf16> to vector<64x32xbf16>
    %11 = vector.extract_strided_slice %1 {offsets = [0, 0], sizes = [1, 1024], strides = [1, 1]} : vector<8x1024xf32> to vector<1x1024xf32>
    %12 = vector.extract_strided_slice %1 {offsets = [1, 0], sizes = [1, 1024], strides = [1, 1]} : vector<8x1024xf32> to vector<1x1024xf32>
    %cst = arith.constant dense<0.000000e+00> : vector<1024xf32>
    %13 = vector.multi_reduction <add>, %0, %cst [0] : vector<32x1024xf32> to vector<1024xf32>
    %14 = vector.shape_cast %13 : vector<1024xf32> to vector<1x1024xf32>
    %cst_7 = arith.constant 3.200000e+01 : f32
    %15 = vector.broadcast %cst_7 : f32 to vector<1x1024xf32>
    %16 = arith.divf %14, %15 : vector<1x1024xf32>
    %17 = arith.mulf %0, %0 : vector<32x1024xf32>
    %cst_8 = arith.constant dense<0.000000e+00> : vector<1024xf32>
    %18 = vector.multi_reduction <add>, %17, %cst_8 [0] : vector<32x1024xf32> to vector<1024xf32>
    %19 = vector.shape_cast %18 : vector<1024xf32> to vector<1x1024xf32>
    %cst_9 = arith.constant 3.200000e+01 : f32
    %20 = vector.broadcast %cst_9 : f32 to vector<1x1024xf32>
    %21 = arith.divf %19, %20 : vector<1x1024xf32>
    %22 = arith.mulf %16, %16 : vector<1x1024xf32>
    %23 = arith.subf %21, %22 : vector<1x1024xf32>
    %cst_10 = arith.constant 0.000000e+00 : f32
    %24 = vector.broadcast %cst_10 : f32 to vector<1x1024xf32>
    %25 = arith.maximumf %23, %24 : vector<1x1024xf32>
    %cst_11 = arith.constant 9.99999974E-6 : f32
    %26 = vector.broadcast %cst_11 : f32 to vector<1x1024xf32>
    %27 = arith.addf %25, %26 : vector<1x1024xf32>
    %28 = math.rsqrt %27 : vector<1x1024xf32>
    %29 = arith.mulf %11, %28 : vector<1x1024xf32>
    %30 = arith.mulf %16, %29 : vector<1x1024xf32>
    %31 = arith.subf %12, %30 : vector<1x1024xf32>
    %32 = vector.broadcast %29 : vector<1x1024xf32> to vector<32x1024xf32>
    %33 = arith.mulf %0, %32 : vector<32x1024xf32>
    %34 = vector.broadcast %31 : vector<1x1024xf32> to vector<32x1024xf32>
    %35 = arith.addf %33, %34 : vector<32x1024xf32>
    %cst_12 = arith.constant 0.000000e+00 : f32
    %36 = vector.broadcast %cst_12 : f32 to vector<32x1024xf32>
    %37 = arith.maximumf %35, %36 : vector<32x1024xf32>
    %38 = arith.truncf %37 : vector<32x1024xf32> to vector<32x1024xbf16>
    %cst_13 = arith.constant dense<0.000000e+00> : vector<32x1024xf32>
    %39 = tpu.matmul %7, %38, %cst_13 {dimension_numbers = #tpu.dot_dimension_numbers<[1], [0], [0], [1], [0, 0, 1, 1], [], []>} : vector<32x32xbf16>, vector<32x1024xbf16>, vector<32x1024xf32> -> vector<32x1024xf32>
    %40 = vector.broadcast %4 : vector<32x1xf32> to vector<32x1024xf32>
    %41 = arith.addf %39, %40 : vector<32x1024xf32>
    %42 = vector.extract_strided_slice %1 {offsets = [2, 0], sizes = [1, 1024], strides = [1, 1]} : vector<8x1024xf32> to vector<1x1024xf32>
    %43 = vector.extract_strided_slice %1 {offsets = [3, 0], sizes = [1, 1024], strides = [1, 1]} : vector<8x1024xf32> to vector<1x1024xf32>
    %cst_14 = arith.constant dense<0.000000e+00> : vector<1024xf32>
    %44 = vector.multi_reduction <add>, %41, %cst_14 [0] : vector<32x1024xf32> to vector<1024xf32>
    %45 = vector.shape_cast %44 : vector<1024xf32> to vector<1x1024xf32>
    %cst_15 = arith.constant 3.200000e+01 : f32
    %46 = vector.broadcast %cst_15 : f32 to vector<1x1024xf32>
    %47 = arith.divf %45, %46 : vector<1x1024xf32>
    %48 = arith.mulf %41, %41 : vector<32x1024xf32>
    %cst_16 = arith.constant dense<0.000000e+00> : vector<1024xf32>
    %49 = vector.multi_reduction <add>, %48, %cst_16 [0] : vector<32x1024xf32> to vector<1024xf32>
    %50 = vector.shape_cast %49 : vector<1024xf32> to vector<1x1024xf32>
    %cst_17 = arith.constant 3.200000e+01 : f32
    %51 = vector.broadcast %cst_17 : f32 to vector<1x1024xf32>
    %52 = arith.divf %50, %51 : vector<1x1024xf32>
    %53 = arith.mulf %47, %47 : vector<1x1024xf32>
    %54 = arith.subf %52, %53 : vector<1x1024xf32>
    %cst_18 = arith.constant 0.000000e+00 : f32
    %55 = vector.broadcast %cst_18 : f32 to vector<1x1024xf32>
    %56 = arith.maximumf %54, %55 : vector<1x1024xf32>
    %cst_19 = arith.constant 9.99999974E-6 : f32
    %57 = vector.broadcast %cst_19 : f32 to vector<1x1024xf32>
    %58 = arith.addf %56, %57 : vector<1x1024xf32>
    %59 = math.rsqrt %58 : vector<1x1024xf32>
    %60 = arith.mulf %42, %59 : vector<1x1024xf32>
    %61 = arith.mulf %47, %60 : vector<1x1024xf32>
    %62 = arith.subf %43, %61 : vector<1x1024xf32>
    %63 = vector.broadcast %60 : vector<1x1024xf32> to vector<32x1024xf32>
    %64 = arith.mulf %41, %63 : vector<32x1024xf32>
    %65 = vector.broadcast %62 : vector<1x1024xf32> to vector<32x1024xf32>
    %66 = arith.addf %64, %65 : vector<32x1024xf32>
    %cst_20 = arith.constant 0.000000e+00 : f32
    %67 = vector.broadcast %cst_20 : f32 to vector<32x1024xf32>
    %68 = arith.maximumf %66, %67 : vector<32x1024xf32>
    %69 = arith.truncf %68 : vector<32x1024xf32> to vector<32x1024xbf16>
    %cst_21 = arith.constant dense<0.000000e+00> : vector<96x1024xf32>
    %70 = tpu.matmul %8, %69, %cst_21 {dimension_numbers = #tpu.dot_dimension_numbers<[1], [0], [0], [1], [0, 0, 1, 1], [], []>} : vector<96x32xbf16>, vector<32x1024xbf16>, vector<96x1024xf32> -> vector<96x1024xf32>
    %71 = vector.extract_strided_slice %70 {offsets = [0, 0], sizes = [32, 1024], strides = [1, 1]} : vector<96x1024xf32> to vector<32x1024xf32>
    %c1_i32 = arith.constant 1 : i32
    %72 = tpu.dynamic_rotate %71 by %c1_i32 dim 1 : vector<32x1024xf32>, i32 -> vector<32x1024xf32>
    %73 = vector.extract_strided_slice %70 {offsets = [32, 0], sizes = [32, 1024], strides = [1, 1]} : vector<96x1024xf32> to vector<32x1024xf32>
    %74 = arith.addf %72, %73 : vector<32x1024xf32>
    %75 = vector.extract_strided_slice %70 {offsets = [64, 0], sizes = [32, 1024], strides = [1, 1]} : vector<96x1024xf32> to vector<32x1024xf32>
    %c1023_i32 = arith.constant 1023 : i32
    %76 = tpu.dynamic_rotate %75 by %c1023_i32 dim 1 : vector<32x1024xf32>, i32 -> vector<32x1024xf32>
    %77 = arith.addf %74, %76 : vector<32x1024xf32>
    %78 = vector.broadcast %5 : vector<32x1xf32> to vector<32x1024xf32>
    %79 = arith.addf %77, %78 : vector<32x1024xf32>
    %80 = vector.extract_strided_slice %1 {offsets = [4, 0], sizes = [1, 1024], strides = [1, 1]} : vector<8x1024xf32> to vector<1x1024xf32>
    %81 = vector.extract_strided_slice %1 {offsets = [5, 0], sizes = [1, 1024], strides = [1, 1]} : vector<8x1024xf32> to vector<1x1024xf32>
    %cst_22 = arith.constant dense<0.000000e+00> : vector<1024xf32>
    %82 = vector.multi_reduction <add>, %79, %cst_22 [0] : vector<32x1024xf32> to vector<1024xf32>
    %83 = vector.shape_cast %82 : vector<1024xf32> to vector<1x1024xf32>
    %cst_23 = arith.constant 3.200000e+01 : f32
    %84 = vector.broadcast %cst_23 : f32 to vector<1x1024xf32>
    %85 = arith.divf %83, %84 : vector<1x1024xf32>
    %86 = arith.mulf %79, %79 : vector<32x1024xf32>
    %cst_24 = arith.constant dense<0.000000e+00> : vector<1024xf32>
    %87 = vector.multi_reduction <add>, %86, %cst_24 [0] : vector<32x1024xf32> to vector<1024xf32>
    %88 = vector.shape_cast %87 : vector<1024xf32> to vector<1x1024xf32>
    %cst_25 = arith.constant 3.200000e+01 : f32
    %89 = vector.broadcast %cst_25 : f32 to vector<1x1024xf32>
    %90 = arith.divf %88, %89 : vector<1x1024xf32>
    %91 = arith.mulf %85, %85 : vector<1x1024xf32>
    %92 = arith.subf %90, %91 : vector<1x1024xf32>
    %cst_26 = arith.constant 0.000000e+00 : f32
    %93 = vector.broadcast %cst_26 : f32 to vector<1x1024xf32>
    %94 = arith.maximumf %92, %93 : vector<1x1024xf32>
    %cst_27 = arith.constant 9.99999974E-6 : f32
    %95 = vector.broadcast %cst_27 : f32 to vector<1x1024xf32>
    %96 = arith.addf %94, %95 : vector<1x1024xf32>
    %97 = math.rsqrt %96 : vector<1x1024xf32>
    %98 = arith.mulf %80, %97 : vector<1x1024xf32>
    %99 = arith.mulf %85, %98 : vector<1x1024xf32>
    %100 = arith.subf %81, %99 : vector<1x1024xf32>
    %101 = vector.broadcast %98 : vector<1x1024xf32> to vector<32x1024xf32>
    %102 = arith.mulf %79, %101 : vector<32x1024xf32>
    %103 = vector.broadcast %100 : vector<1x1024xf32> to vector<32x1024xf32>
    %104 = arith.addf %102, %103 : vector<32x1024xf32>
    %cst_28 = arith.constant 0.000000e+00 : f32
    %105 = vector.broadcast %cst_28 : f32 to vector<32x1024xf32>
    %106 = arith.maximumf %104, %105 : vector<32x1024xf32>
    %107 = arith.truncf %106 : vector<32x1024xf32> to vector<32x1024xbf16>
    %cst_29 = arith.constant dense<0.000000e+00> : vector<64x1024xf32>
    %108 = tpu.matmul %9, %107, %cst_29 {dimension_numbers = #tpu.dot_dimension_numbers<[1], [0], [0], [1], [0, 0, 1, 1], [], []>} : vector<64x32xbf16>, vector<32x1024xbf16>, vector<64x1024xf32> -> vector<64x1024xf32>
    %109 = arith.truncf %0 : vector<32x1024xf32> to vector<32x1024xbf16>
    %cst_30 = arith.constant dense<0.000000e+00> : vector<64x1024xf32>
    %110 = tpu.matmul %10, %109, %cst_30 {dimension_numbers = #tpu.dot_dimension_numbers<[1], [0], [0], [1], [0, 0, 1, 1], [], []>} : vector<64x32xbf16>, vector<32x1024xbf16>, vector<64x1024xf32> -> vector<64x1024xf32>
    %111 = arith.addf %108, %110 : vector<64x1024xf32>
    %112 = vector.broadcast %6 : vector<64x1xf32> to vector<64x1024xf32>
    %113 = arith.addf %111, %112 : vector<64x1024xf32>
    %c0_31 = arith.constant 0 : index
    %c0_32 = arith.constant 0 : index
    %114 = vector.load %arg5[%c0_31, %c0_32] : memref<64x1024xf32, #tpu.memory_space<vmem>>, vector<64x1024xf32>
    tpu.vector_store %arg5[%c0_31, %c0_32], %113 {strides = array<i32>} : memref<64x1024xf32, #tpu.memory_space<vmem>>, vector<64x1024xf32>,
    return
  }
  func.func @transform_0(%arg0: i32) -> (i32, i32) {
    %c0_i32 = arith.constant 0 : i32
    %c0_i32_0 = arith.constant 0 : i32
    return %c0_i32, %arg0 : i32, i32
  }
  func.func @transform_1(%arg0: i32) -> (i32, i32) {
    %c0_i32 = arith.constant 0 : i32
    %c0_i32_0 = arith.constant 0 : i32
    %c0_i32_1 = arith.constant 0 : i32
    return %c0_i32, %c0_i32_0 : i32, i32
  }
  func.func @transform_2(%arg0: i32) -> (i32, i32) {
    %c0_i32 = arith.constant 0 : i32
    %c0_i32_0 = arith.constant 0 : i32
    %c0_i32_1 = arith.constant 0 : i32
    return %c0_i32, %c0_i32_0 : i32, i32
  }
  func.func @transform_3(%arg0: i32) -> (i32, i32) {
    %c0_i32 = arith.constant 0 : i32
    %c0_i32_0 = arith.constant 0 : i32
    %c0_i32_1 = arith.constant 0 : i32
    return %c0_i32, %c0_i32_0 : i32, i32
  }
  func.func @transform_4(%arg0: i32) -> (i32, i32) {
    %c0_i32 = arith.constant 0 : i32
    %c0_i32_0 = arith.constant 0 : i32
    return %c0_i32, %arg0 : i32, i32
  }
}

</mosaic_0001>

<llo_original>
// kernel: residual_forward.1
$region0: #{residual_forward.1}
  #allocation0 [shape = 'u32[]', space=smem, size = 0x4, offset = 0x4, fixed_abs, tag = 'smem constant byte address 0x4 - core index']
  #allocation1 [shape = 'u32[144,128]{1,0:T(1,128)}', space=vmem, size = 0x12000, scoped, tag = 'internal scratch']
  %s0 = inlined_call_operand.vmem [shape: f32[32,2048], index: 0, kind: input, shape index: {}]
  %s1 = inlined_call_operand.vmem [shape: f32[8,1024], index: 1, kind: input, shape index: {}]
  %s2 = inlined_call_operand.vmem [shape: bf16[256,32], index: 2, kind: input, shape index: {}]
  %s3 = inlined_call_operand.vmem [shape: f32[64,3], index: 3, kind: input, shape index: {}]
  %s4 = inlined_call_operand.hbm [shape: f32[64,2048], index: 4, kind: output, shape index: {}]
  %s5 = sld [smem:[#allocation0]]
  $region72: #{residual_forward.1} parent=0
    _
  %s7 = ssub.s32 1, %s5
  %s8 = scalar_select 0, %s7, %s5
  $region1: #{residual_forward.1} parent=0
    #allocation2 [shape = 'u8[262144]{0}', space=vmem, size = 0x40000, scoped, tag = 'input window, operand 0']
    #allocation3 [shape = 'u8[524288]{0}', space=vmem, size = 0x80000, scoped, tag = 'output window, operand 0']
    #allocation4 [shape = 's32[2]{0}', space=sflag, size = 0x8, scoped, tag = 'scoped memory for residual_forward.1']
    %9 = vsyncpa [#allocation4], 0
    %s10 = scalar_lea.sflag [#allocation4], 1
    %11 = vsyncpa %s10, 0
    loop: start=0, step=1, limit=4
    $region2: #{residual_forward.1} parent=1 // loop_pre_header
      _
    $region3: #{residual_forward.1} parent=1 // loop_header
      %s13 = sphi 0, %s17
      %p14 = scmp.ge.s32.totalorder %s13, 4
      %s23 = sphi 0, %s25
      %s26 = sphi 0, %s23
      %s27 = sphi 0, %s26
      %s43 = sphi 0, %s27
      %s47 = sphi 0, %s47
      %s49 = sphi 0, %s47
      %s50 = sphi 0, %s49
      %s64 = sphi 0, %s50
      %s68 = sphi 0, %s68
      %s70 = sphi 0, %s68
      %s71 = sphi 0, %s70
      %s85 = sphi 0, %s71
      %s89 = sphi 0, %s89
      %s91 = sphi 0, %s89
      %s92 = sphi 0, %s91
      %s106 = sphi 0, %s92
      %s112 = sphi 0, %s114
      %s115 = sphi 0, %s112
      %s116 = sphi 0, %s115
      %s132 = sphi 0, %s116
    $region4: #{residual_forward.1} parent=1 // loop_header_branch
      %16 = sbr.rel (%p14) target = $region8
    $region5: #{residual_forward.1} parent=1 // loop_body
      %s18 = ssub.s32 %s13, 1
      %s19 = ssub.s32 %s13, 2
      %s20 = sadd.s32 %s13, 1
      %s21 = ssub.s32 %s13, %s20
      %p22 = scmp.eq.s32.totalorder %s21, 0
      %s24 = sadd.s32 %s23, 1
      %s25 = scalar_select %p22, %s23, %s24
      %p28 = pneg %p22
      %p29 = scmp.eq.s32.totalorder %s13, 1
      %p30 = por %p28, %p29
      %p31 = scmp.ne.s32.totalorder %s23, %s26
      %p32 = scmp.eq.s32.totalorder %s13, 0
      %p33 = por %p31, %p32
      %p34 = scmp.ne.s32.totalorder %s23, %s26
      %p35 = scmp.eq.s32.totalorder %s18, 1
      %p36 = por %p34, %p35
      %p37 = scmp.ne.s32.totalorder %s26, %s27
      %p38 = scmp.eq.s32.totalorder %s18, 0
      %p39 = por %p37, %p38
      %p40 = scmp.ne.s32.totalorder %s26, %s27
      %p41 = scmp.eq.s32.totalorder %s19, 1
      %p42 = por %p40, %p41
      %p44 = scmp.ne.s32.totalorder %s27, %s43
      %p45 = scmp.eq.s32.totalorder %s19, 0
      %p46 = por %p44, %p45
      %s48 = sadd.s32 %s47, 1
      %p51 = scmp.eq.s32.totalorder %s13, 1
      %p52 = scmp.ne.s32.totalorder %s47, %s49
      %p53 = scmp.eq.s32.totalorder %s13, 0
      %p54 = por %p52, %p53
      %p55 = scmp.ne.s32.totalorder %s47, %s49
      %p56 = scmp.eq.s32.totalorder %s18, 1
      %p57 = por %p55, %p56
      %p58 = scmp.ne.s32.totalorder %s49, %s50
      %p59 = scmp.eq.s32.totalorder %s18, 0
      %p60 = por %p58, %p59
      %p61 = scmp.ne.s32.totalorder %s49, %s50
      %p62 = scmp.eq.s32.totalorder %s19, 1
      %p63 = por %p61, %p62
      %p65 = scmp.ne.s32.totalorder %s50, %s64
      %p66 = scmp.eq.s32.totalorder %s19, 0
      %p67 = por %p65, %p66
      %s69 = sadd.s32 %s68, 1
      %p72 = scmp.eq.s32.totalorder %s13, 1
      %p73 = scmp.ne.s32.totalorder %s68, %s70
      %p74 = scmp.eq.s32.totalorder %s13, 0
      %p75 = por %p73, %p74
      %p76 = scmp.ne.s32.totalorder %s68, %s70
      %p77 = scmp.eq.s32.totalorder %s18, 1
      %p78 = por %p76, %p77
      %p79 = scmp.ne.s32.totalorder %s70, %s71
      %p80 = scmp.eq.s32.totalorder %s18, 0
      %p81 = por %p79, %p80
      %p82 = scmp.ne.s32.totalorder %s70, %s71
      %p83 = scmp.eq.s32.totalorder %s19, 1
      %p84 = por %p82, %p83
      %p86 = scmp.ne.s32.totalorder %s71, %s85
      %p87 = scmp.eq.s32.totalorder %s19, 0
      %p88 = por %p86, %p87
      %s90 = sadd.s32 %s89, 1
      %p93 = scmp.eq.s32.totalorder %s13, 1
      %p94 = scmp.ne.s32.totalorder %s89, %s91
      %p95 = scmp.eq.s32.totalorder %s13, 0
      %p96 = por %p94, %p95
      %p97 = scmp.ne.s32.totalorder %s89, %s91
      %p98 = scmp.eq.s32.totalorder %s18, 1
      %p99 = por %p97, %p98
      %p100 = scmp.ne.s32.totalorder %s91, %s92
      %p101 = scmp.eq.s32.totalorder %s18, 0
      %p102 = por %p100, %p101
      %p103 = scmp.ne.s32.totalorder %s91, %s92
      %p104 = scmp.eq.s32.totalorder %s19, 1
      %p105 = por %p103, %p104
      %p107 = scmp.ne.s32.totalorder %s92, %s106
      %p108 = scmp.eq.s32.totalorder %s19, 0
      %p109 = por %p107, %p108
      %s110 = ssub.s32 %s13, %s20
      %p111 = scmp.eq.s32.totalorder %s110, 0
      %s113 = sadd.s32 %s112, 1
      %s114 = scalar_select %p111, %s112, %s113
      %p117 = pneg %p111
      %p118 = scmp.eq.s32.totalorder %s13, 1
      %p119 = por %p117, %p118
      %p120 = scmp.ne.s32.totalorder %s112, %s115
      %p121 = scmp.eq.s32.totalorder %s13, 0
      %p122 = por %p120, %p121
      %p123 = scmp.ne.s32.totalorder %s112, %s115
      %p124 = scmp.eq.s32.totalorder %s18, 1
      %p125 = por %p123, %p124
      %p126 = scmp.ne.s32.totalorder %s115, %s116
      %p127 = scmp.eq.s32.totalorder %s18, 0
      %p128 = por %p126, %p127
      %p129 = scmp.ne.s32.totalorder %s115, %s116
      %p130 = scmp.eq.s32.totalorder %s19, 1
      %p131 = por %p129, %p130
      %p133 = scmp.ne.s32.totalorder %s116, %s132
      %p134 = scmp.eq.s32.totalorder %s19, 0
      %p135 = por %p133, %p134
      %p136 = scmp.le.s32.totalorder 1, %s13
      %p137 = scmp.lt.s32.totalorder %s13, 3
      %p138 = pnand %p136, %p137
      %p139 = pneg %p138
      // Predicated region
      $region9: #{residual_forward.1} parent=5 // pred_check
        _
      $region10: #{residual_forward.1} parent=5 // pred_check_branch
        %141 = sbr.rel (%p138) target = $region12
      $region11: #{residual_forward.1} parent=5 // pred_region
        %s142 = ssub.s32 %s13, 1
        // Predicated region
        $region13: #{residual_forward.1} parent=11 // pred_check
          %p143 = pneg %p60
        $region14: #{residual_forward.1} parent=11 // pred_check_branch
          %145 = sbr.rel (%p143) target = $region16
        $region15: #{residual_forward.1} parent=11 // pred_region
          _
        $region16: #{residual_forward.1} parent=11 // pred_fallthru
          _
        // Predicated region
        $region17: #{residual_forward.1} parent=11 // pred_check
          %p146 = pneg %p81
        $region18: #{residual_forward.1} parent=11 // pred_check_branch
          %148 = sbr.rel (%p146) target = $region20
        $region19: #{residual_forward.1} parent=11 // pred_region
          _
        $region20: #{residual_forward.1} parent=11 // pred_fallthru
          _
        // Predicated region
        $region21: #{residual_forward.1} parent=11 // pred_check
          %p149 = pneg %p102
        $region22: #{residual_forward.1} parent=11 // pred_check_branch
          %151 = sbr.rel (%p149) target = $region24
        $region23: #{residual_forward.1} parent=11 // pred_region
          _
        $region24: #{residual_forward.1} parent=11 // pred_fallthru
          _
      $region12: #{residual_forward.1} parent=5 // pred_fallthru
        _
      %p152 = scmp.lt.s32.totalorder %s13, 2
      // Predicated region
      $region25: #{residual_forward.1} parent=5 // pred_check
        %p153 = pneg %p152
      $region26: #{residual_forward.1} parent=5 // pred_check_branch
        %155 = sbr.rel (%p153) target = $region28
      $region27: #{residual_forward.1} parent=5 // pred_region
        // Predicated region
        $region29: #{residual_forward.1} parent=27 // pred_check
          %p156 = pneg %p33
        $region30: #{residual_forward.1} parent=27 // pred_check_branch
          %158 = sbr.rel (%p156) target = $region32
        $region31: #{residual_forward.1} parent=27 // pred_region
          %s159 = sand.u32 %s23, 1
          %s160 = sand.u32 %s23, 1
          %s161 = smul.addr %s160, 256
          %s162 = scalar_lea.vmem [#allocation2], %s161
          %s163 = smul.u32 8, %s13
          %s164 = smul.addr %s163, 8
          %s165 = scalar_lea.vmem %s0, %s164
          // Predicated region
          $region33: #{residual_forward.1} parent=31 // pred_check
            _
          $region34: #{residual_forward.1} parent=31 // pred_check_branch
            %167 = sbr.rel (0) target = $region36
          $region35: #{residual_forward.1} parent=31 // pred_region
            // Predicated region
            $region37: #{residual_forward.1} parent=35 // pred_check
              _
            $region38: #{residual_forward.1} parent=35 // pred_check_branch
              %169 = sbr.rel (0) target = $region40
            $region39: #{residual_forward.1} parent=35 // pred_region
              loop: start=0, step=1, limit=1
              $region41: #{residual_forward.1} parent=39 // loop_pre_header
                _
              $region42: #{residual_forward.1} parent=39 // loop_header
                %s171 = sphi 0, %s175
                %p172 = scmp.ge.s32.totalorder %s171, 1
                %s176 = sphi %s165, %s165
                %s177 = sphi %s162, %s162
              $region43: #{residual_forward.1} parent=39 // loop_header_branch
                %174 = sbr.rel (%p172) target = $region47
              $region44: #{residual_forward.1} parent=39 // loop_body
                %v178 = vld [vmem:[%s176] sm:$0xff]
                %179 = vst [vmem:[%s177] sm:$0xff] %v178
                %v180 = vld [vmem:[%s176 + $0x8] sm:$0xff]
                %181 = vst [vmem:[%s177 + $0x8] sm:$0xff] %v180
                %v182 = vld [vmem:[%s176 + $0x10] sm:$0xff]
                %183 = vst [vmem:[%s177 + $0x10] sm:$0xff] %v182
                %v184 = vld [vmem:[%s176 + $0x18] sm:$0xff]
                %185 = vst [vmem:[%s177 + $0x18] sm:$0xff] %v184
                %v186 = vld [vmem:[%s176 + $0x20] sm:$0xff]
                %187 = vst [vmem:[%s177 + $0x20] sm:$0xff] %v186
                %v188 = vld [vmem:[%s176 + $0x28] sm:$0xff]
                %189 = vst [vmem:[%s177 + $0x28] sm:$0xff] %v188
                %v190 = vld [vmem:[%s176 + $0x30] sm:$0xff]
                %191 = vst [vmem:[%s177 + $0x30] sm:$0xff] %v190
                %v192 = vld [vmem:[%s176 + $0x38] sm:$0xff]
                %193 = vst [vmem:[%s177 + $0x38] sm:$0xff] %v192
                %v194 = vld [vmem:[%s176 + $0x80] sm:$0xff]
                %195 = vst [vmem:[%s177 + $0x40] sm:$0xff] %v194
                %v196 = vld [vmem:[%s176 + $0x88] sm:$0xff]
                %197 = vst [vmem:[%s177 + $0x48] sm:$0xff] %v196
                %v198 = vld [vmem:[%s176 + $0x90] sm:$0xff]
                %199 = vst [vmem:[%s177 + $0x50] sm:$0xff] %v198
                %v200 = vld [vmem:[%s176 + $0x98] sm:$0xff]
                %201 = vst [vmem:[%s177 + $0x58] sm:$0xff] %v200
                %v202 = vld [vmem:[%s176 + $0xa0] sm:$0xff]
                %203 = vst [vmem:[%s177 + $0x60] sm:$0xff] %v202
                %v204 = vld [vmem:[%s176 + $0xa8] sm:$0xff]
                %205 = vst [vmem:[%s177 + $0x68] sm:$0xff] %v204
                %v206 = vld [vmem:[%s176 + $0xb0] sm:$0xff]
                %207 = vst [vmem:[%s177 + $0x70] sm:$0xff] %v206
                %v208 = vld [vmem:[%s176 + $0xb8] sm:$0xff]
                %209 = vst [vmem:[%s177 + $0x78] sm:$0xff] %v208
                %v210 = vld [vmem:[%s176 + $0x100] sm:$0xff]
                %211 = vst [vmem:[%s177 + $0x80] sm:$0xff] %v210
                %v212 = vld [vmem:[%s176 + $0x108] sm:$0xff]
                %213 = vst [vmem:[%s177 + $0x88] sm:$0xff] %v212
                %v214 = vld [vmem:[%s176 + $0x110] sm:$0xff]
                %215 = vst [vmem:[%s177 + $0x90] sm:$0xff] %v214
                %v216 = vld [vmem:[%s176 + $0x118] sm:$0xff]
                %217 = vst [vmem:[%s177 + $0x98] sm:$0xff] %v216
                %v218 = vld [vmem:[%s176 + $0x120] sm:$0xff]
                %219 = vst [vmem:[%s177 + $0xa0] sm:$0xff] %v218
                %v220 = vld [vmem:[%s176 + $0x128] sm:$0xff]
                %221 = vst [vmem:[%s177 + $0xa8] sm:$0xff] %v220
                %v222 = vld [vmem:[%s176 + $0x130] sm:$0xff]
                %223 = vst [vmem:[%s177 + $0xb0] sm:$0xff] %v222
                %v224 = vld [vmem:[%s176 + $0x138] sm:$0xff]
                %225 = vst [vmem:[%s177 + $0xb8] sm:$0xff] %v224
                %v226 = vld [vmem:[%s176 + $0x180] sm:$0xff]
                %227 = vst [vmem:[%s177 + $0xc0] sm:$0xff] %v226
                %v228 = vld [vmem:[%s176 + $0x188] sm:$0xff]
                %229 = vst [vmem:[%s177 + $0xc8] sm:$0xff] %v228
                %v230 = vld [vmem:[%s176 + $0x190] sm:$0xff]
                %231 = vst [vmem:[%s177 + $0xd0] sm:$0xff] %v230
                %v232 = vld [vmem:[%s176 + $0x198] sm:$0xff]
                %233 = vst [vmem:[%s177 + $0xd8] sm:$0xff] %v232
                %v234 = vld [vmem:[%s176 + $0x1a0] sm:$0xff]
                %235 = vst [vmem:[%s177 + $0xe0] sm:$0xff] %v234
                %v236 = vld [vmem:[%s176 + $0x1a8] sm:$0xff]
                %237 = vst [vmem:[%s177 + $0xe8] sm:$0xff] %v236
                %v238 = vld [vmem:[%s176 + $0x1b0] sm:$0xff]
                %239 = vst [vmem:[%s177 + $0xf0] sm:$0xff] %v238
                %v240 = vld [vmem:[%s176 + $0x1b8] sm:$0xff]
                %241 = vst [vmem:[%s177 + $0xf8] sm:$0xff] %v240
              $region45: #{residual_forward.1} parent=39 // loop_footer
                %s175 = sadd.s32 1, %s171
              $region46: #{residual_forward.1} parent=39 // loop_footer_branch
                %170 = sbr.rel target = $region42
              $region47: #{residual_forward.1} parent=39 // loop_exit
                _
            $region40: #{residual_forward.1} parent=35 // pred_fallthru
              _
            // Predicated region
            $region48: #{residual_forward.1} parent=35 // pred_check
              _
            $region49: #{residual_forward.1} parent=35 // pred_check_branch
              %243 = sbr.rel target = $region51
            $region50: #{residual_forward.1} parent=35 // pred_region
              _
            $region51: #{residual_forward.1} parent=35 // pred_fallthru
              _
          $region36: #{residual_forward.1} parent=31 // pred_fallthru
            _
          %244 = vnop
        $region32: #{residual_forward.1} parent=27 // pred_fallthru
          _
      $region28: #{residual_forward.1} parent=5 // pred_fallthru
        _
      %p245 = scmp.le.s32.totalorder 1, %s13
      %p246 = scmp.lt.s32.totalorder %s13, 3
      %p247 = pnand %p245, %p246
      %p248 = pneg %p247
      // Predicated region
      $region52: #{residual_forward.1} parent=5 // pred_check
        _
      $region53: #{residual_forward.1} parent=5 // pred_check_branch
        %250 = sbr.rel (%p247) target = $region55
      $region54: #{residual_forward.1} parent=5 // pred_region
        %s251 = ssub.s32 %s13, 1
        %s252 = sand.u32 %s26, 1
        %s253 = sand.u32 %s26, 1
        %s254 = smul.addr %s253, 256
        %s255 = scalar_lea.vmem [#allocation2], %s254
        // Predicated region
        $region56: #{residual_forward.1} parent=54 // pred_check
          %p256 = pneg %p39
        $region57: #{residual_forward.1} parent=54 // pred_check_branch
          %258 = sbr.rel (%p256) target = $region59
        $region58: #{residual_forward.1} parent=54 // pred_region
          _
        $region59: #{residual_forward.1} parent=54 // pred_fallthru
          _
        %s259 = sand.u32 %s26, 1
        %s260 = sand.u32 %s26, 1
        %s261 = smul.addr %s260, 256
        %s262 = scalar_lea.vmem [#allocation2], %s261
        %p263 = pneg %p39
        %p264 = pneg %p36
        %p265 = pneg %p60
        %p266 = pneg %p57
        %p267 = pneg %p81
        %p268 = pneg %p78
        %p269 = pneg %p102
        %p270 = pneg %p99
        %p271 = pneg %p128
        %p272 = pneg %p125
        %s273 = sand.u32 %s115, 1
        %s274 = scalar_lea.sflag [#allocation4], %s273
        %s275 = sand.u32 %s115, 1
        %s276 = smul.addr %s275, 512
        %s277 = scalar_lea.vmem [#allocation3], %s276
        %s278 = smul.u32 8, %s18
        %s279 = smul.u32 8, %s18
        %v281 = vld [vmem:[%s255] sm:$0xff]
        %v282 = vld [vmem:[%s255 + $0x8] sm:$0xff]
        %v283 = vld [vmem:[%s255 + $0x10] sm:$0xff]
        %v284 = vld [vmem:[%s255 + $0x18] sm:$0xff]
        %v285 = vld [vmem:[%s255 + $0x20] sm:$0xff]
        %v286 = vld [vmem:[%s255 + $0x28] sm:$0xff]
        %v287 = vld [vmem:[%s255 + $0x30] sm:$0xff]
        %v288 = vld [vmem:[%s255 + $0x38] sm:$0xff]
        %v289 = vld [vmem:[%s255 + $0x40] sm:$0xff]
        %v290 = vld [vmem:[%s255 + $0x48] sm:$0xff]
        %v291 = vld [vmem:[%s255 + $0x50] sm:$0xff]
        %v292 = vld [vmem:[%s255 + $0x58] sm:$0xff]
        %v293 = vld [vmem:[%s255 + $0x60] sm:$0xff]
        %v294 = vld [vmem:[%s255 + $0x68] sm:$0xff]
        %v295 = vld [vmem:[%s255 + $0x70] sm:$0xff]
        %v296 = vld [vmem:[%s255 + $0x78] sm:$0xff]
        %v297 = vld [vmem:[%s255 + $0x80] sm:$0xff]
        %v298 = vld [vmem:[%s255 + $0x88] sm:$0xff]
        %v299 = vld [vmem:[%s255 + $0x90] sm:$0xff]
        %v300 = vld [vmem:[%s255 + $0x98] sm:$0xff]
        %v301 = vld [vmem:[%s255 + $0xa0] sm:$0xff]
        %v302 = vld [vmem:[%s255 + $0xa8] sm:$0xff]
        %v303 = vld [vmem:[%s255 + $0xb0] sm:$0xff]
        %v304 = vld [vmem:[%s255 + $0xb8] sm:$0xff]
        %v305 = vld [vmem:[%s255 + $0xc0] sm:$0xff]
        %v306 = vld [vmem:[%s255 + $0xc8] sm:$0xff]
        %v307 = vld [vmem:[%s255 + $0xd0] sm:$0xff]
        %v308 = vld [vmem:[%s255 + $0xd8] sm:$0xff]
        %v309 = vld [vmem:[%s255 + $0xe0] sm:$0xff]
        %v310 = vld [vmem:[%s255 + $0xe8] sm:$0xff]
        %v311 = vld [vmem:[%s255 + $0xf0] sm:$0xff]
        %v312 = vld [vmem:[%s255 + $0xf8] sm:$0xff]
        %v313 = vld [vmem:[%s1] sm:$0xff]
        %v314 = vld [vmem:[%s1 + $0x8] sm:$0xff]
        %v315 = vld [vmem:[%s1 + $0x10] sm:$0xff]
        %v316 = vld [vmem:[%s1 + $0x18] sm:$0xff]
        %v317 = vld [vmem:[%s1 + $0x20] sm:$0xff]
        %v318 = vld [vmem:[%s1 + $0x28] sm:$0xff]
        %v319 = vld [vmem:[%s1 + $0x30] sm:$0xff]
        %v320 = vld [vmem:[%s1 + $0x38] sm:$0xff]
        %v321 = vld [vmem:[%s2] sm:$0xf]
        %v322 = vld [vmem:[%s2 + $0x4] sm:$0xf]
        %v323 = vld [vmem:[%s2 + $0x8] sm:$0xf]
        %v324 = vld [vmem:[%s2 + $0xc] sm:$0xf]
        %v325 = vld [vmem:[%s2 + $0x10] sm:$0xf]
        %v326 = vld [vmem:[%s2 + $0x14] sm:$0xf]
        %v327 = vld [vmem:[%s2 + $0x18] sm:$0xf]
        %v328 = vld [vmem:[%s2 + $0x1c] sm:$0xf]
        %v329 = vld [vmem:[%s2 + $0x20] sm:$0xf]
        %v330 = vld [vmem:[%s2 + $0x24] sm:$0xf]
        %v331 = vld [vmem:[%s2 + $0x28] sm:$0xf]
        %v332 = vld [vmem:[%s2 + $0x2c] sm:$0xf]
        %v333 = vld [vmem:[%s2 + $0x30] sm:$0xf]
        %v334 = vld [vmem:[%s2 + $0x34] sm:$0xf]
        %v335 = vld [vmem:[%s2 + $0x38] sm:$0xf]
        %v336 = vld [vmem:[%s2 + $0x3c] sm:$0xf]
        %v337 = vld [vmem:[%s2 + $0x40] sm:$0xf]
        %v338 = vld [vmem:[%s2 + $0x44] sm:$0xf]
        %v339 = vld [vmem:[%s2 + $0x48] sm:$0xf]
        %v340 = vld [vmem:[%s2 + $0x4c] sm:$0xf]
        %v341 = vld [vmem:[%s2 + $0x50] sm:$0xf]
        %v342 = vld [vmem:[%s2 + $0x54] sm:$0xf]
        %v343 = vld [vmem:[%s2 + $0x58] sm:$0xf]
        %v344 = vld [vmem:[%s2 + $0x5c] sm:$0xf]
        %v345 = vld [vmem:[%s2 + $0x60] sm:$0xf]
        %v346 = vld [vmem:[%s2 + $0x64] sm:$0xf]
        %v347 = vld [vmem:[%s2 + $0x68] sm:$0xf]
        %v348 = vld [vmem:[%s2 + $0x6c] sm:$0xf]
        %v349 = vld [vmem:[%s2 + $0x70] sm:$0xf]
        %v350 = vld [vmem:[%s2 + $0x74] sm:$0xf]
        %v351 = vld [vmem:[%s2 + $0x78] sm:$0xf]
        %v352 = vld [vmem:[%s2 + $0x7c] sm:$0xf]
        %v353 = vld [vmem:[%s3] sm:$0xff]
        %v354 = vld [vmem:[%s3 + $0x8] sm:$0xff]
        %v355 = vld [vmem:[%s3 + $0x10] sm:$0xff]
        %v356 = vld [vmem:[%s3 + $0x18] sm:$0xff]
        %v357 = vld [vmem:[%s3 + $0x20] sm:$0xff]
        %v358 = vld [vmem:[%s3 + $0x28] sm:$0xff]
        %v359 = vld [vmem:[%s3 + $0x30] sm:$0xff]
        %v360 = vld [vmem:[%s3 + $0x38] sm:$0xff]
        %v361 = vadd.f32 %v281, %v289
        %v362 = vadd.f32 %v361, %v297
        %v363 = vadd.f32 %v362, %v305
        %v364 = vrot.slane %v363, 4
        %v365 = vadd.f32 %v363, %v364
        %v366 = vrot.slane %v365, 2
        %v367 = vadd.f32 %v365, %v366
        %v368 = vrot.slane %v367, 1
        %v369 = vadd.f32 %v367, %v368
        %v370 = vadd.f32 %v282, %v290
        %v371 = vadd.f32 %v370, %v298
        %v372 = vadd.f32 %v371, %v306
        %v373 = vrot.slane %v372, 4
        %v374 = vadd.f32 %v372, %v373
        %v375 = vrot.slane %v374, 2
        %v376 = vadd.f32 %v374, %v375
        %v377 = vrot.slane %v376, 1
        %v378 = vadd.f32 %v376, %v377
        %v379 = vadd.f32 %v283, %v291
        %v380 = vadd.f32 %v379, %v299
        %v381 = vadd.f32 %v380, %v307
        %v382 = vrot.slane %v381, 4
        %v383 = vadd.f32 %v381, %v382
        %v384 = vrot.slane %v383, 2
        %v385 = vadd.f32 %v383, %v384
        %v386 = vrot.slane %v385, 1
        %v387 = vadd.f32 %v385, %v386
        %v388 = vadd.f32 %v284, %v292
        %v389 = vadd.f32 %v388, %v300
        %v390 = vadd.f32 %v389, %v308
        %v391 = vrot.slane %v390, 4
        %v392 = vadd.f32 %v390, %v391
        %v393 = vrot.slane %v392, 2
        %v394 = vadd.f32 %v392, %v393
        %v395 = vrot.slane %v394, 1
        %v396 = vadd.f32 %v394, %v395
        %v397 = vadd.f32 %v285, %v293
        %v398 = vadd.f32 %v397, %v301
        %v399 = vadd.f32 %v398, %v309
        %v400 = vrot.slane %v399, 4
        %v401 = vadd.f32 %v399, %v400
        %v402 = vrot.slane %v401, 2
        %v403 = vadd.f32 %v401, %v402
        %v404 = vrot.slane %v403, 1
        %v405 = vadd.f32 %v403, %v404
        %v406 = vadd.f32 %v286, %v294
        %v407 = vadd.f32 %v406, %v302
        %v408 = vadd.f32 %v407, %v310
        %v409 = vrot.slane %v408, 4
        %v410 = vadd.f32 %v408, %v409
        %v411 = vrot.slane %v410, 2
        %v412 = vadd.f32 %v410, %v411
        %v413 = vrot.slane %v412, 1
        %v414 = vadd.f32 %v412, %v413
        %v415 = vadd.f32 %v287, %v295
        %v416 = vadd.f32 %v415, %v303
        %v417 = vadd.f32 %v416, %v311
        %v418 = vrot.slane %v417, 4
        %v419 = vadd.f32 %v417, %v418
        %v420 = vrot.slane %v419, 2
        %v421 = vadd.f32 %v419, %v420
        %v422 = vrot.slane %v421, 1
        %v423 = vadd.f32 %v421, %v422
        %v424 = vadd.f32 %v288, %v296
        %v425 = vadd.f32 %v424, %v304
        %v426 = vadd.f32 %v425, %v312
        %v427 = vrot.slane %v426, 4
        %v428 = vadd.f32 %v426, %v427
        %v429 = vrot.slane %v428, 2
        %v430 = vadd.f32 %v428, %v429
        %v431 = vrot.slane %v430, 1
        %v432 = vadd.f32 %v430, %v431
        %v433 = vrcp.pop 32.0
        %v434 = vmul.f32 %v369, %v433
        %v435 = vmul.f32 %v378, %v433
        %v436 = vmul.f32 %v387, %v433
        %v437 = vmul.f32 %v396, %v433
        %v438 = vmul.f32 %v405, %v433
        %v439 = vmul.f32 %v414, %v433
        %v440 = vmul.f32 %v423, %v433
        %v441 = vmul.f32 %v432, %v433
        %v442 = vmul.f32 %v281, %v281
        %v443 = vmul.f32 %v282, %v282
        %v444 = vmul.f32 %v283, %v283
        %v445 = vmul.f32 %v284, %v284
        %v446 = vmul.f32 %v285, %v285
        %v447 = vmul.f32 %v286, %v286
        %v448 = vmul.f32 %v287, %v287
        %v449 = vmul.f32 %v288, %v288
        %v450 = vmul.f32 %v289, %v289
        %v451 = vmul.f32 %v290, %v290
        %v452 = vmul.f32 %v291, %v291
        %v453 = vmul.f32 %v292, %v292
        %v454 = vmul.f32 %v293, %v293
        %v455 = vmul.f32 %v294, %v294
        %v456 = vmul.f32 %v295, %v295
        %v457 = vmul.f32 %v296, %v296
        %v458 = vmul.f32 %v297, %v297
        %v459 = vmul.f32 %v298, %v298
        %v460 = vmul.f32 %v299, %v299
        %v461 = vmul.f32 %v300, %v300
        %v462 = vmul.f32 %v301, %v301
        %v463 = vmul.f32 %v302, %v302
        %v464 = vmul.f32 %v303, %v303
        %v465 = vmul.f32 %v304, %v304
        %v466 = vmul.f32 %v305, %v305
        %v467 = vmul.f32 %v306, %v306
        %v468 = vmul.f32 %v307, %v307
        %v469 = vmul.f32 %v308, %v308
        %v470 = vmul.f32 %v309, %v309
        %v471 = vmul.f32 %v310, %v310
        %v472 = vmul.f32 %v311, %v311
        %v473 = vmul.f32 %v312, %v312
        %v474 = vadd.f32 %v442, %v450
        %v475 = vadd.f32 %v474, %v458
        %v476 = vadd.f32 %v475, %v466
        %v477 = vrot.slane %v476, 4
        %v478 = vadd.f32 %v476, %v477
        %v479 = vrot.slane %v478, 2
        %v480 = vadd.f32 %v478, %v479
        %v481 = vrot.slane %v480, 1
        %v482 = vadd.f32 %v480, %v481
        %v483 = vadd.f32 %v443, %v451
        %v484 = vadd.f32 %v483, %v459
        %v485 = vadd.f32 %v484, %v467
        %v486 = vrot.slane %v485, 4
        %v487 = vadd.f32 %v485, %v486
        %v488 = vrot.slane %v487, 2
        %v489 = vadd.f32 %v487, %v488
        %v490 = vrot.slane %v489, 1
        %v491 = vadd.f32 %v489, %v490
        %v492 = vadd.f32 %v444, %v452
        %v493 = vadd.f32 %v492, %v460
        %v494 = vadd.f32 %v493, %v468
        %v495 = vrot.slane %v494, 4
        %v496 = vadd.f32 %v494, %v495
        %v497 = vrot.slane %v496, 2
        %v498 = vadd.f32 %v496, %v497
        %v499 = vrot.slane %v498, 1
        %v500 = vadd.f32 %v498, %v499
        %v501 = vadd.f32 %v445, %v453
        %v502 = vadd.f32 %v501, %v461
        %v503 = vadd.f32 %v502, %v469
        %v504 = vrot.slane %v503, 4
        %v505 = vadd.f32 %v503, %v504
        %v506 = vrot.slane %v505, 2
        %v507 = vadd.f32 %v505, %v506
        %v508 = vrot.slane %v507, 1
        %v509 = vadd.f32 %v507, %v508
        %v510 = vadd.f32 %v446, %v454
        %v511 = vadd.f32 %v510, %v462
        %v512 = vadd.f32 %v511, %v470
        %v513 = vrot.slane %v512, 4
        %v514 = vadd.f32 %v512, %v513
        %v515 = vrot.slane %v514, 2
        %v516 = vadd.f32 %v514, %v515
        %v517 = vrot.slane %v516, 1
        %v518 = vadd.f32 %v516, %v517
        %v519 = vadd.f32 %v447, %v455
        %v520 = vadd.f32 %v519, %v463
        %v521 = vadd.f32 %v520, %v471
        %v522 = vrot.slane %v521, 4
        %v523 = vadd.f32 %v521, %v522
        %v524 = vrot.slane %v523, 2
        %v525 = vadd.f32 %v523, %v524
        %v526 = vrot.slane %v525, 1
        %v527 = vadd.f32 %v525, %v526
        %v528 = vadd.f32 %v448, %v456
        %v529 = vadd.f32 %v528, %v464
        %v530 = vadd.f32 %v529, %v472
        %v531 = vrot.slane %v530, 4
        %v532 = vadd.f32 %v530, %v531
        %v533 = vrot.slane %v532, 2
        %v534 = vadd.f32 %v532, %v533
        %v535 = vrot.slane %v534, 1
        %v536 = vadd.f32 %v534, %v535
        %v537 = vadd.f32 %v449, %v457
        %v538 = vadd.f32 %v537, %v465
        %v539 = vadd.f32 %v538, %v473
        %v540 = vrot.slane %v539, 4
        %v541 = vadd.f32 %v539, %v540
        %v542 = vrot.slane %v541, 2
        %v543 = vadd.f32 %v541, %v542
        %v544 = vrot.slane %v543, 1
        %v545 = vadd.f32 %v543, %v544
        %v546 = vmul.f32 %v482, %v433
        %v547 = vmul.f32 %v491, %v433
        %v548 = vmul.f32 %v500, %v433
        %v549 = vmul.f32 %v509, %v433
        %v550 = vmul.f32 %v518, %v433
        %v551 = vmul.f32 %v527, %v433
        %v552 = vmul.f32 %v536, %v433
        %v553 = vmul.f32 %v545, %v433
        %v554 = vmul.f32 %v434, %v434
        %v555 = vmul.f32 %v435, %v435
        %v556 = vmul.f32 %v436, %v436
        %v557 = vmul.f32 %v437, %v437
        %v558 = vmul.f32 %v438, %v438
        %v559 = vmul.f32 %v439, %v439
        %v560 = vmul.f32 %v440, %v440
        %v561 = vmul.f32 %v441, %v441
        %v562 = vsub.f32 %v546, %v554
        %v563 = vsub.f32 %v547, %v555
        %v564 = vsub.f32 %v548, %v556
        %v565 = vsub.f32 %v549, %v557
        %v566 = vsub.f32 %v550, %v558
        %v567 = vsub.f32 %v551, %v559
        %v568 = vsub.f32 %v552, %v560
        %v569 = vsub.f32 %v553, %v561
        %v570 = vmax.f32 %v562, 0.0
        %v571 = vmax.f32 %v563, 0.0
        %v572 = vmax.f32 %v564, 0.0
        %v573 = vmax.f32 %v565, 0.0
        %v574 = vmax.f32 %v566, 0.0
        %v575 = vmax.f32 %v567, 0.0
        %v576 = vmax.f32 %v568, 0.0
        %v577 = vmax.f32 %v569, 0.0
        %v578 = vadd.f32 %v570, 1e-05
        %v579 = vadd.f32 %v571, 1e-05
        %v580 = vadd.f32 %v572, 1e-05
        %v581 = vadd.f32 %v573, 1e-05
        %v582 = vadd.f32 %v574, 1e-05
        %v583 = vadd.f32 %v575, 1e-05
        %v584 = vadd.f32 %v576, 1e-05
        %v585 = vadd.f32 %v577, 1e-05
        %v586 = vrsqrt.pop %v578
        %v587 = vrsqrt.pop %v579
        %v588 = vrsqrt.pop %v580
        %v589 = vrsqrt.pop %v581
        %v590 = vrsqrt.pop %v582
        %v591 = vrsqrt.pop %v583
        %v592 = vrsqrt.pop %v584
        %v593 = vrsqrt.pop %v585
        %v594 = vmul.f32 %v313, %v586
        %v595 = vmul.f32 %v314, %v587
        %v596 = vmul.f32 %v315, %v588
        %v597 = vmul.f32 %v316, %v589
        %v598 = vmul.f32 %v317, %v590
        %v599 = vmul.f32 %v318, %v591
        %v600 = vmul.f32 %v319, %v592
        %v601 = vmul.f32 %v320, %v593
        %v602 = vmul.f32 %v434, %v594
        %v603 = vmul.f32 %v435, %v595
        %v604 = vmul.f32 %v436, %v596
        %v605 = vmul.f32 %v437, %v597
        %v606 = vmul.f32 %v438, %v598
        %v607 = vmul.f32 %v439, %v599
        %v608 = vmul.f32 %v440, %v600
        %v609 = vmul.f32 %v441, %v601
        %v618 = vrot.slane %v602, 7
        %v619 = vrot.slane %v603, 7
        %v620 = vrot.slane %v604, 7
        %v621 = vrot.slane %v605, 7
        %v622 = vrot.slane %v606, 7
        %v623 = vrot.slane %v607, 7
        %v624 = vrot.slane %v608, 7
        %v625 = vrot.slane %v609, 7
        %v634 = vsub.f32 %v313, %v618
        %v635 = vsub.f32 %v314, %v619
        %v636 = vsub.f32 %v315, %v620
        %v637 = vsub.f32 %v316, %v621
        %v638 = vsub.f32 %v317, %v622
        %v639 = vsub.f32 %v318, %v623
        %v640 = vsub.f32 %v319, %v624
        %v641 = vsub.f32 %v320, %v625
        %v642 = vlaneseq
        %v643 = vshrl.u32 %v642, 7
        %v644 = vsub.s32 0, %v643
        %v645 = vrot.slane %v594, %v644
        %v646 = vlaneseq
        %v647 = vshrl.u32 %v646, 7
        %v648 = vsub.s32 0, %v647
        %v649 = vrot.slane %v595, %v648
        %v650 = vlaneseq
        %v651 = vshrl.u32 %v650, 7
        %v652 = vsub.s32 0, %v651
        %v653 = vrot.slane %v596, %v652
        %v654 = vlaneseq
        %v655 = vshrl.u32 %v654, 7
        %v656 = vsub.s32 0, %v655
        %v657 = vrot.slane %v597, %v656
        %v658 = vlaneseq
        %v659 = vshrl.u32 %v658, 7
        %v660 = vsub.s32 0, %v659
        %v661 = vrot.slane %v598, %v660
        %v662 = vlaneseq
        %v663 = vshrl.u32 %v662, 7
        %v664 = vsub.s32 0, %v663
        %v665 = vrot.slane %v599, %v664
        %v666 = vlaneseq
        %v667 = vshrl.u32 %v666, 7
        %v668 = vsub.s32 0, %v667
        %v669 = vrot.slane %v600, %v668
        %v670 = vlaneseq
        %v671 = vshrl.u32 %v670, 7
        %v672 = vsub.s32 0, %v671
        %v673 = vrot.slane %v601, %v672
        %v674 = vmul.f32 %v281, %v645
        %v675 = vmul.f32 %v282, %v649
        %v676 = vmul.f32 %v283, %v653
        %v677 = vmul.f32 %v284, %v657
        %v678 = vmul.f32 %v285, %v661
        %v679 = vmul.f32 %v286, %v665
        %v680 = vmul.f32 %v287, %v669
        %v681 = vmul.f32 %v288, %v673
        %v682 = vmul.f32 %v289, %v645
        %v683 = vmul.f32 %v290, %v649
        %v684 = vmul.f32 %v291, %v653
        %v685 = vmul.f32 %v292, %v657
        %v686 = vmul.f32 %v293, %v661
        %v687 = vmul.f32 %v294, %v665
        %v688 = vmul.f32 %v295, %v669
        %v689 = vmul.f32 %v296, %v673
        %v690 = vmul.f32 %v297, %v645
        %v691 = vmul.f32 %v298, %v649
        %v692 = vmul.f32 %v299, %v653
        %v693 = vmul.f32 %v300, %v657
        %v694 = vmul.f32 %v301, %v661
        %v695 = vmul.f32 %v302, %v665
        %v696 = vmul.f32 %v303, %v669
        %v697 = vmul.f32 %v304, %v673
        %v698 = vmul.f32 %v305, %v645
        %v699 = vmul.f32 %v306, %v649
        %v700 = vmul.f32 %v307, %v653
        %v701 = vmul.f32 %v308, %v657
        %v702 = vmul.f32 %v309, %v661
        %v703 = vmul.f32 %v310, %v665
        %v704 = vmul.f32 %v311, %v669
        %v705 = vmul.f32 %v312, %v673
        %v706 = vlaneseq
        %v707 = vshrl.u32 %v706, 7
        %v708 = vsub.s32 1, %v707
        %v709 = vrot.slane %v634, %v708
        %v710 = vlaneseq
        %v711 = vshrl.u32 %v710, 7
        %v712 = vsub.s32 1, %v711
        %v713 = vrot.slane %v635, %v712
        %v714 = vlaneseq
        %v715 = vshrl.u32 %v714, 7
        %v716 = vsub.s32 1, %v715
        %v717 = vrot.slane %v636, %v716
        %v718 = vlaneseq
        %v719 = vshrl.u32 %v718, 7
        %v720 = vsub.s32 1, %v719
        %v721 = vrot.slane %v637, %v720
        %v722 = vlaneseq
        %v723 = vshrl.u32 %v722, 7
        %v724 = vsub.s32 1, %v723
        %v725 = vrot.slane %v638, %v724
        %v726 = vlaneseq
        %v727 = vshrl.u32 %v726, 7
        %v728 = vsub.s32 1, %v727
        %v729 = vrot.slane %v639, %v728
        %v730 = vlaneseq
        %v731 = vshrl.u32 %v730, 7
        %v732 = vsub.s32 1, %v731
        %v733 = vrot.slane %v640, %v732
        %v734 = vlaneseq
        %v735 = vshrl.u32 %v734, 7
        %v736 = vsub.s32 1, %v735
        %v737 = vrot.slane %v641, %v736
        %v738 = vadd.f32 %v674, %v709
        %v739 = vadd.f32 %v675, %v713
        %v740 = vadd.f32 %v676, %v717
        %v741 = vadd.f32 %v677, %v721
        %v742 = vadd.f32 %v678, %v725
        %v743 = vadd.f32 %v679, %v729
        %v744 = vadd.f32 %v680, %v733
        %v745 = vadd.f32 %v681, %v737
        %v746 = vadd.f32 %v682, %v709
        %v747 = vadd.f32 %v683, %v713
        %v748 = vadd.f32 %v684, %v717
        %v749 = vadd.f32 %v685, %v721
        %v750 = vadd.f32 %v686, %v725
        %v751 = vadd.f32 %v687, %v729
        %v752 = vadd.f32 %v688, %v733
        %v753 = vadd.f32 %v689, %v737
        %v754 = vadd.f32 %v690, %v709
        %v755 = vadd.f32 %v691, %v713
        %v756 = vadd.f32 %v692, %v717
        %v757 = vadd.f32 %v693, %v721
        %v758 = vadd.f32 %v694, %v725
        %v759 = vadd.f32 %v695, %v729
        %v760 = vadd.f32 %v696, %v733
        %v761 = vadd.f32 %v697, %v737
        %v762 = vadd.f32 %v698, %v709
        %v763 = vadd.f32 %v699, %v713
        %v764 = vadd.f32 %v700, %v717
        %v765 = vadd.f32 %v701, %v721
        %v766 = vadd.f32 %v702, %v725
        %v767 = vadd.f32 %v703, %v729
        %v768 = vadd.f32 %v704, %v733
        %v769 = vadd.f32 %v705, %v737
        %v770 = vmax.f32 %v738, 0.0
        %v771 = vmax.f32 %v739, 0.0
        %v772 = vmax.f32 %v740, 0.0
        %v773 = vmax.f32 %v741, 0.0
        %v774 = vmax.f32 %v742, 0.0
        %v775 = vmax.f32 %v743, 0.0
        %v776 = vmax.f32 %v744, 0.0
        %v777 = vmax.f32 %v745, 0.0
        %v778 = vmax.f32 %v746, 0.0
        %v779 = vmax.f32 %v747, 0.0
        %v780 = vmax.f32 %v748, 0.0
        %v781 = vmax.f32 %v749, 0.0
        %v782 = vmax.f32 %v750, 0.0
        %v783 = vmax.f32 %v751, 0.0
        %v784 = vmax.f32 %v752, 0.0
        %v785 = vmax.f32 %v753, 0.0
        %v786 = vmax.f32 %v754, 0.0
        %v787 = vmax.f32 %v755, 0.0
        %v788 = vmax.f32 %v756, 0.0
        %v789 = vmax.f32 %v757, 0.0
        %v790 = vmax.f32 %v758, 0.0
        %v791 = vmax.f32 %v759, 0.0
        %v792 = vmax.f32 %v760, 0.0
        %v793 = vmax.f32 %v761, 0.0
        %v794 = vmax.f32 %v762, 0.0
        %v795 = vmax.f32 %v763, 0.0
        %v796 = vmax.f32 %v764, 0.0
        %v797 = vmax.f32 %v765, 0.0
        %v798 = vmax.f32 %v766, 0.0
        %v799 = vmax.f32 %v767, 0.0
        %v800 = vmax.f32 %v768, 0.0
        %v801 = vmax.f32 %v769, 0.0
        %v802 = vpack.c.bf16 %v778, %v770
        %v803 = vpack.c.bf16 %v779, %v771
        %v804 = vpack.c.bf16 %v780, %v772
        %v805 = vpack.c.bf16 %v781, %v773
        %v806 = vpack.c.bf16 %v782, %v774
        %v807 = vpack.c.bf16 %v783, %v775
        %v808 = vpack.c.bf16 %v784, %v776
        %v809 = vpack.c.bf16 %v785, %v777
        %v810 = vpack.c.bf16 %v794, %v786
        %v811 = vpack.c.bf16 %v795, %v787
        %v812 = vpack.c.bf16 %v796, %v788
        %v813 = vpack.c.bf16 %v797, %v789
        %v814 = vpack.c.bf16 %v798, %v790
        %v815 = vpack.c.bf16 %v799, %v791
        %v816 = vpack.c.bf16 %v800, %v792
        %v817 = vpack.c.bf16 %v801, %v793
        %819 = vset.pattern.permute.xlu0 0
        %820 = vperm.xlu0 %819, %v353
        %v821 = vpop.permute.xlu0 %820
        %824 = vset.pattern.permute.xlu0 0
        %825 = vperm.xlu0 %824, %v354
        %v826 = vpop.permute.xlu0 %825
        %829 = vset.pattern.permute.xlu0 0
        %830 = vperm.xlu0 %829, %v355
        %v831 = vpop.permute.xlu0 %830
        %834 = vset.pattern.permute.xlu0 0
        %835 = vperm.xlu0 %834, %v356
        %v836 = vpop.permute.xlu0 %835
        %v842 = vunpack.c.l.b16 %v321
        %v843 = vunpack.c.l.b16 %v322
        %v844 = vunpack.c.l.b16 %v323
        %v845 = vunpack.c.l.b16 %v324
        %v846 = vpack.c.b16 %v843, %v842
        %v847 = vpack.c.b16 %v845, %v844
        %vm848 = vcmask 261120
        %v850 = vsel %vm848, %v846, 0
        %v853 = vsel %vm848, %v847, 0
        %855 = vmatprep.subr.bf16.mxu0 %v803
        %856 = vmatpush1.bf16.msra.mxu0 %v802
        %857 = vmatprep.subr.bf16.mxu0 %v811
        %858 = vmatpush1.bf16.msra.mxu0 %v810
        %859 = vmatprep.subr.bf16.mxu0 0
        %860 = vmatpush1.bf16.msra.mxu0 0
        %861 = vmatprep.subr.bf16.mxu0 0
        %862 = vmatpush1.bf16.msra.mxu0 0
        %863 = vmatprep.subr.bf16.mxu0 0
        %864 = vmatpush1.bf16.msra.mxu0 0
        %865 = vmatprep.subr.bf16.mxu0 0
        %866 = vmatpush1.bf16.msra.mxu0 0
        %867 = vmatprep.subr.bf16.mxu0 0
        %868 = vmatpush1.bf16.msra.mxu0 0
        %869 = vmatprep.subr.bf16.mxu0 0
        %870 = vmatpush1.bf16.msra.mxu0 0
        %871 = vmatprep.subr.bf16.mxu0 0
        %872 = vmatpush1.bf16.msra.mxu0 0
        %873 = vmatprep.subr.bf16.mxu0 0
        %874 = vmatpush1.bf16.msra.mxu0 0
        %875 = vmatprep.subr.bf16.mxu0 0
        %876 = vmatpush1.bf16.msra.mxu0 0
        %877 = vmatprep.subr.bf16.mxu0 0
        %878 = vmatpush1.bf16.msra.mxu0 0
        %879 = vmatprep.subr.bf16.mxu0 0
        %880 = vmatpush1.bf16.msra.mxu0 0
        %881 = vmatprep.subr.bf16.mxu0 0
        %882 = vmatpush1.bf16.msra.mxu0 0
        %883 = vmatprep.subr.bf16.mxu0 0
        %884 = vmatpush1.bf16.msra.mxu0 0
        %885 = vmatprep.subr.bf16.mxu0 0
        %886 = vmatpush1.bf16.msra.mxu0 0
        %887 = vmatprep.mubr.bf16.mxu0 0
        %888 = vmatmul.mubr.bf16.gmra.mrb[0].mxu0 %v850
        %v889 = vpop.f32.mrb[0].mxu0
        %v890 = vadd.f32 %v821, %v889
        %v891 = vpop.f32.mrb[0].mxu0
        %v892 = vadd.f32 %v821, %v891
        %v893 = vpop.f32.mrb[0].mxu0
        %v894 = vadd.f32 %v826, %v893
        %v895 = vpop.f32.mrb[0].mxu0
        %v896 = vadd.f32 %v826, %v895
        %897 = vmatprep.mubr.bf16.mxu0 0
        %898 = vmatmul.mubr.bf16.gmra.mrb[0].mxu0 %v853
        %v899 = vpop.f32.mrb[0].mxu0
        %v900 = vadd.f32 %v831, %v899
        %v901 = vpop.f32.mrb[0].mxu0
        %v902 = vadd.f32 %v831, %v901
        %v903 = vpop.f32.mrb[0].mxu0
        %v904 = vadd.f32 %v836, %v903
        %v905 = vpop.f32.mrb[0].mxu0
        %v906 = vadd.f32 %v836, %v905
        %907 = vdwg.mxu0
        %908 = vmatprep.subr.bf16.mxu0 %v805
        %909 = vmatpush1.bf16.msra.mxu0 %v804
        %910 = vmatprep.subr.bf16.mxu0 %v813
        %911 = vmatpush1.bf16.msra.mxu0 %v812
        %912 = vmatprep.subr.bf16.mxu0 0
        %913 = vmatpush1.bf16.msra.mxu0 0
        %914 = vmatprep.subr.bf16.mxu0 0
        %915 = vmatpush1.bf16.msra.mxu0 0
        %916 = vmatprep.subr.bf16.mxu0 0
        %917 = vmatpush1.bf16.msra.mxu0 0
        %918 = vmatprep.subr.bf16.mxu0 0
        %919 = vmatpush1.bf16.msra.mxu0 0
        %920 = vmatprep.subr.bf16.mxu0 0
        %921 = vmatpush1.bf16.msra.mxu0 0
        %922 = vmatprep.subr.bf16.mxu0 0
        %923 = vmatpush1.bf16.msra.mxu0 0
        %924 = vmatprep.subr.bf16.mxu0 0
        %925 = vmatpush1.bf16.msra.mxu0 0
        %926 = vmatprep.subr.bf16.mxu0 0
        %927 = vmatpush1.bf16.msra.mxu0 0
        %928 = vmatprep.subr.bf16.mxu0 0
        %929 = vmatpush1.bf16.msra.mxu0 0
        %930 = vmatprep.subr.bf16.mxu0 0
        %931 = vmatpush1.bf16.msra.mxu0 0
        %932 = vmatprep.subr.bf16.mxu0 0
        %933 = vmatpush1.bf16.msra.mxu0 0
        %934 = vmatprep.subr.bf16.mxu0 0
        %935 = vmatpush1.bf16.msra.mxu0 0
        %936 = vmatprep.subr.bf16.mxu0 0
        %937 = vmatpush1.bf16.msra.mxu0 0
        %938 = vmatprep.subr.bf16.mxu0 0
        %939 = vmatpush1.bf16.msra.mxu0 0
        %940 = vmatprep.mubr.bf16.mxu0 0
        %941 = vmatmul.mubr.bf16.gmra.mrb[0].mxu0 %v850
        %v942 = vpop.f32.mrb[0].mxu0
        %v943 = vadd.f32 %v821, %v942
        %v944 = vpop.f32.mrb[0].mxu0
        %v945 = vadd.f32 %v821, %v944
        %v946 = vpop.f32.mrb[0].mxu0
        %v947 = vadd.f32 %v826, %v946
        %v948 = vpop.f32.mrb[0].mxu0
        %v949 = vadd.f32 %v826, %v948
        %950 = vmatprep.mubr.bf16.mxu0 0
        %951 = vmatmul.mubr.bf16.gmra.mrb[0].mxu0 %v853
        %v952 = vpop.f32.mrb[0].mxu0
        %v953 = vadd.f32 %v831, %v952
        %v954 = vpop.f32.mrb[0].mxu0
        %v955 = vadd.f32 %v831, %v954
        %v956 = vpop.f32.mrb[0].mxu0
        %v957 = vadd.f32 %v836, %v956
        %v958 = vpop.f32.mrb[0].mxu0
        %v959 = vadd.f32 %v836, %v958
        %960 = vdwg.mxu0
        %961 = vmatprep.subr.bf16.mxu0 %v807
        %962 = vmatpush1.bf16.msra.mxu0 %v806
        %963 = vmatprep.subr.bf16.mxu0 %v815
        %964 = vmatpush1.bf16.msra.mxu0 %v814
        %965 = vmatprep.subr.bf16.mxu0 0
        %966 = vmatpush1.bf16.msra.mxu0 0
        %967 = vmatprep.subr.bf16.mxu0 0
        %968 = vmatpush1.bf16.msra.mxu0 0
        %969 = vmatprep.subr.bf16.mxu0 0
        %970 = vmatpush1.bf16.msra.mxu0 0
        %971 = vmatprep.subr.bf16.mxu0 0
        %972 = vmatpush1.bf16.msra.mxu0 0
        %973 = vmatprep.subr.bf16.mxu0 0
        %974 = vmatpush1.bf16.msra.mxu0 0
        %975 = vmatprep.subr.bf16.mxu0 0
        %976 = vmatpush1.bf16.msra.mxu0 0
        %977 = vmatprep.subr.bf16.mxu0 0
        %978 = vmatpush1.bf16.msra.mxu0 0
        %979 = vmatprep.subr.bf16.mxu0 0
        %980 = vmatpush1.bf16.msra.mxu0 0
        %981 = vmatprep.subr.bf16.mxu0 0
        %982 = vmatpush1.bf16.msra.mxu0 0
        %983 = vmatprep.subr.bf16.mxu0 0
        %984 = vmatpush1.bf16.msra.mxu0 0
        %985 = vmatprep.subr.bf16.mxu0 0
        %986 = vmatpush1.bf16.msra.mxu0 0
        %987 = vmatprep.subr.bf16.mxu0 0
        %988 = vmatpush1.bf16.msra.mxu0 0
        %989 = vmatprep.subr.bf16.mxu0 0
        %990 = vmatpush1.bf16.msra.mxu0 0
        %991 = vmatprep.subr.bf16.mxu0 0
        %992 = vmatpush1.bf16.msra.mxu0 0
        %993 = vmatprep.mubr.bf16.mxu0 0
        %994 = vmatmul.mubr.bf16.gmra.mrb[0].mxu0 %v850
        %v995 = vpop.f32.mrb[0].mxu0
        %v996 = vadd.f32 %v821, %v995
        %v997 = vpop.f32.mrb[0].mxu0
        %v998 = vadd.f32 %v821, %v997
        %v999 = vpop.f32.mrb[0].mxu0
        %v1000 = vadd.f32 %v826, %v999
        %v1001 = vpop.f32.mrb[0].mxu0
        %v1002 = vadd.f32 %v826, %v1001
        %1003 = vmatprep.mubr.bf16.mxu0 0
        %1004 = vmatmul.mubr.bf16.gmra.mrb[0].mxu0 %v853
        %v1005 = vpop.f32.mrb[0].mxu0
        %v1006 = vadd.f32 %v831, %v1005
        %v1007 = vpop.f32.mrb[0].mxu0
        %v1008 = vadd.f32 %v831, %v1007
        %v1009 = vpop.f32.mrb[0].mxu0
        %v1010 = vadd.f32 %v836, %v1009
        %v1011 = vpop.f32.mrb[0].mxu0
        %v1012 = vadd.f32 %v836, %v1011
        %1013 = vdwg.mxu0
        %1014 = vmatprep.subr.bf16.mxu0 %v809
        %1015 = vmatpush1.bf16.msra.mxu0 %v808
        %1016 = vmatprep.subr.bf16.mxu0 %v817
        %1017 = vmatpush1.bf16.msra.mxu0 %v816
        %1018 = vmatprep.subr.bf16.mxu0 0
        %1019 = vmatpush1.bf16.msra.mxu0 0
        %1020 = vmatprep.subr.bf16.mxu0 0
        %1021 = vmatpush1.bf16.msra.mxu0 0
        %1022 = vmatprep.subr.bf16.mxu0 0
        %1023 = vmatpush1.bf16.msra.mxu0 0
        %1024 = vmatprep.subr.bf16.mxu0 0
        %1025 = vmatpush1.bf16.msra.mxu0 0
        %1026 = vmatprep.subr.bf16.mxu0 0
        %1027 = vmatpush1.bf16.msra.mxu0 0
        %1028 = vmatprep.subr.bf16.mxu0 0
        %1029 = vmatpush1.bf16.msra.mxu0 0
        %1030 = vmatprep.subr.bf16.mxu0 0
        %1031 = vmatpush1.bf16.msra.mxu0 0
        %1032 = vmatprep.subr.bf16.mxu0 0
        %1033 = vmatpush1.bf16.msra.mxu0 0
        %1034 = vmatprep.subr.bf16.mxu0 0
        %1035 = vmatpush1.bf16.msra.mxu0 0
        %1036 = vmatprep.subr.bf16.mxu0 0
        %1037 = vmatpush1.bf16.msra.mxu0 0
        %1038 = vmatprep.subr.bf16.mxu0 0
        %1039 = vmatpush1.bf16.msra.mxu0 0
        %1040 = vmatprep.subr.bf16.mxu0 0
        %1041 = vmatpush1.bf16.msra.mxu0 0
        %1042 = vmatprep.subr.bf16.mxu0 0
        %1043 = vmatpush1.bf16.msra.mxu0 0
        %1044 = vmatprep.subr.bf16.mxu0 0
        %1045 = vmatpush1.bf16.msra.mxu0 0
        %1046 = vmatprep.mubr.bf16.mxu0 0
        %1047 = vmatmul.mubr.bf16.gmra.mrb[0].mxu0 %v850
        %v1048 = vpop.f32.mrb[0].mxu0
        %v1049 = vadd.f32 %v821, %v1048
        %v1050 = vpop.f32.mrb[0].mxu0
        %v1051 = vadd.f32 %v821, %v1050
        %v1052 = vpop.f32.mrb[0].mxu0
        %v1053 = vadd.f32 %v826, %v1052
        %v1054 = vpop.f32.mrb[0].mxu0
        %v1055 = vadd.f32 %v826, %v1054
        %1056 = vmatprep.mubr.bf16.mxu0 0
        %1057 = vmatmul.mubr.bf16.gmra.mrb[0].mxu0 %v853
        %v1058 = vpop.f32.mrb[0].mxu0
        %v1059 = vadd.f32 %v831, %v1058
        %v1060 = vpop.f32.mrb[0].mxu0
        %v1061 = vadd.f32 %v831, %v1060
        %v1062 = vpop.f32.mrb[0].mxu0
        %v1063 = vadd.f32 %v836, %v1062
        %v1064 = vpop.f32.mrb[0].mxu0
        %v1065 = vadd.f32 %v836, %v1064
        %1066 = vdwg.mxu0
        %v1067 = vadd.f32 %v890, %v894
        %v1068 = vadd.f32 %v1067, %v900
        %v1069 = vadd.f32 %v1068, %v904
        %v1070 = vrot.slane %v1069, 4
        %v1071 = vadd.f32 %v1069, %v1070
        %v1072 = vrot.slane %v1071, 2
        %v1073 = vadd.f32 %v1071, %v1072
        %v1074 = vrot.slane %v1073, 1
        %v1075 = vadd.f32 %v1073, %v1074
        %v1076 = vadd.f32 %v892, %v896
        %v1077 = vadd.f32 %v1076, %v902
        %v1078 = vadd.f32 %v1077, %v906
        %v1079 = vrot.slane %v1078, 4
        %v1080 = vadd.f32 %v1078, %v1079
        %v1081 = vrot.slane %v1080, 2
        %v1082 = vadd.f32 %v1080, %v1081
        %v1083 = vrot.slane %v1082, 1
        %v1084 = vadd.f32 %v1082, %v1083
        %v1085 = vadd.f32 %v943, %v947
        %v1086 = vadd.f32 %v1085, %v953
        %v1087 = vadd.f32 %v1086, %v957
        %v1088 = vrot.slane %v1087, 4
        %v1089 = vadd.f32 %v1087, %v1088
        %v1090 = vrot.slane %v1089, 2
        %v1091 = vadd.f32 %v1089, %v1090
        %v1092 = vrot.slane %v1091, 1
        %v1093 = vadd.f32 %v1091, %v1092
        %v1094 = vadd.f32 %v945, %v949
        %v1095 = vadd.f32 %v1094, %v955
        %v1096 = vadd.f32 %v1095, %v959
        %v1097 = vrot.slane %v1096, 4
        %v1098 = vadd.f32 %v1096, %v1097
        %v1099 = vrot.slane %v1098, 2
        %v1100 = vadd.f32 %v1098, %v1099
        %v1101 = vrot.slane %v1100, 1
        %v1102 = vadd.f32 %v1100, %v1101
        %v1103 = vadd.f32 %v996, %v1000
        %v1104 = vadd.f32 %v1103, %v1006
        %v1105 = vadd.f32 %v1104, %v1010
        %v1106 = vrot.slane %v1105, 4
        %v1107 = vadd.f32 %v1105, %v1106
        %v1108 = vrot.slane %v1107, 2
        %v1109 = vadd.f32 %v1107, %v1108
        %v1110 = vrot.slane %v1109, 1
        %v1111 = vadd.f32 %v1109, %v1110
        %v1112 = vadd.f32 %v998, %v1002
        %v1113 = vadd.f32 %v1112, %v1008
        %v1114 = vadd.f32 %v1113, %v1012
        %v1115 = vrot.slane %v1114, 4
        %v1116 = vadd.f32 %v1114, %v1115
        %v1117 = vrot.slane %v1116, 2
        %v1118 = vadd.f32 %v1116, %v1117
        %v1119 = vrot.slane %v1118, 1
        %v1120 = vadd.f32 %v1118, %v1119
        %v1121 = vadd.f32 %v1049, %v1053
        %v1122 = vadd.f32 %v1121, %v1059
        %v1123 = vadd.f32 %v1122, %v1063
        %v1124 = vrot.slane %v1123, 4
        %v1125 = vadd.f32 %v1123, %v1124
        %v1126 = vrot.slane %v1125, 2
        %v1127 = vadd.f32 %v1125, %v1126
        %v1128 = vrot.slane %v1127, 1
        %v1129 = vadd.f32 %v1127, %v1128
        %v1130 = vadd.f32 %v1051, %v1055
        %v1131 = vadd.f32 %v1130, %v1061
        %v1132 = vadd.f32 %v1131, %v1065
        %v1133 = vrot.slane %v1132, 4
        %v1134 = vadd.f32 %v1132, %v1133
        %v1135 = vrot.slane %v1134, 2
        %v1136 = vadd.f32 %v1134, %v1135
        %v1137 = vrot.slane %v1136, 1
        %v1138 = vadd.f32 %v1136, %v1137
        %v1139 = vmul.f32 %v1075, %v433
        %v1140 = vmul.f32 %v1084, %v433
        %v1141 = vmul.f32 %v1093, %v433
        %v1142 = vmul.f32 %v1102, %v433
        %v1143 = vmul.f32 %v1111, %v433
        %v1144 = vmul.f32 %v1120, %v433
        %v1145 = vmul.f32 %v1129, %v433
        %v1146 = vmul.f32 %v1138, %v433
        %v1147 = vmul.f32 %v890, %v890
        %v1148 = vmul.f32 %v892, %v892
        %v1149 = vmul.f32 %v943, %v943
        %v1150 = vmul.f32 %v945, %v945
        %v1151 = vmul.f32 %v996, %v996
        %v1152 = vmul.f32 %v998, %v998
        %v1153 = vmul.f32 %v1049, %v1049
        %v1154 = vmul.f32 %v1051, %v1051
        %v1155 = vmul.f32 %v894, %v894
        %v1156 = vmul.f32 %v896, %v896
        %v1157 = vmul.f32 %v947, %v947
        %v1158 = vmul.f32 %v949, %v949
        %v1159 = vmul.f32 %v1000, %v1000
        %v1160 = vmul.f32 %v1002, %v1002
        %v1161 = vmul.f32 %v1053, %v1053
        %v1162 = vmul.f32 %v1055, %v1055
        %v1163 = vmul.f32 %v900, %v900
        %v1164 = vmul.f32 %v902, %v902
        %v1165 = vmul.f32 %v953, %v953
        %v1166 = vmul.f32 %v955, %v955
        %v1167 = vmul.f32 %v1006, %v1006
        %v1168 = vmul.f32 %v1008, %v1008
        %v1169 = vmul.f32 %v1059, %v1059
        %v1170 = vmul.f32 %v1061, %v1061
        %v1171 = vmul.f32 %v904, %v904
        %v1172 = vmul.f32 %v906, %v906
        %v1173 = vmul.f32 %v957, %v957
        %v1174 = vmul.f32 %v959, %v959
        %v1175 = vmul.f32 %v1010, %v1010
        %v1176 = vmul.f32 %v1012, %v1012
        %v1177 = vmul.f32 %v1063, %v1063
        %v1178 = vmul.f32 %v1065, %v1065
        %v1179 = vadd.f32 %v1147, %v1155
        %v1180 = vadd.f32 %v1179, %v1163
        %v1181 = vadd.f32 %v1180, %v1171
        %v1182 = vrot.slane %v1181, 4
        %v1183 = vadd.f32 %v1181, %v1182
        %v1184 = vrot.slane %v1183, 2
        %v1185 = vadd.f32 %v1183, %v1184
        %v1186 = vrot.slane %v1185, 1
        %v1187 = vadd.f32 %v1185, %v1186
        %v1188 = vadd.f32 %v1148, %v1156
        %v1189 = vadd.f32 %v1188, %v1164
        %v1190 = vadd.f32 %v1189, %v1172
        %v1191 = vrot.slane %v1190, 4
        %v1192 = vadd.f32 %v1190, %v1191
        %v1193 = vrot.slane %v1192, 2
        %v1194 = vadd.f32 %v1192, %v1193
        %v1195 = vrot.slane %v1194, 1
        %v1196 = vadd.f32 %v1194, %v1195
        %v1197 = vadd.f32 %v1149, %v1157
        %v1198 = vadd.f32 %v1197, %v1165
        %v1199 = vadd.f32 %v1198, %v1173
        %v1200 = vrot.slane %v1199, 4
        %v1201 = vadd.f32 %v1199, %v1200
        %v1202 = vrot.slane %v1201, 2
        %v1203 = vadd.f32 %v1201, %v1202
        %v1204 = vrot.slane %v1203, 1
        %v1205 = vadd.f32 %v1203, %v1204
        %v1206 = vadd.f32 %v1150, %v1158
        %v1207 = vadd.f32 %v1206, %v1166
        %v1208 = vadd.f32 %v1207, %v1174
        %v1209 = vrot.slane %v1208, 4
        %v1210 = vadd.f32 %v1208, %v1209
        %v1211 = vrot.slane %v1210, 2
        %v1212 = vadd.f32 %v1210, %v1211
        %v1213 = vrot.slane %v1212, 1
        %v1214 = vadd.f32 %v1212, %v1213
        %v1215 = vadd.f32 %v1151, %v1159
        %v1216 = vadd.f32 %v1215, %v1167
        %v1217 = vadd.f32 %v1216, %v1175
        %v1218 = vrot.slane %v1217, 4
        %v1219 = vadd.f32 %v1217, %v1218
        %v1220 = vrot.slane %v1219, 2
        %v1221 = vadd.f32 %v1219, %v1220
        %v1222 = vrot.slane %v1221, 1
        %v1223 = vadd.f32 %v1221, %v1222
        %v1224 = vadd.f32 %v1152, %v1160
        %v1225 = vadd.f32 %v1224, %v1168
        %v1226 = vadd.f32 %v1225, %v1176
        %v1227 = vrot.slane %v1226, 4
        %v1228 = vadd.f32 %v1226, %v1227
        %v1229 = vrot.slane %v1228, 2
        %v1230 = vadd.f32 %v1228, %v1229
        %v1231 = vrot.slane %v1230, 1
        %v1232 = vadd.f32 %v1230, %v1231
        %v1233 = vadd.f32 %v1153, %v1161
        %v1234 = vadd.f32 %v1233, %v1169
        %v1235 = vadd.f32 %v1234, %v1177
        %v1236 = vrot.slane %v1235, 4
        %v1237 = vadd.f32 %v1235, %v1236
        %v1238 = vrot.slane %v1237, 2
        %v1239 = vadd.f32 %v1237, %v1238
        %v1240 = vrot.slane %v1239, 1
        %v1241 = vadd.f32 %v1239, %v1240
        %v1242 = vadd.f32 %v1154, %v1162
        %v1243 = vadd.f32 %v1242, %v1170
        %v1244 = vadd.f32 %v1243, %v1178
        %v1245 = vrot.slane %v1244, 4
        %v1246 = vadd.f32 %v1244, %v1245
        %v1247 = vrot.slane %v1246, 2
        %v1248 = vadd.f32 %v1246, %v1247
        %v1249 = vrot.slane %v1248, 1
        %v1250 = vadd.f32 %v1248, %v1249
        %v1251 = vmul.f32 %v1187, %v433
        %v1252 = vmul.f32 %v1196, %v433
        %v1253 = vmul.f32 %v1205, %v433
        %v1254 = vmul.f32 %v1214, %v433
        %v1255 = vmul.f32 %v1223, %v433
        %v1256 = vmul.f32 %v1232, %v433
        %v1257 = vmul.f32 %v1241, %v433
        %v1258 = vmul.f32 %v1250, %v433
        %v1259 = vmul.f32 %v1139, %v1139
        %v1260 = vmul.f32 %v1140, %v1140
        %v1261 = vmul.f32 %v1141, %v1141
        %v1262 = vmul.f32 %v1142, %v1142
        %v1263 = vmul.f32 %v1143, %v1143
        %v1264 = vmul.f32 %v1144, %v1144
        %v1265 = vmul.f32 %v1145, %v1145
        %v1266 = vmul.f32 %v1146, %v1146
        %v1267 = vsub.f32 %v1251, %v1259
        %v1268 = vsub.f32 %v1252, %v1260
        %v1269 = vsub.f32 %v1253, %v1261
        %v1270 = vsub.f32 %v1254, %v1262
        %v1271 = vsub.f32 %v1255, %v1263
        %v1272 = vsub.f32 %v1256, %v1264
        %v1273 = vsub.f32 %v1257, %v1265
        %v1274 = vsub.f32 %v1258, %v1266
        %v1275 = vmax.f32 %v1267, 0.0
        %v1276 = vmax.f32 %v1268, 0.0
        %v1277 = vmax.f32 %v1269, 0.0
        %v1278 = vmax.f32 %v1270, 0.0
        %v1279 = vmax.f32 %v1271, 0.0
        %v1280 = vmax.f32 %v1272, 0.0
        %v1281 = vmax.f32 %v1273, 0.0
        %v1282 = vmax.f32 %v1274, 0.0
        %v1283 = vadd.f32 %v1275, 1e-05
        %v1284 = vadd.f32 %v1276, 1e-05
        %v1285 = vadd.f32 %v1277, 1e-05
        %v1286 = vadd.f32 %v1278, 1e-05
        %v1287 = vadd.f32 %v1279, 1e-05
        %v1288 = vadd.f32 %v1280, 1e-05
        %v1289 = vadd.f32 %v1281, 1e-05
        %v1290 = vadd.f32 %v1282, 1e-05
        %v1291 = vrsqrt.pop %v1283
        %v1292 = vrsqrt.pop %v1284
        %v1293 = vrsqrt.pop %v1285
        %v1294 = vrsqrt.pop %v1286
        %v1295 = vrsqrt.pop %v1287
        %v1296 = vrsqrt.pop %v1288
        %v1297 = vrsqrt.pop %v1289
        %v1298 = vrsqrt.pop %v1290
        %v1299 = vmul.f32 %v313, %v1291
        %v1300 = vmul.f32 %v314, %v1292
        %v1301 = vmul.f32 %v315, %v1293
        %v1302 = vmul.f32 %v316, %v1294
        %v1303 = vmul.f32 %v317, %v1295
        %v1304 = vmul.f32 %v318, %v1296
        %v1305 = vmul.f32 %v319, %v1297
        %v1306 = vmul.f32 %v320, %v1298
        %v1307 = vmul.f32 %v1139, %v1299
        %v1308 = vmul.f32 %v1140, %v1300
        %v1309 = vmul.f32 %v1141, %v1301
        %v1310 = vmul.f32 %v1142, %v1302
        %v1311 = vmul.f32 %v1143, %v1303
        %v1312 = vmul.f32 %v1144, %v1304
        %v1313 = vmul.f32 %v1145, %v1305
        %v1314 = vmul.f32 %v1146, %v1306
        %v1323 = vrot.slane %v1307, 7
        %v1324 = vrot.slane %v1308, 7
        %v1325 = vrot.slane %v1309, 7
        %v1326 = vrot.slane %v1310, 7
        %v1327 = vrot.slane %v1311, 7
        %v1328 = vrot.slane %v1312, 7
        %v1329 = vrot.slane %v1313, 7
        %v1330 = vrot.slane %v1314, 7
        %v1339 = vsub.f32 %v313, %v1323
        %v1340 = vsub.f32 %v314, %v1324
        %v1341 = vsub.f32 %v315, %v1325
        %v1342 = vsub.f32 %v316, %v1326
        %v1343 = vsub.f32 %v317, %v1327
        %v1344 = vsub.f32 %v318, %v1328
        %v1345 = vsub.f32 %v319, %v1329
        %v1346 = vsub.f32 %v320, %v1330
        %v1347 = vlaneseq
        %v1348 = vshrl.u32 %v1347, 7
        %v1349 = vsub.s32 2, %v1348
        %v1350 = vrot.slane %v1299, %v1349
        %v1351 = vlaneseq
        %v1352 = vshrl.u32 %v1351, 7
        %v1353 = vsub.s32 2, %v1352
        %v1354 = vrot.slane %v1300, %v1353
        %v1355 = vlaneseq
        %v1356 = vshrl.u32 %v1355, 7
        %v1357 = vsub.s32 2, %v1356
        %v1358 = vrot.slane %v1301, %v1357
        %v1359 = vlaneseq
        %v1360 = vshrl.u32 %v1359, 7
        %v1361 = vsub.s32 2, %v1360
        %v1362 = vrot.slane %v1302, %v1361
        %v1363 = vlaneseq
        %v1364 = vshrl.u32 %v1363, 7
        %v1365 = vsub.s32 2, %v1364
        %v1366 = vrot.slane %v1303, %v1365
        %v1367 = vlaneseq
        %v1368 = vshrl.u32 %v1367, 7
        %v1369 = vsub.s32 2, %v1368
        %v1370 = vrot.slane %v1304, %v1369
        %v1371 = vlaneseq
        %v1372 = vshrl.u32 %v1371, 7
        %v1373 = vsub.s32 2, %v1372
        %v1374 = vrot.slane %v1305, %v1373
        %v1375 = vlaneseq
        %v1376 = vshrl.u32 %v1375, 7
        %v1377 = vsub.s32 2, %v1376
        %v1378 = vrot.slane %v1306, %v1377
        %v1379 = vmul.f32 %v890, %v1350
        %v1380 = vmul.f32 %v892, %v1354
        %v1381 = vmul.f32 %v943, %v1358
        %v1382 = vmul.f32 %v945, %v1362
        %v1383 = vmul.f32 %v996, %v1366
        %v1384 = vmul.f32 %v998, %v1370
        %v1385 = vmul.f32 %v1049, %v1374
        %v1386 = vmul.f32 %v1051, %v1378
        %v1387 = vmul.f32 %v894, %v1350
        %v1388 = vmul.f32 %v896, %v1354
        %v1389 = vmul.f32 %v947, %v1358
        %v1390 = vmul.f32 %v949, %v1362
        %v1391 = vmul.f32 %v1000, %v1366
        %v1392 = vmul.f32 %v1002, %v1370
        %v1393 = vmul.f32 %v1053, %v1374
        %v1394 = vmul.f32 %v1055, %v1378
        %v1395 = vmul.f32 %v900, %v1350
        %v1396 = vmul.f32 %v902, %v1354
        %v1397 = vmul.f32 %v953, %v1358
        %v1398 = vmul.f32 %v955, %v1362
        %v1399 = vmul.f32 %v1006, %v1366
        %v1400 = vmul.f32 %v1008, %v1370
        %v1401 = vmul.f32 %v1059, %v1374
        %v1402 = vmul.f32 %v1061, %v1378
        %v1403 = vmul.f32 %v904, %v1350
        %v1404 = vmul.f32 %v906, %v1354
        %v1405 = vmul.f32 %v957, %v1358
        %v1406 = vmul.f32 %v959, %v1362
        %v1407 = vmul.f32 %v1010, %v1366
        %v1408 = vmul.f32 %v1012, %v1370
        %v1409 = vmul.f32 %v1063, %v1374
        %v1410 = vmul.f32 %v1065, %v1378
        %v1411 = vlaneseq
        %v1412 = vshrl.u32 %v1411, 7
        %v1413 = vsub.s32 3, %v1412
        %v1414 = vrot.slane %v1339, %v1413
        %v1415 = vlaneseq
        %v1416 = vshrl.u32 %v1415, 7
        %v1417 = vsub.s32 3, %v1416
        %v1418 = vrot.slane %v1340, %v1417
        %v1419 = vlaneseq
        %v1420 = vshrl.u32 %v1419, 7
        %v1421 = vsub.s32 3, %v1420
        %v1422 = vrot.slane %v1341, %v1421
        %v1423 = vlaneseq
        %v1424 = vshrl.u32 %v1423, 7
        %v1425 = vsub.s32 3, %v1424
        %v1426 = vrot.slane %v1342, %v1425
        %v1427 = vlaneseq
        %v1428 = vshrl.u32 %v1427, 7
        %v1429 = vsub.s32 3, %v1428
        %v1430 = vrot.slane %v1343, %v1429
        %v1431 = vlaneseq
        %v1432 = vshrl.u32 %v1431, 7
        %v1433 = vsub.s32 3, %v1432
        %v1434 = vrot.slane %v1344, %v1433
        %v1435 = vlaneseq
        %v1436 = vshrl.u32 %v1435, 7
        %v1437 = vsub.s32 3, %v1436
        %v1438 = vrot.slane %v1345, %v1437
        %v1439 = vlaneseq
        %v1440 = vshrl.u32 %v1439, 7
        %v1441 = vsub.s32 3, %v1440
        %v1442 = vrot.slane %v1346, %v1441
        %v1443 = vadd.f32 %v1379, %v1414
        %v1444 = vadd.f32 %v1380, %v1418
        %v1445 = vadd.f32 %v1381, %v1422
        %v1446 = vadd.f32 %v1382, %v1426
        %v1447 = vadd.f32 %v1383, %v1430
        %v1448 = vadd.f32 %v1384, %v1434
        %v1449 = vadd.f32 %v1385, %v1438
        %v1450 = vadd.f32 %v1386, %v1442
        %v1451 = vadd.f32 %v1387, %v1414
        %v1452 = vadd.f32 %v1388, %v1418
        %v1453 = vadd.f32 %v1389, %v1422
        %v1454 = vadd.f32 %v1390, %v1426
        %v1455 = vadd.f32 %v1391, %v1430
        %v1456 = vadd.f32 %v1392, %v1434
        %v1457 = vadd.f32 %v1393, %v1438
        %v1458 = vadd.f32 %v1394, %v1442
        %v1459 = vadd.f32 %v1395, %v1414
        %v1460 = vadd.f32 %v1396, %v1418
        %v1461 = vadd.f32 %v1397, %v1422
        %v1462 = vadd.f32 %v1398, %v1426
        %v1463 = vadd.f32 %v1399, %v1430
        %v1464 = vadd.f32 %v1400, %v1434
        %v1465 = vadd.f32 %v1401, %v1438
        %v1466 = vadd.f32 %v1402, %v1442
        %v1467 = vadd.f32 %v1403, %v1414
        %v1468 = vadd.f32 %v1404, %v1418
        %v1469 = vadd.f32 %v1405, %v1422
        %v1470 = vadd.f32 %v1406, %v1426
        %v1471 = vadd.f32 %v1407, %v1430
        %v1472 = vadd.f32 %v1408, %v1434
        %v1473 = vadd.f32 %v1409, %v1438
        %v1474 = vadd.f32 %v1410, %v1442
        %v1475 = vmax.f32 %v1443, 0.0
        %v1476 = vmax.f32 %v1444, 0.0
        %v1477 = vmax.f32 %v1445, 0.0
        %v1478 = vmax.f32 %v1446, 0.0
        %v1479 = vmax.f32 %v1447, 0.0
        %v1480 = vmax.f32 %v1448, 0.0
        %v1481 = vmax.f32 %v1449, 0.0
        %v1482 = vmax.f32 %v1450, 0.0
        %v1483 = vmax.f32 %v1451, 0.0
        %v1484 = vmax.f32 %v1452, 0.0
        %v1485 = vmax.f32 %v1453, 0.0
        %v1486 = vmax.f32 %v1454, 0.0
        %v1487 = vmax.f32 %v1455, 0.0
        %v1488 = vmax.f32 %v1456, 0.0
        %v1489 = vmax.f32 %v1457, 0.0
        %v1490 = vmax.f32 %v1458, 0.0
        %v1491 = vmax.f32 %v1459, 0.0
        %v1492 = vmax.f32 %v1460, 0.0
        %v1493 = vmax.f32 %v1461, 0.0
        %v1494 = vmax.f32 %v1462, 0.0
        %v1495 = vmax.f32 %v1463, 0.0
        %v1496 = vmax.f32 %v1464, 0.0
        %v1497 = vmax.f32 %v1465, 0.0
        %v1498 = vmax.f32 %v1466, 0.0
        %v1499 = vmax.f32 %v1467, 0.0
        %v1500 = vmax.f32 %v1468, 0.0
        %v1501 = vmax.f32 %v1469, 0.0
        %v1502 = vmax.f32 %v1470, 0.0
        %v1503 = vmax.f32 %v1471, 0.0
        %v1504 = vmax.f32 %v1472, 0.0
        %v1505 = vmax.f32 %v1473, 0.0
        %v1506 = vmax.f32 %v1474, 0.0
        %v1507 = vpack.c.bf16 %v1483, %v1475
        %v1508 = vpack.c.bf16 %v1484, %v1476
        %v1509 = vpack.c.bf16 %v1485, %v1477
        %v1510 = vpack.c.bf16 %v1486, %v1478
        %v1511 = vpack.c.bf16 %v1487, %v1479
        %v1512 = vpack.c.bf16 %v1488, %v1480
        %v1513 = vpack.c.bf16 %v1489, %v1481
        %v1514 = vpack.c.bf16 %v1490, %v1482
        %v1515 = vpack.c.bf16 %v1499, %v1491
        %v1516 = vpack.c.bf16 %v1500, %v1492
        %v1517 = vpack.c.bf16 %v1501, %v1493
        %v1518 = vpack.c.bf16 %v1502, %v1494
        %v1519 = vpack.c.bf16 %v1503, %v1495
        %v1520 = vpack.c.bf16 %v1504, %v1496
        %v1521 = vpack.c.bf16 %v1505, %v1497
        %v1522 = vpack.c.bf16 %v1506, %v1498
        %v1535 = vunpack.c.l.b16 %v325
        %v1536 = vunpack.c.l.b16 %v326
        %v1537 = vunpack.c.l.b16 %v327
        %v1538 = vunpack.c.l.b16 %v328
        %v1539 = vunpack.c.l.b16 %v329
        %v1540 = vunpack.c.l.b16 %v330
        %v1541 = vunpack.c.l.b16 %v331
        %v1542 = vunpack.c.l.b16 %v332
        %v1543 = vunpack.c.l.b16 %v333
        %v1544 = vunpack.c.l.b16 %v334
        %v1545 = vunpack.c.l.b16 %v335
        %v1546 = vunpack.c.l.b16 %v336
        %v1547 = vpack.c.b16 %v1536, %v1535
        %v1548 = vpack.c.b16 %v1538, %v1537
        %v1549 = vpack.c.b16 %v1540, %v1539
        %v1550 = vpack.c.b16 %v1542, %v1541
        %v1551 = vpack.c.b16 %v1544, %v1543
        %v1552 = vpack.c.b16 %v1546, %v1545
        %v1554 = vsel %vm848, %v1547, 0
        %v1557 = vsel %vm848, %v1548, 0
        %v1560 = vsel %vm848, %v1549, 0
        %v1563 = vsel %vm848, %v1550, 0
        %v1566 = vsel %vm848, %v1551, 0
        %v1569 = vsel %vm848, %v1552, 0
        %1571 = vmatprep.subr.bf16.mxu0 %v1508
        %1572 = vmatpush1.bf16.msra.mxu0 %v1507
        %1573 = vmatprep.subr.bf16.mxu0 %v1516
        %1574 = vmatpush1.bf16.msra.mxu0 %v1515
        %1575 = vmatprep.subr.bf16.mxu0 0
        %1576 = vmatpush1.bf16.msra.mxu0 0
        %1577 = vmatprep.subr.bf16.mxu0 0
        %1578 = vmatpush1.bf16.msra.mxu0 0
        %1579 = vmatprep.subr.bf16.mxu0 0
        %1580 = vmatpush1.bf16.msra.mxu0 0
        %1581 = vmatprep.subr.bf16.mxu0 0
        %1582 = vmatpush1.bf16.msra.mxu0 0
        %1583 = vmatprep.subr.bf16.mxu0 0
        %1584 = vmatpush1.bf16.msra.mxu0 0
        %1585 = vmatprep.subr.bf16.mxu0 0
        %1586 = vmatpush1.bf16.msra.mxu0 0
        %1587 = vmatprep.subr.bf16.mxu0 0
        %1588 = vmatpush1.bf16.msra.mxu0 0
        %1589 = vmatprep.subr.bf16.mxu0 0
        %1590 = vmatpush1.bf16.msra.mxu0 0
        %1591 = vmatprep.subr.bf16.mxu0 0
        %1592 = vmatpush1.bf16.msra.mxu0 0
        %1593 = vmatprep.subr.bf16.mxu0 0
        %1594 = vmatpush1.bf16.msra.mxu0 0
        %1595 = vmatprep.subr.bf16.mxu0 0
        %1596 = vmatpush1.bf16.msra.mxu0 0
        %1597 = vmatprep.subr.bf16.mxu0 0
        %1598 = vmatpush1.bf16.msra.mxu0 0
        %1599 = vmatprep.subr.bf16.mxu0 0
        %1600 = vmatpush1.bf16.msra.mxu0 0
        %1601 = vmatprep.subr.bf16.mxu0 0
        %1602 = vmatpush1.bf16.msra.mxu0 0
        %1603 = vmatprep.mubr.bf16.mxu0 0
        %1604 = vmatmul.mubr.bf16.gmra.mrb[0].mxu0 %v1554
        %v1605 = vpop.f32.mrb[0].mxu0
        %v1606 = vadd.f32 0.0, %v1605
        %v1607 = vpop.f32.mrb[0].mxu0
        %v1608 = vadd.f32 0.0, %v1607
        %v1609 = vpop.f32.mrb[0].mxu0
        %v1610 = vadd.f32 0.0, %v1609
        %v1611 = vpop.f32.mrb[0].mxu0
        %v1612 = vadd.f32 0.0, %v1611
        %1613 = vmatprep.mubr.bf16.mxu0 0
        %1614 = vmatmul.mubr.bf16.gmra.mrb[0].mxu0 %v1557
        %v1615 = vpop.f32.mrb[0].mxu0
        %v1616 = vadd.f32 0.0, %v1615
        %v1617 = vpop.f32.mrb[0].mxu0
        %v1618 = vadd.f32 0.0, %v1617
        %v1619 = vpop.f32.mrb[0].mxu0
        %v1620 = vadd.f32 0.0, %v1619
        %v1621 = vpop.f32.mrb[0].mxu0
        %v1622 = vadd.f32 0.0, %v1621
        %1623 = vmatprep.mubr.bf16.mxu0 0
        %1624 = vmatmul.mubr.bf16.gmra.mrb[0].mxu0 %v1560
        %v1625 = vpop.f32.mrb[0].mxu0
        %v1626 = vadd.f32 0.0, %v1625
        %v1627 = vpop.f32.mrb[0].mxu0
        %v1628 = vadd.f32 0.0, %v1627
        %v1629 = vpop.f32.mrb[0].mxu0
        %v1630 = vadd.f32 0.0, %v1629
        %v1631 = vpop.f32.mrb[0].mxu0
        %v1632 = vadd.f32 0.0, %v1631
        %1633 = vmatprep.mubr.bf16.mxu0 0
        %1634 = vmatmul.mubr.bf16.gmra.mrb[0].mxu0 %v1563
        %v1635 = vpop.f32.mrb[0].mxu0
        %v1636 = vadd.f32 0.0, %v1635
        %v1637 = vpop.f32.mrb[0].mxu0
        %v1638 = vadd.f32 0.0, %v1637
        %v1639 = vpop.f32.mrb[0].mxu0
        %v1640 = vadd.f32 0.0, %v1639
        %v1641 = vpop.f32.mrb[0].mxu0
        %v1642 = vadd.f32 0.0, %v1641
        %1643 = vmatprep.mubr.bf16.mxu0 0
        %1644 = vmatmul.mubr.bf16.gmra.mrb[0].mxu0 %v1566
        %v1645 = vpop.f32.mrb[0].mxu0
        %v1646 = vadd.f32 0.0, %v1645
        %v1647 = vpop.f32.mrb[0].mxu0
        %v1648 = vadd.f32 0.0, %v1647
        %v1649 = vpop.f32.mrb[0].mxu0
        %v1650 = vadd.f32 0.0, %v1649
        %v1651 = vpop.f32.mrb[0].mxu0
        %v1652 = vadd.f32 0.0, %v1651
        %1653 = vmatprep.mubr.bf16.mxu0 0
        %1654 = vmatmul.mubr.bf16.gmra.mrb[0].mxu0 %v1569
        %v1655 = vpop.f32.mrb[0].mxu0
        %v1656 = vadd.f32 0.0, %v1655
        %v1657 = vpop.f32.mrb[0].mxu0
        %v1658 = vadd.f32 0.0, %v1657
        %v1659 = vpop.f32.mrb[0].mxu0
        %v1660 = vadd.f32 0.0, %v1659
        %v1661 = vpop.f32.mrb[0].mxu0
        %v1662 = vadd.f32 0.0, %v1661
        %1663 = vdwg.mxu0
        %1664 = vmatprep.subr.bf16.mxu0 %v1510
        %1665 = vmatpush1.bf16.msra.mxu0 %v1509
        %1666 = vmatprep.subr.bf16.mxu0 %v1518
        %1667 = vmatpush1.bf16.msra.mxu0 %v1517
        %1668 = vmatprep.subr.bf16.mxu0 0
        %1669 = vmatpush1.bf16.msra.mxu0 0
        %1670 = vmatprep.subr.bf16.mxu0 0
        %1671 = vmatpush1.bf16.msra.mxu0 0
        %1672 = vmatprep.subr.bf16.mxu0 0
        %1673 = vmatpush1.bf16.msra.mxu0 0
        %1674 = vmatprep.subr.bf16.mxu0 0
        %1675 = vmatpush1.bf16.msra.mxu0 0
        %1676 = vmatprep.subr.bf16.mxu0 0
        %1677 = vmatpush1.bf16.msra.mxu0 0
        %1678 = vmatprep.subr.bf16.mxu0 0
        %1679 = vmatpush1.bf16.msra.mxu0 0
        %1680 = vmatprep.subr.bf16.mxu0 0
        %1681 = vmatpush1.bf16.msra.mxu0 0
        %1682 = vmatprep.subr.bf16.mxu0 0
        %1683 = vmatpush1.bf16.msra.mxu0 0
        %1684 = vmatprep.subr.bf16.mxu0 0
        %1685 = vmatpush1.bf16.msra.mxu0 0
        %1686 = vmatprep.subr.bf16.mxu0 0
        %1687 = vmatpush1.bf16.msra.mxu0 0
        %1688 = vmatprep.subr.bf16.mxu0 0
        %1689 = vmatpush1.bf16.msra.mxu0 0
        %1690 = vmatprep.subr.bf16.mxu0 0
        %1691 = vmatpush1.bf16.msra.mxu0 0
        %1692 = vmatprep.subr.bf16.mxu0 0
        %1693 = vmatpush1.bf16.msra.mxu0 0
        %1694 = vmatprep.subr.bf16.mxu0 0
        %1695 = vmatpush1.bf16.msra.mxu0 0
        %1696 = vmatprep.mubr.bf16.mxu0 0
        %1697 = vmatmul.mubr.bf16.gmra.mrb[0].mxu0 %v1554
        %v1698 = vpop.f32.mrb[0].mxu0
        %v1699 = vadd.f32 0.0, %v1698
        %v1700 = vpop.f32.mrb[0].mxu0
        %v1701 = vadd.f32 0.0, %v1700
        %v1702 = vpop.f32.mrb[0].mxu0
        %v1703 = vadd.f32 0.0, %v1702
        %v1704 = vpop.f32.mrb[0].mxu0
        %v1705 = vadd.f32 0.0, %v1704
        %1706 = vmatprep.mubr.bf16.mxu0 0
        %1707 = vmatmul.mubr.bf16.gmra.mrb[0].mxu0 %v1557
        %v1708 = vpop.f32.mrb[0].mxu0
        %v1709 = vadd.f32 0.0, %v1708
        %v1710 = vpop.f32.mrb[0].mxu0
        %v1711 = vadd.f32 0.0, %v1710
        %v1712 = vpop.f32.mrb[0].mxu0
        %v1713 = vadd.f32 0.0, %v1712
        %v1714 = vpop.f32.mrb[0].mxu0
        %v1715 = vadd.f32 0.0, %v1714
        %1716 = vmatprep.mubr.bf16.mxu0 0
        %1717 = vmatmul.mubr.bf16.gmra.mrb[0].mxu0 %v1560
        %v1718 = vpop.f32.mrb[0].mxu0
        %v1719 = vadd.f32 0.0, %v1718
        %v1720 = vpop.f32.mrb[0].mxu0
        %v1721 = vadd.f32 0.0, %v1720
        %v1722 = vpop.f32.mrb[0].mxu0
        %v1723 = vadd.f32 0.0, %v1722
        %v1724 = vpop.f32.mrb[0].mxu0
        %v1725 = vadd.f32 0.0, %v1724
        %1726 = vmatprep.mubr.bf16.mxu0 0
        %1727 = vmatmul.mubr.bf16.gmra.mrb[0].mxu0 %v1563
        %v1728 = vpop.f32.mrb[0].mxu0
        %v1729 = vadd.f32 0.0, %v1728
        %v1730 = vpop.f32.mrb[0].mxu0
        %v1731 = vadd.f32 0.0, %v1730
        %v1732 = vpop.f32.mrb[0].mxu0
        %v1733 = vadd.f32 0.0, %v1732
        %v1734 = vpop.f32.mrb[0].mxu0
        %v1735 = vadd.f32 0.0, %v1734
        %1736 = vmatprep.mubr.bf16.mxu0 0
        %1737 = vmatmul.mubr.bf16.gmra.mrb[0].mxu0 %v1566
        %v1738 = vpop.f32.mrb[0].mxu0
        %v1739 = vadd.f32 0.0, %v1738
        %v1740 = vpop.f32.mrb[0].mxu0
        %v1741 = vadd.f32 0.0, %v1740
        %v1742 = vpop.f32.mrb[0].mxu0
        %v1743 = vadd.f32 0.0, %v1742
        %v1744 = vpop.f32.mrb[0].mxu0
        %v1745 = vadd.f32 0.0, %v1744
        %1746 = vmatprep.mubr.bf16.mxu0 0
        %1747 = vmatmul.mubr.bf16.gmra.mrb[0].mxu0 %v1569
        %v1748 = vpop.f32.mrb[0].mxu0
        %v1749 = vadd.f32 0.0, %v1748
        %v1750 = vpop.f32.mrb[0].mxu0
        %v1751 = vadd.f32 0.0, %v1750
        %v1752 = vpop.f32.mrb[0].mxu0
        %v1753 = vadd.f32 0.0, %v1752
        %v1754 = vpop.f32.mrb[0].mxu0
        %v1755 = vadd.f32 0.0, %v1754
        %1756 = vdwg.mxu0
        %1757 = vmatprep.subr.bf16.mxu0 %v1512
        %1758 = vmatpush1.bf16.msra.mxu0 %v1511
        %1759 = vmatprep.subr.bf16.mxu0 %v1520
        %1760 = vmatpush1.bf16.msra.mxu0 %v1519
        %1761 = vmatprep.subr.bf16.mxu0 0
        %1762 = vmatpush1.bf16.msra.mxu0 0
        %1763 = vmatprep.subr.bf16.mxu0 0
        %1764 = vmatpush1.bf16.msra.mxu0 0
        %1765 = vmatprep.subr.bf16.mxu0 0
        %1766 = vmatpush1.bf16.msra.mxu0 0
        %1767 = vmatprep.subr.bf16.mxu0 0
        %1768 = vmatpush1.bf16.msra.mxu0 0
        %1769 = vmatprep.subr.bf16.mxu0 0
        %1770 = vmatpush1.bf16.msra.mxu0 0
        %1771 = vmatprep.subr.bf16.mxu0 0
        %1772 = vmatpush1.bf16.msra.mxu0 0
        %1773 = vmatprep.subr.bf16.mxu0 0
        %1774 = vmatpush1.bf16.msra.mxu0 0
        %1775 = vmatprep.subr.bf16.mxu0 0
        %1776 = vmatpush1.bf16.msra.mxu0 0
        %1777 = vmatprep.subr.bf16.mxu0 0
        %1778 = vmatpush1.bf16.msra.mxu0 0
        %1779 = vmatprep.subr.bf16.mxu0 0
        %1780 = vmatpush1.bf16.msra.mxu0 0
        %1781 = vmatprep.subr.bf16.mxu0 0
        %1782 = vmatpush1.bf16.msra.mxu0 0
        %1783 = vmatprep.subr.bf16.mxu0 0
        %1784 = vmatpush1.bf16.msra.mxu0 0
        %1785 = vmatprep.subr.bf16.mxu0 0
        %1786 = vmatpush1.bf16.msra.mxu0 0
        %1787 = vmatprep.subr.bf16.mxu0 0
        %1788 = vmatpush1.bf16.msra.mxu0 0
        %1789 = vmatprep.mubr.bf16.mxu0 0
        %1790 = vmatmul.mubr.bf16.gmra.mrb[0].mxu0 %v1554
        %v1791 = vpop.f32.mrb[0].mxu0
        %v1792 = vadd.f32 0.0, %v1791
        %v1793 = vpop.f32.mrb[0].mxu0
        %v1794 = vadd.f32 0.0, %v1793
        %v1795 = vpop.f32.mrb[0].mxu0
        %v1796 = vadd.f32 0.0, %v1795
        %v1797 = vpop.f32.mrb[0].mxu0
        %v1798 = vadd.f32 0.0, %v1797
        %1799 = vmatprep.mubr.bf16.mxu0 0
        %1800 = vmatmul.mubr.bf16.gmra.mrb[0].mxu0 %v1557
        %v1801 = vpop.f32.mrb[0].mxu0
        %v1802 = vadd.f32 0.0, %v1801
        %v1803 = vpop.f32.mrb[0].mxu0
        %v1804 = vadd.f32 0.0, %v1803
        %v1805 = vpop.f32.mrb[0].mxu0
        %v1806 = vadd.f32 0.0, %v1805
        %v1807 = vpop.f32.mrb[0].mxu0
        %v1808 = vadd.f32 0.0, %v1807
        %1809 = vmatprep.mubr.bf16.mxu0 0
        %1810 = vmatmul.mubr.bf16.gmra.mrb[0].mxu0 %v1560
        %v1811 = vpop.f32.mrb[0].mxu0
        %v1812 = vadd.f32 0.0, %v1811
        %v1813 = vpop.f32.mrb[0].mxu0
        %v1814 = vadd.f32 0.0, %v1813
        %v1815 = vpop.f32.mrb[0].mxu0
        %v1816 = vadd.f32 0.0, %v1815
        %v1817 = vpop.f32.mrb[0].mxu0
        %v1818 = vadd.f32 0.0, %v1817
        %1819 = vmatprep.mubr.bf16.mxu0 0
        %1820 = vmatmul.mubr.bf16.gmra.mrb[0].mxu0 %v1563
        %v1821 = vpop.f32.mrb[0].mxu0
        %v1822 = vadd.f32 0.0, %v1821
        %v1823 = vpop.f32.mrb[0].mxu0
        %v1824 = vadd.f32 0.0, %v1823
        %v1825 = vpop.f32.mrb[0].mxu0
        %v1826 = vadd.f32 0.0, %v1825
        %v1827 = vpop.f32.mrb[0].mxu0
        %v1828 = vadd.f32 0.0, %v1827
        %1829 = vmatprep.mubr.bf16.mxu0 0
        %1830 = vmatmul.mubr.bf16.gmra.mrb[0].mxu0 %v1566
        %v1831 = vpop.f32.mrb[0].mxu0
        %v1832 = vadd.f32 0.0, %v1831
        %v1833 = vpop.f32.mrb[0].mxu0
        %v1834 = vadd.f32 0.0, %v1833
        %v1835 = vpop.f32.mrb[0].mxu0
        %v1836 = vadd.f32 0.0, %v1835
        %v1837 = vpop.f32.mrb[0].mxu0
        %v1838 = vadd.f32 0.0, %v1837
        %1839 = vmatprep.mubr.bf16.mxu0 0
        %1840 = vmatmul.mubr.bf16.gmra.mrb[0].mxu0 %v1569
        %v1841 = vpop.f32.mrb[0].mxu0
        %v1842 = vadd.f32 0.0, %v1841
        %v1843 = vpop.f32.mrb[0].mxu0
        %v1844 = vadd.f32 0.0, %v1843
        %v1845 = vpop.f32.mrb[0].mxu0
        %v1846 = vadd.f32 0.0, %v1845
        %v1847 = vpop.f32.mrb[0].mxu0
        %v1848 = vadd.f32 0.0, %v1847
        %1849 = vdwg.mxu0
        %1850 = vmatprep.subr.bf16.mxu0 %v1514
        %1851 = vmatpush1.bf16.msra.mxu0 %v1513
        %1852 = vmatprep.subr.bf16.mxu0 %v1522
        %1853 = vmatpush1.bf16.msra.mxu0 %v1521
        %1854 = vmatprep.subr.bf16.mxu0 0
        %1855 = vmatpush1.bf16.msra.mxu0 0
        %1856 = vmatprep.subr.bf16.mxu0 0
        %1857 = vmatpush1.bf16.msra.mxu0 0
        %1858 = vmatprep.subr.bf16.mxu0 0
        %1859 = vmatpush1.bf16.msra.mxu0 0
        %1860 = vmatprep.subr.bf16.mxu0 0
        %1861 = vmatpush1.bf16.msra.mxu0 0
        %1862 = vmatprep.subr.bf16.mxu0 0
        %1863 = vmatpush1.bf16.msra.mxu0 0
        %1864 = vmatprep.subr.bf16.mxu0 0
        %1865 = vmatpush1.bf16.msra.mxu0 0
        %1866 = vmatprep.subr.bf16.mxu0 0
        %1867 = vmatpush1.bf16.msra.mxu0 0
        %1868 = vmatprep.subr.bf16.mxu0 0
        %1869 = vmatpush1.bf16.msra.mxu0 0
        %1870 = vmatprep.subr.bf16.mxu0 0
        %1871 = vmatpush1.bf16.msra.mxu0 0
        %1872 = vmatprep.subr.bf16.mxu0 0
        %1873 = vmatpush1.bf16.msra.mxu0 0
        %1874 = vmatprep.subr.bf16.mxu0 0
        %1875 = vmatpush1.bf16.msra.mxu0 0
        %1876 = vmatprep.subr.bf16.mxu0 0
        %1877 = vmatpush1.bf16.msra.mxu0 0
        %1878 = vmatprep.subr.bf16.mxu0 0
        %1879 = vmatpush1.bf16.msra.mxu0 0
        %1880 = vmatprep.subr.bf16.mxu0 0
        %1881 = vmatpush1.bf16.msra.mxu0 0
        %1882 = vmatprep.mubr.bf16.mxu0 0
        %1883 = vmatmul.mubr.bf16.gmra.mrb[0].mxu0 %v1554
        %v1884 = vpop.f32.mrb[0].mxu0
        %v1885 = vadd.f32 0.0, %v1884
        %v1886 = vpop.f32.mrb[0].mxu0
        %v1887 = vadd.f32 0.0, %v1886
        %v1888 = vpop.f32.mrb[0].mxu0
        %v1889 = vadd.f32 0.0, %v1888
        %v1890 = vpop.f32.mrb[0].mxu0
        %v1891 = vadd.f32 0.0, %v1890
        %1892 = vmatprep.mubr.bf16.mxu0 0
        %1893 = vmatmul.mubr.bf16.gmra.mrb[0].mxu0 %v1557
        %v1894 = vpop.f32.mrb[0].mxu0
        %v1895 = vadd.f32 0.0, %v1894
        %v1896 = vpop.f32.mrb[0].mxu0
        %v1897 = vadd.f32 0.0, %v1896
        %v1898 = vpop.f32.mrb[0].mxu0
        %v1899 = vadd.f32 0.0, %v1898
        %v1900 = vpop.f32.mrb[0].mxu0
        %v1901 = vadd.f32 0.0, %v1900
        %1902 = vmatprep.mubr.bf16.mxu0 0
        %1903 = vmatmul.mubr.bf16.gmra.mrb[0].mxu0 %v1560
        %v1904 = vpop.f32.mrb[0].mxu0
        %v1905 = vadd.f32 0.0, %v1904
        %v1906 = vpop.f32.mrb[0].mxu0
        %v1907 = vadd.f32 0.0, %v1906
        %v1908 = vpop.f32.mrb[0].mxu0
        %v1909 = vadd.f32 0.0, %v1908
        %v1910 = vpop.f32.mrb[0].mxu0
        %v1911 = vadd.f32 0.0, %v1910
        %1912 = vmatprep.mubr.bf16.mxu0 0
        %1913 = vmatmul.mubr.bf16.gmra.mrb[0].mxu0 %v1563
        %v1914 = vpop.f32.mrb[0].mxu0
        %v1915 = vadd.f32 0.0, %v1914
        %v1916 = vpop.f32.mrb[0].mxu0
        %v1917 = vadd.f32 0.0, %v1916
        %v1918 = vpop.f32.mrb[0].mxu0
        %v1919 = vadd.f32 0.0, %v1918
        %v1920 = vpop.f32.mrb[0].mxu0
        %v1921 = vadd.f32 0.0, %v1920
        %1922 = vmatprep.mubr.bf16.mxu0 0
        %1923 = vmatmul.mubr.bf16.gmra.mrb[0].mxu0 %v1566
        %v1924 = vpop.f32.mrb[0].mxu0
        %v1925 = vadd.f32 0.0, %v1924
        %v1926 = vpop.f32.mrb[0].mxu0
        %v1927 = vadd.f32 0.0, %v1926
        %v1928 = vpop.f32.mrb[0].mxu0
        %v1929 = vadd.f32 0.0, %v1928
        %v1930 = vpop.f32.mrb[0].mxu0
        %v1931 = vadd.f32 0.0, %v1930
        %1932 = vmatprep.mubr.bf16.mxu0 0
        %1933 = vmatmul.mubr.bf16.gmra.mrb[0].mxu0 %v1569
        %v1934 = vpop.f32.mrb[0].mxu0
        %v1935 = vadd.f32 0.0, %v1934
        %v1936 = vpop.f32.mrb[0].mxu0
        %v1937 = vadd.f32 0.0, %v1936
        %v1938 = vpop.f32.mrb[0].mxu0
        %v1939 = vadd.f32 0.0, %v1938
        %v1940 = vpop.f32.mrb[0].mxu0
        %v1941 = vadd.f32 0.0, %v1940
        %1942 = vdwg.mxu0
        %1943 = vrot.lane.b32.xlu0 %v1606, 1
        %v1944 = vpop.permute.xlu0 %1943
        %1945 = vrot.lane.b32.xlu0 %v1610, 1
        %v1946 = vpop.permute.xlu0 %1945
        %1947 = vrot.lane.b32.xlu0 %v1616, 1
        %v1948 = vpop.permute.xlu0 %1947
        %1949 = vrot.lane.b32.xlu0 %v1620, 1
        %v1950 = vpop.permute.xlu0 %1949
        %1951 = vrot.lane.b32.xlu0 %v1608, 1
        %v1952 = vpop.permute.xlu0 %1951
        %1953 = vrot.lane.b32.xlu0 %v1612, 1
        %v1954 = vpop.permute.xlu0 %1953
        %1955 = vrot.lane.b32.xlu0 %v1618, 1
        %v1956 = vpop.permute.xlu0 %1955
        %1957 = vrot.lane.b32.xlu0 %v1622, 1
        %v1958 = vpop.permute.xlu0 %1957
        %1959 = vrot.lane.b32.xlu0 %v1699, 1
        %v1960 = vpop.permute.xlu0 %1959
        %1961 = vrot.lane.b32.xlu0 %v1703, 1
        %v1962 = vpop.permute.xlu0 %1961
        %1963 = vrot.lane.b32.xlu0 %v1709, 1
        %v1964 = vpop.permute.xlu0 %1963
        %1965 = vrot.lane.b32.xlu0 %v1713, 1
        %v1966 = vpop.permute.xlu0 %1965
        %1967 = vrot.lane.b32.xlu0 %v1701, 1
        %v1968 = vpop.permute.xlu0 %1967
        %1969 = vrot.lane.b32.xlu0 %v1705, 1
        %v1970 = vpop.permute.xlu0 %1969
        %1971 = vrot.lane.b32.xlu0 %v1711, 1
        %v1972 = vpop.permute.xlu0 %1971
        %1973 = vrot.lane.b32.xlu0 %v1715, 1
        %v1974 = vpop.permute.xlu0 %1973
        %1975 = vrot.lane.b32.xlu0 %v1792, 1
        %v1976 = vpop.permute.xlu0 %1975
        %1977 = vrot.lane.b32.xlu0 %v1796, 1
        %v1978 = vpop.permute.xlu0 %1977
        %1979 = vrot.lane.b32.xlu0 %v1802, 1
        %v1980 = vpop.permute.xlu0 %1979
        %1981 = vrot.lane.b32.xlu0 %v1806, 1
        %v1982 = vpop.permute.xlu0 %1981
        %1983 = vrot.lane.b32.xlu0 %v1794, 1
        %v1984 = vpop.permute.xlu0 %1983
        %1985 = vrot.lane.b32.xlu0 %v1798, 1
        %v1986 = vpop.permute.xlu0 %1985
        %1987 = vrot.lane.b32.xlu0 %v1804, 1
        %v1988 = vpop.permute.xlu0 %1987
        %1989 = vrot.lane.b32.xlu0 %v1808, 1
        %v1990 = vpop.permute.xlu0 %1989
        %1991 = vrot.lane.b32.xlu0 %v1885, 1
        %v1992 = vpop.permute.xlu0 %1991
        %1993 = vrot.lane.b32.xlu0 %v1889, 1
        %v1994 = vpop.permute.xlu0 %1993
        %1995 = vrot.lane.b32.xlu0 %v1895, 1
        %v1996 = vpop.permute.xlu0 %1995
        %1997 = vrot.lane.b32.xlu0 %v1899, 1
        %v1998 = vpop.permute.xlu0 %1997
        %1999 = vrot.lane.b32.xlu0 %v1887, 1
        %v2000 = vpop.permute.xlu0 %1999
        %2001 = vrot.lane.b32.xlu0 %v1891, 1
        %v2002 = vpop.permute.xlu0 %2001
        %2003 = vrot.lane.b32.xlu0 %v1897, 1
        %v2004 = vpop.permute.xlu0 %2003
        %2005 = vrot.lane.b32.xlu0 %v1901, 1
        %v2006 = vpop.permute.xlu0 %2005
        %v2007 = vlaneseq
        %v2008 = vand.u32 %v2007, 127
        %vm2009 = vcmp.lt.s32.totalorder %v2008, 1
        %v2010 = vsel %vm2009, %v1992, %v2000
        %v2011 = vsel %vm2009, %v1994, %v2002
        %v2012 = vsel %vm2009, %v1996, %v2004
        %v2013 = vsel %vm2009, %v1998, %v2006
        %v2014 = vsel %vm2009, %v1984, %v1992
        %v2015 = vsel %vm2009, %v1986, %v1994
        %v2016 = vsel %vm2009, %v1988, %v1996
        %v2017 = vsel %vm2009, %v1990, %v1998
        %v2018 = vsel %vm2009, %v1976, %v1984
        %v2019 = vsel %vm2009, %v1978, %v1986
        %v2020 = vsel %vm2009, %v1980, %v1988
        %v2021 = vsel %vm2009, %v1982, %v1990
        %v2022 = vsel %vm2009, %v1968, %v1976
        %v2023 = vsel %vm2009, %v1970, %v1978
        %v2024 = vsel %vm2009, %v1972, %v1980
        %v2025 = vsel %vm2009, %v1974, %v1982
        %v2026 = vsel %vm2009, %v1960, %v1968
        %v2027 = vsel %vm2009, %v1962, %v1970
        %v2028 = vsel %vm2009, %v1964, %v1972
        %v2029 = vsel %vm2009, %v1966, %v1974
        %v2030 = vsel %vm2009, %v1952, %v1960
        %v2031 = vsel %vm2009, %v1954, %v1962
        %v2032 = vsel %vm2009, %v1956, %v1964
        %v2033 = vsel %vm2009, %v1958, %v1966
        %v2034 = vsel %vm2009, %v1944, %v1952
        %v2035 = vsel %vm2009, %v1946, %v1954
        %v2036 = vsel %vm2009, %v1948, %v1956
        %v2037 = vsel %vm2009, %v1950, %v1958
        %v2038 = vsel %vm2009, %v2000, %v1944
        %v2039 = vsel %vm2009, %v2002, %v1946
        %v2040 = vsel %vm2009, %v2004, %v1948
        %v2041 = vsel %vm2009, %v2006, %v1950
        %v2042 = vadd.f32 %v2038, %v1626
        %v2043 = vadd.f32 %v2034, %v1628
        %v2044 = vadd.f32 %v2030, %v1719
        %v2045 = vadd.f32 %v2026, %v1721
        %v2046 = vadd.f32 %v2022, %v1812
        %v2047 = vadd.f32 %v2018, %v1814
        %v2048 = vadd.f32 %v2014, %v1905
        %v2049 = vadd.f32 %v2010, %v1907
        %v2050 = vadd.f32 %v2039, %v1630
        %v2051 = vadd.f32 %v2035, %v1632
        %v2052 = vadd.f32 %v2031, %v1723
        %v2053 = vadd.f32 %v2027, %v1725
        %v2054 = vadd.f32 %v2023, %v1816
        %v2055 = vadd.f32 %v2019, %v1818
        %v2056 = vadd.f32 %v2015, %v1909
        %v2057 = vadd.f32 %v2011, %v1911
        %v2058 = vadd.f32 %v2040, %v1636
        %v2059 = vadd.f32 %v2036, %v1638
        %v2060 = vadd.f32 %v2032, %v1729
        %v2061 = vadd.f32 %v2028, %v1731
        %v2062 = vadd.f32 %v2024, %v1822
        %v2063 = vadd.f32 %v2020, %v1824
        %v2064 = vadd.f32 %v2016, %v1915
        %v2065 = vadd.f32 %v2012, %v1917
        %v2066 = vadd.f32 %v2041, %v1640
        %v2067 = vadd.f32 %v2037, %v1642
        %v2068 = vadd.f32 %v2033, %v1733
        %v2069 = vadd.f32 %v2029, %v1735
        %v2070 = vadd.f32 %v2025, %v1826
        %v2071 = vadd.f32 %v2021, %v1828
        %v2072 = vadd.f32 %v2017, %v1919
        %v2073 = vadd.f32 %v2013, %v1921
        %2074 = vrot.lane.b32.xlu0 %v1646, 127
        %v2075 = vpop.permute.xlu0 %2074
        %2076 = vrot.lane.b32.xlu0 %v1650, 127
        %v2077 = vpop.permute.xlu0 %2076
        %2078 = vrot.lane.b32.xlu0 %v1656, 127
        %v2079 = vpop.permute.xlu0 %2078
        %2080 = vrot.lane.b32.xlu0 %v1660, 127
        %v2081 = vpop.permute.xlu0 %2080
        %2082 = vrot.lane.b32.xlu0 %v1648, 127
        %v2083 = vpop.permute.xlu0 %2082
        %2084 = vrot.lane.b32.xlu0 %v1652, 127
        %v2085 = vpop.permute.xlu0 %2084
        %2086 = vrot.lane.b32.xlu0 %v1658, 127
        %v2087 = vpop.permute.xlu0 %2086
        %2088 = vrot.lane.b32.xlu0 %v1662, 127
        %v2089 = vpop.permute.xlu0 %2088
        %2090 = vrot.lane.b32.xlu0 %v1739, 127
        %v2091 = vpop.permute.xlu0 %2090
        %2092 = vrot.lane.b32.xlu0 %v1743, 127
        %v2093 = vpop.permute.xlu0 %2092
        %2094 = vrot.lane.b32.xlu0 %v1749, 127
        %v2095 = vpop.permute.xlu0 %2094
        %2096 = vrot.lane.b32.xlu0 %v1753, 127
        %v2097 = vpop.permute.xlu0 %2096
        %2098 = vrot.lane.b32.xlu0 %v1741, 127
        %v2099 = vpop.permute.xlu0 %2098
        %2100 = vrot.lane.b32.xlu0 %v1745, 127
        %v2101 = vpop.permute.xlu0 %2100
        %2102 = vrot.lane.b32.xlu0 %v1751, 127
        %v2103 = vpop.permute.xlu0 %2102
        %2104 = vrot.lane.b32.xlu0 %v1755, 127
        %v2105 = vpop.permute.xlu0 %2104
        %2106 = vrot.lane.b32.xlu0 %v1832, 127
        %v2107 = vpop.permute.xlu0 %2106
        %2108 = vrot.lane.b32.xlu0 %v1836, 127
        %v2109 = vpop.permute.xlu0 %2108
        %2110 = vrot.lane.b32.xlu0 %v1842, 127
        %v2111 = vpop.permute.xlu0 %2110
        %2112 = vrot.lane.b32.xlu0 %v1846, 127
        %v2113 = vpop.permute.xlu0 %2112
        %2114 = vrot.lane.b32.xlu0 %v1834, 127
        %v2115 = vpop.permute.xlu0 %2114
        %2116 = vrot.lane.b32.xlu0 %v1838, 127
        %v2117 = vpop.permute.xlu0 %2116
        %2118 = vrot.lane.b32.xlu0 %v1844, 127
        %v2119 = vpop.permute.xlu0 %2118
        %2120 = vrot.lane.b32.xlu0 %v1848, 127
        %v2121 = vpop.permute.xlu0 %2120
        %2122 = vrot.lane.b32.xlu0 %v1925, 127
        %v2123 = vpop.permute.xlu0 %2122
        %2124 = vrot.lane.b32.xlu0 %v1929, 127
        %v2125 = vpop.permute.xlu0 %2124
        %2126 = vrot.lane.b32.xlu0 %v1935, 127
        %v2127 = vpop.permute.xlu0 %2126
        %2128 = vrot.lane.b32.xlu0 %v1939, 127
        %v2129 = vpop.permute.xlu0 %2128
        %2130 = vrot.lane.b32.xlu0 %v1927, 127
        %v2131 = vpop.permute.xlu0 %2130
        %2132 = vrot.lane.b32.xlu0 %v1931, 127
        %v2133 = vpop.permute.xlu0 %2132
        %2134 = vrot.lane.b32.xlu0 %v1937, 127
        %v2135 = vpop.permute.xlu0 %2134
        %2136 = vrot.lane.b32.xlu0 %v1941, 127
        %v2137 = vpop.permute.xlu0 %2136
        %vm2138 = vcmp.lt.s32.totalorder %v2008, 127
        %v2139 = vsel %vm2138, %v2123, %v2131
        %v2140 = vsel %vm2138, %v2125, %v2133
        %v2141 = vsel %vm2138, %v2127, %v2135
        %v2142 = vsel %vm2138, %v2129, %v2137
        %v2143 = vsel %vm2138, %v2115, %v2123
        %v2144 = vsel %vm2138, %v2117, %v2125
        %v2145 = vsel %vm2138, %v2119, %v2127
        %v2146 = vsel %vm2138, %v2121, %v2129
        %v2147 = vsel %vm2138, %v2107, %v2115
        %v2148 = vsel %vm2138, %v2109, %v2117
        %v2149 = vsel %vm2138, %v2111, %v2119
        %v2150 = vsel %vm2138, %v2113, %v2121
        %v2151 = vsel %vm2138, %v2099, %v2107
        %v2152 = vsel %vm2138, %v2101, %v2109
        %v2153 = vsel %vm2138, %v2103, %v2111
        %v2154 = vsel %vm2138, %v2105, %v2113
        %v2155 = vsel %vm2138, %v2091, %v2099
        %v2156 = vsel %vm2138, %v2093, %v2101
        %v2157 = vsel %vm2138, %v2095, %v2103
        %v2158 = vsel %vm2138, %v2097, %v2105
        %v2159 = vsel %vm2138, %v2083, %v2091
        %v2160 = vsel %vm2138, %v2085, %v2093
        %v2161 = vsel %vm2138, %v2087, %v2095
        %v2162 = vsel %vm2138, %v2089, %v2097
        %v2163 = vsel %vm2138, %v2075, %v2083
        %v2164 = vsel %vm2138, %v2077, %v2085
        %v2165 = vsel %vm2138, %v2079, %v2087
        %v2166 = vsel %vm2138, %v2081, %v2089
        %v2167 = vsel %vm2138, %v2131, %v2075
        %v2168 = vsel %vm2138, %v2133, %v2077
        %v2169 = vsel %vm2138, %v2135, %v2079
        %v2170 = vsel %vm2138, %v2137, %v2081
        %v2171 = vadd.f32 %v2042, %v2163
        %v2172 = vadd.f32 %v2043, %v2159
        %v2173 = vadd.f32 %v2044, %v2155
        %v2174 = vadd.f32 %v2045, %v2151
        %v2175 = vadd.f32 %v2046, %v2147
        %v2176 = vadd.f32 %v2047, %v2143
        %v2177 = vadd.f32 %v2048, %v2139
        %v2178 = vadd.f32 %v2049, %v2167
        %v2179 = vadd.f32 %v2050, %v2164
        %v2180 = vadd.f32 %v2051, %v2160
        %v2181 = vadd.f32 %v2052, %v2156
        %v2182 = vadd.f32 %v2053, %v2152
        %v2183 = vadd.f32 %v2054, %v2148
        %v2184 = vadd.f32 %v2055, %v2144
        %v2185 = vadd.f32 %v2056, %v2140
        %v2186 = vadd.f32 %v2057, %v2168
        %v2187 = vadd.f32 %v2058, %v2165
        %v2188 = vadd.f32 %v2059, %v2161
        %v2189 = vadd.f32 %v2060, %v2157
        %v2190 = vadd.f32 %v2061, %v2153
        %v2191 = vadd.f32 %v2062, %v2149
        %v2192 = vadd.f32 %v2063, %v2145
        %v2193 = vadd.f32 %v2064, %v2141
        %v2194 = vadd.f32 %v2065, %v2169
        %v2195 = vadd.f32 %v2066, %v2166
        %v2196 = vadd.f32 %v2067, %v2162
        %v2197 = vadd.f32 %v2068, %v2158
        %v2198 = vadd.f32 %v2069, %v2154
        %v2199 = vadd.f32 %v2070, %v2150
        %v2200 = vadd.f32 %v2071, %v2146
        %v2201 = vadd.f32 %v2072, %v2142
        %v2202 = vadd.f32 %v2073, %v2170
        %2203 = vset.pattern.permute.xlu0 1
        %2204 = vperm.xlu0 %2203, %v353
        %v2205 = vpop.permute.xlu0 %2204
        %2207 = vset.pattern.permute.xlu0 1
        %2208 = vperm.xlu0 %2207, %v354
        %v2209 = vpop.permute.xlu0 %2208
        %2211 = vset.pattern.permute.xlu0 1
        %2212 = vperm.xlu0 %2211, %v355
        %v2213 = vpop.permute.xlu0 %2212
        %2215 = vset.pattern.permute.xlu0 1
        %2216 = vperm.xlu0 %2215, %v356
        %v2217 = vpop.permute.xlu0 %2216
        %v2219 = vadd.f32 %v2171, %v2205
        %v2220 = vadd.f32 %v2172, %v2205
        %v2221 = vadd.f32 %v2173, %v2205
        %v2222 = vadd.f32 %v2174, %v2205
        %v2223 = vadd.f32 %v2175, %v2205
        %v2224 = vadd.f32 %v2176, %v2205
        %v2225 = vadd.f32 %v2177, %v2205
        %v2226 = vadd.f32 %v2178, %v2205
        %v2227 = vadd.f32 %v2179, %v2209
        %v2228 = vadd.f32 %v2180, %v2209
        %v2229 = vadd.f32 %v2181, %v2209
        %v2230 = vadd.f32 %v2182, %v2209
        %v2231 = vadd.f32 %v2183, %v2209
        %v2232 = vadd.f32 %v2184, %v2209
        %v2233 = vadd.f32 %v2185, %v2209
        %v2234 = vadd.f32 %v2186, %v2209
        %v2235 = vadd.f32 %v2187, %v2213
        %v2236 = vadd.f32 %v2188, %v2213
        %v2237 = vadd.f32 %v2189, %v2213
        %v2238 = vadd.f32 %v2190, %v2213
        %v2239 = vadd.f32 %v2191, %v2213
        %v2240 = vadd.f32 %v2192, %v2213
        %v2241 = vadd.f32 %v2193, %v2213
        %v2242 = vadd.f32 %v2194, %v2213
        %v2243 = vadd.f32 %v2195, %v2217
        %v2244 = vadd.f32 %v2196, %v2217
        %v2245 = vadd.f32 %v2197, %v2217
        %v2246 = vadd.f32 %v2198, %v2217
        %v2247 = vadd.f32 %v2199, %v2217
        %v2248 = vadd.f32 %v2200, %v2217
        %v2249 = vadd.f32 %v2201, %v2217
        %v2250 = vadd.f32 %v2202, %v2217
        %v2251 = vadd.f32 %v2219, %v2227
        %v2252 = vadd.f32 %v2251, %v2235
        %v2253 = vadd.f32 %v2252, %v2243
        %v2254 = vrot.slane %v2253, 4
        %v2255 = vadd.f32 %v2253, %v2254
        %v2256 = vrot.slane %v2255, 2
        %v2257 = vadd.f32 %v2255, %v2256
        %v2258 = vrot.slane %v2257, 1
        %v2259 = vadd.f32 %v2257, %v2258
        %v2260 = vadd.f32 %v2220, %v2228
        %v2261 = vadd.f32 %v2260, %v2236
        %v2262 = vadd.f32 %v2261, %v2244
        %v2263 = vrot.slane %v2262, 4
        %v2264 = vadd.f32 %v2262, %v2263
        %v2265 = vrot.slane %v2264, 2
        %v2266 = vadd.f32 %v2264, %v2265
        %v2267 = vrot.slane %v2266, 1
        %v2268 = vadd.f32 %v2266, %v2267
        %v2269 = vadd.f32 %v2221, %v2229
        %v2270 = vadd.f32 %v2269, %v2237
        %v2271 = vadd.f32 %v2270, %v2245
        %v2272 = vrot.slane %v2271, 4
        %v2273 = vadd.f32 %v2271, %v2272
        %v2274 = vrot.slane %v2273, 2
        %v2275 = vadd.f32 %v2273, %v2274
        %v2276 = vrot.slane %v2275, 1
        %v2277 = vadd.f32 %v2275, %v2276
        %v2278 = vadd.f32 %v2222, %v2230
        %v2279 = vadd.f32 %v2278, %v2238
        %v2280 = vadd.f32 %v2279, %v2246
        %v2281 = vrot.slane %v2280, 4
        %v2282 = vadd.f32 %v2280, %v2281
        %v2283 = vrot.slane %v2282, 2
        %v2284 = vadd.f32 %v2282, %v2283
        %v2285 = vrot.slane %v2284, 1
        %v2286 = vadd.f32 %v2284, %v2285
        %v2287 = vadd.f32 %v2223, %v2231
        %v2288 = vadd.f32 %v2287, %v2239
        %v2289 = vadd.f32 %v2288, %v2247
        %v2290 = vrot.slane %v2289, 4
        %v2291 = vadd.f32 %v2289, %v2290
        %v2292 = vrot.slane %v2291, 2
        %v2293 = vadd.f32 %v2291, %v2292
        %v2294 = vrot.slane %v2293, 1
        %v2295 = vadd.f32 %v2293, %v2294
        %v2296 = vadd.f32 %v2224, %v2232
        %v2297 = vadd.f32 %v2296, %v2240
        %v2298 = vadd.f32 %v2297, %v2248
        %v2299 = vrot.slane %v2298, 4
        %v2300 = vadd.f32 %v2298, %v2299
        %v2301 = vrot.slane %v2300, 2
        %v2302 = vadd.f32 %v2300, %v2301
        %v2303 = vrot.slane %v2302, 1
        %v2304 = vadd.f32 %v2302, %v2303
        %v2305 = vadd.f32 %v2225, %v2233
        %v2306 = vadd.f32 %v2305, %v2241
        %v2307 = vadd.f32 %v2306, %v2249
        %v2308 = vrot.slane %v2307, 4
        %v2309 = vadd.f32 %v2307, %v2308
        %v2310 = vrot.slane %v2309, 2
        %v2311 = vadd.f32 %v2309, %v2310
        %v2312 = vrot.slane %v2311, 1
        %v2313 = vadd.f32 %v2311, %v2312
        %v2314 = vadd.f32 %v2226, %v2234
        %v2315 = vadd.f32 %v2314, %v2242
        %v2316 = vadd.f32 %v2315, %v2250
        %v2317 = vrot.slane %v2316, 4
        %v2318 = vadd.f32 %v2316, %v2317
        %v2319 = vrot.slane %v2318, 2
        %v2320 = vadd.f32 %v2318, %v2319
        %v2321 = vrot.slane %v2320, 1
        %v2322 = vadd.f32 %v2320, %v2321
        %v2323 = vmul.f32 %v2259, %v433
        %v2324 = vmul.f32 %v2268, %v433
        %v2325 = vmul.f32 %v2277, %v433
        %v2326 = vmul.f32 %v2286, %v433
        %v2327 = vmul.f32 %v2295, %v433
        %v2328 = vmul.f32 %v2304, %v433
        %v2329 = vmul.f32 %v2313, %v433
        %v2330 = vmul.f32 %v2322, %v433
        %v2331 = vmul.f32 %v2219, %v2219
        %v2332 = vmul.f32 %v2220, %v2220
        %v2333 = vmul.f32 %v2221, %v2221
        %v2334 = vmul.f32 %v2222, %v2222
        %v2335 = vmul.f32 %v2223, %v2223
        %v2336 = vmul.f32 %v2224, %v2224
        %v2337 = vmul.f32 %v2225, %v2225
        %v2338 = vmul.f32 %v2226, %v2226
        %v2339 = vmul.f32 %v2227, %v2227
        %v2340 = vmul.f32 %v2228, %v2228
        %v2341 = vmul.f32 %v2229, %v2229
        %v2342 = vmul.f32 %v2230, %v2230
        %v2343 = vmul.f32 %v2231, %v2231
        %v2344 = vmul.f32 %v2232, %v2232
        %v2345 = vmul.f32 %v2233, %v2233
        %v2346 = vmul.f32 %v2234, %v2234
        %v2347 = vmul.f32 %v2235, %v2235
        %v2348 = vmul.f32 %v2236, %v2236
        %v2349 = vmul.f32 %v2237, %v2237
        %v2350 = vmul.f32 %v2238, %v2238
        %v2351 = vmul.f32 %v2239, %v2239
        %v2352 = vmul.f32 %v2240, %v2240
        %v2353 = vmul.f32 %v2241, %v2241
        %v2354 = vmul.f32 %v2242, %v2242
        %v2355 = vmul.f32 %v2243, %v2243
        %v2356 = vmul.f32 %v2244, %v2244
        %v2357 = vmul.f32 %v2245, %v2245
        %v2358 = vmul.f32 %v2246, %v2246
        %v2359 = vmul.f32 %v2247, %v2247
        %v2360 = vmul.f32 %v2248, %v2248
        %v2361 = vmul.f32 %v2249, %v2249
        %v2362 = vmul.f32 %v2250, %v2250
        %v2363 = vadd.f32 %v2331, %v2339
        %v2364 = vadd.f32 %v2363, %v2347
        %v2365 = vadd.f32 %v2364, %v2355
        %v2366 = vrot.slane %v2365, 4
        %v2367 = vadd.f32 %v2365, %v2366
        %v2368 = vrot.slane %v2367, 2
        %v2369 = vadd.f32 %v2367, %v2368
        %v2370 = vrot.slane %v2369, 1
        %v2371 = vadd.f32 %v2369, %v2370
        %v2372 = vadd.f32 %v2332, %v2340
        %v2373 = vadd.f32 %v2372, %v2348
        %v2374 = vadd.f32 %v2373, %v2356
        %v2375 = vrot.slane %v2374, 4
        %v2376 = vadd.f32 %v2374, %v2375
        %v2377 = vrot.slane %v2376, 2
        %v2378 = vadd.f32 %v2376, %v2377
        %v2379 = vrot.slane %v2378, 1
        %v2380 = vadd.f32 %v2378, %v2379
        %v2381 = vadd.f32 %v2333, %v2341
        %v2382 = vadd.f32 %v2381, %v2349
        %v2383 = vadd.f32 %v2382, %v2357
        %v2384 = vrot.slane %v2383, 4
        %v2385 = vadd.f32 %v2383, %v2384
        %v2386 = vrot.slane %v2385, 2
        %v2387 = vadd.f32 %v2385, %v2386
        %v2388 = vrot.slane %v2387, 1
        %v2389 = vadd.f32 %v2387, %v2388
        %v2390 = vadd.f32 %v2334, %v2342
        %v2391 = vadd.f32 %v2390, %v2350
        %v2392 = vadd.f32 %v2391, %v2358
        %v2393 = vrot.slane %v2392, 4
        %v2394 = vadd.f32 %v2392, %v2393
        %v2395 = vrot.slane %v2394, 2
        %v2396 = vadd.f32 %v2394, %v2395
        %v2397 = vrot.slane %v2396, 1
        %v2398 = vadd.f32 %v2396, %v2397
        %v2399 = vadd.f32 %v2335, %v2343
        %v2400 = vadd.f32 %v2399, %v2351
        %v2401 = vadd.f32 %v2400, %v2359
        %v2402 = vrot.slane %v2401, 4
        %v2403 = vadd.f32 %v2401, %v2402
        %v2404 = vrot.slane %v2403, 2
        %v2405 = vadd.f32 %v2403, %v2404
        %v2406 = vrot.slane %v2405, 1
        %v2407 = vadd.f32 %v2405, %v2406
        %v2408 = vadd.f32 %v2336, %v2344
        %v2409 = vadd.f32 %v2408, %v2352
        %v2410 = vadd.f32 %v2409, %v2360
        %v2411 = vrot.slane %v2410, 4
        %v2412 = vadd.f32 %v2410, %v2411
        %v2413 = vrot.slane %v2412, 2
        %v2414 = vadd.f32 %v2412, %v2413
        %v2415 = vrot.slane %v2414, 1
        %v2416 = vadd.f32 %v2414, %v2415
        %v2417 = vadd.f32 %v2337, %v2345
        %v2418 = vadd.f32 %v2417, %v2353
        %v2419 = vadd.f32 %v2418, %v2361
        %v2420 = vrot.slane %v2419, 4
        %v2421 = vadd.f32 %v2419, %v2420
        %v2422 = vrot.slane %v2421, 2
        %v2423 = vadd.f32 %v2421, %v2422
        %v2424 = vrot.slane %v2423, 1
        %v2425 = vadd.f32 %v2423, %v2424
        %v2426 = vadd.f32 %v2338, %v2346
        %v2427 = vadd.f32 %v2426, %v2354
        %v2428 = vadd.f32 %v2427, %v2362
        %v2429 = vrot.slane %v2428, 4
        %v2430 = vadd.f32 %v2428, %v2429
        %v2431 = vrot.slane %v2430, 2
        %v2432 = vadd.f32 %v2430, %v2431
        %v2433 = vrot.slane %v2432, 1
        %v2434 = vadd.f32 %v2432, %v2433
        %v2435 = vmul.f32 %v2371, %v433
        %v2436 = vmul.f32 %v2380, %v433
        %v2437 = vmul.f32 %v2389, %v433
        %v2438 = vmul.f32 %v2398, %v433
        %v2439 = vmul.f32 %v2407, %v433
        %v2440 = vmul.f32 %v2416, %v433
        %v2441 = vmul.f32 %v2425, %v433
        %v2442 = vmul.f32 %v2434, %v433
        %v2443 = vmul.f32 %v2323, %v2323
        %v2444 = vmul.f32 %v2324, %v2324
        %v2445 = vmul.f32 %v2325, %v2325
        %v2446 = vmul.f32 %v2326, %v2326
        %v2447 = vmul.f32 %v2327, %v2327
        %v2448 = vmul.f32 %v2328, %v2328
        %v2449 = vmul.f32 %v2329, %v2329
        %v2450 = vmul.f32 %v2330, %v2330
        %v2451 = vsub.f32 %v2435, %v2443
        %v2452 = vsub.f32 %v2436, %v2444
        %v2453 = vsub.f32 %v2437, %v2445
        %v2454 = vsub.f32 %v2438, %v2446
        %v2455 = vsub.f32 %v2439, %v2447
        %v2456 = vsub.f32 %v2440, %v2448
        %v2457 = vsub.f32 %v2441, %v2449
        %v2458 = vsub.f32 %v2442, %v2450
        %v2459 = vmax.f32 %v2451, 0.0
        %v2460 = vmax.f32 %v2452, 0.0
        %v2461 = vmax.f32 %v2453, 0.0
        %v2462 = vmax.f32 %v2454, 0.0
        %v2463 = vmax.f32 %v2455, 0.0
        %v2464 = vmax.f32 %v2456, 0.0
        %v2465 = vmax.f32 %v2457, 0.0
        %v2466 = vmax.f32 %v2458, 0.0
        %v2467 = vadd.f32 %v2459, 1e-05
        %v2468 = vadd.f32 %v2460, 1e-05
        %v2469 = vadd.f32 %v2461, 1e-05
        %v2470 = vadd.f32 %v2462, 1e-05
        %v2471 = vadd.f32 %v2463, 1e-05
        %v2472 = vadd.f32 %v2464, 1e-05
        %v2473 = vadd.f32 %v2465, 1e-05
        %v2474 = vadd.f32 %v2466, 1e-05
        %v2475 = vrsqrt.pop %v2467
        %v2476 = vrsqrt.pop %v2468
        %v2477 = vrsqrt.pop %v2469
        %v2478 = vrsqrt.pop %v2470
        %v2479 = vrsqrt.pop %v2471
        %v2480 = vrsqrt.pop %v2472
        %v2481 = vrsqrt.pop %v2473
        %v2482 = vrsqrt.pop %v2474
        %v2483 = vmul.f32 %v313, %v2475
        %v2484 = vmul.f32 %v314, %v2476
        %v2485 = vmul.f32 %v315, %v2477
        %v2486 = vmul.f32 %v316, %v2478
        %v2487 = vmul.f32 %v317, %v2479
        %v2488 = vmul.f32 %v318, %v2480
        %v2489 = vmul.f32 %v319, %v2481
        %v2490 = vmul.f32 %v320, %v2482
        %v2491 = vmul.f32 %v2323, %v2483
        %v2492 = vmul.f32 %v2324, %v2484
        %v2493 = vmul.f32 %v2325, %v2485
        %v2494 = vmul.f32 %v2326, %v2486
        %v2495 = vmul.f32 %v2327, %v2487
        %v2496 = vmul.f32 %v2328, %v2488
        %v2497 = vmul.f32 %v2329, %v2489
        %v2498 = vmul.f32 %v2330, %v2490
        %v2507 = vrot.slane %v2491, 7
        %v2508 = vrot.slane %v2492, 7
        %v2509 = vrot.slane %v2493, 7
        %v2510 = vrot.slane %v2494, 7
        %v2511 = vrot.slane %v2495, 7
        %v2512 = vrot.slane %v2496, 7
        %v2513 = vrot.slane %v2497, 7
        %v2514 = vrot.slane %v2498, 7
        %v2523 = vsub.f32 %v313, %v2507
        %v2524 = vsub.f32 %v314, %v2508
        %v2525 = vsub.f32 %v315, %v2509
        %v2526 = vsub.f32 %v316, %v2510
        %v2527 = vsub.f32 %v317, %v2511
        %v2528 = vsub.f32 %v318, %v2512
        %v2529 = vsub.f32 %v319, %v2513
        %v2530 = vsub.f32 %v320, %v2514
        %v2531 = vlaneseq
        %v2532 = vshrl.u32 %v2531, 7
        %v2533 = vsub.s32 4, %v2532
        %v2534 = vrot.slane %v2483, %v2533
        %v2535 = vlaneseq
        %v2536 = vshrl.u32 %v2535, 7
        %v2537 = vsub.s32 4, %v2536
        %v2538 = vrot.slane %v2484, %v2537
        %v2539 = vlaneseq
        %v2540 = vshrl.u32 %v2539, 7
        %v2541 = vsub.s32 4, %v2540
        %v2542 = vrot.slane %v2485, %v2541
        %v2543 = vlaneseq
        %v2544 = vshrl.u32 %v2543, 7
        %v2545 = vsub.s32 4, %v2544
        %v2546 = vrot.slane %v2486, %v2545
        %v2547 = vlaneseq
        %v2548 = vshrl.u32 %v2547, 7
        %v2549 = vsub.s32 4, %v2548
        %v2550 = vrot.slane %v2487, %v2549
        %v2551 = vlaneseq
        %v2552 = vshrl.u32 %v2551, 7
        %v2553 = vsub.s32 4, %v2552
        %v2554 = vrot.slane %v2488, %v2553
        %v2555 = vlaneseq
        %v2556 = vshrl.u32 %v2555, 7
        %v2557 = vsub.s32 4, %v2556
        %v2558 = vrot.slane %v2489, %v2557
        %v2559 = vlaneseq
        %v2560 = vshrl.u32 %v2559, 7
        %v2561 = vsub.s32 4, %v2560
        %v2562 = vrot.slane %v2490, %v2561
        %v2563 = vmul.f32 %v2219, %v2534
        %v2564 = vmul.f32 %v2220, %v2538
        %v2565 = vmul.f32 %v2221, %v2542
        %v2566 = vmul.f32 %v2222, %v2546
        %v2567 = vmul.f32 %v2223, %v2550
        %v2568 = vmul.f32 %v2224, %v2554
        %v2569 = vmul.f32 %v2225, %v2558
        %v2570 = vmul.f32 %v2226, %v2562
        %v2571 = vmul.f32 %v2227, %v2534
        %v2572 = vmul.f32 %v2228, %v2538
        %v2573 = vmul.f32 %v2229, %v2542
        %v2574 = vmul.f32 %v2230, %v2546
        %v2575 = vmul.f32 %v2231, %v2550
        %v2576 = vmul.f32 %v2232, %v2554
        %v2577 = vmul.f32 %v2233, %v2558
        %v2578 = vmul.f32 %v2234, %v2562
        %v2579 = vmul.f32 %v2235, %v2534
        %v2580 = vmul.f32 %v2236, %v2538
        %v2581 = vmul.f32 %v2237, %v2542
        %v2582 = vmul.f32 %v2238, %v2546
        %v2583 = vmul.f32 %v2239, %v2550
        %v2584 = vmul.f32 %v2240, %v2554
        %v2585 = vmul.f32 %v2241, %v2558
        %v2586 = vmul.f32 %v2242, %v2562
        %v2587 = vmul.f32 %v2243, %v2534
        %v2588 = vmul.f32 %v2244, %v2538
        %v2589 = vmul.f32 %v2245, %v2542
        %v2590 = vmul.f32 %v2246, %v2546
        %v2591 = vmul.f32 %v2247, %v2550
        %v2592 = vmul.f32 %v2248, %v2554
        %v2593 = vmul.f32 %v2249, %v2558
        %v2594 = vmul.f32 %v2250, %v2562
        %v2595 = vlaneseq
        %v2596 = vshrl.u32 %v2595, 7
        %v2597 = vsub.s32 5, %v2596
        %v2598 = vrot.slane %v2523, %v2597
        %v2599 = vlaneseq
        %v2600 = vshrl.u32 %v2599, 7
        %v2601 = vsub.s32 5, %v2600
        %v2602 = vrot.slane %v2524, %v2601
        %v2603 = vlaneseq
        %v2604 = vshrl.u32 %v2603, 7
        %v2605 = vsub.s32 5, %v2604
        %v2606 = vrot.slane %v2525, %v2605
        %v2607 = vlaneseq
        %v2608 = vshrl.u32 %v2607, 7
        %v2609 = vsub.s32 5, %v2608
        %v2610 = vrot.slane %v2526, %v2609
        %v2611 = vlaneseq
        %v2612 = vshrl.u32 %v2611, 7
        %v2613 = vsub.s32 5, %v2612
        %v2614 = vrot.slane %v2527, %v2613
        %v2615 = vlaneseq
        %v2616 = vshrl.u32 %v2615, 7
        %v2617 = vsub.s32 5, %v2616
        %v2618 = vrot.slane %v2528, %v2617
        %v2619 = vlaneseq
        %v2620 = vshrl.u32 %v2619, 7
        %v2621 = vsub.s32 5, %v2620
        %v2622 = vrot.slane %v2529, %v2621
        %v2623 = vlaneseq
        %v2624 = vshrl.u32 %v2623, 7
        %v2625 = vsub.s32 5, %v2624
        %v2626 = vrot.slane %v2530, %v2625
        %v2627 = vadd.f32 %v2563, %v2598
        %v2628 = vadd.f32 %v2564, %v2602
        %v2629 = vadd.f32 %v2565, %v2606
        %v2630 = vadd.f32 %v2566, %v2610
        %v2631 = vadd.f32 %v2567, %v2614
        %v2632 = vadd.f32 %v2568, %v2618
        %v2633 = vadd.f32 %v2569, %v2622
        %v2634 = vadd.f32 %v2570, %v2626
        %v2635 = vadd.f32 %v2571, %v2598
        %v2636 = vadd.f32 %v2572, %v2602
        %v2637 = vadd.f32 %v2573, %v2606
        %v2638 = vadd.f32 %v2574, %v2610
        %v2639 = vadd.f32 %v2575, %v2614
        %v2640 = vadd.f32 %v2576, %v2618
        %v2641 = vadd.f32 %v2577, %v2622
        %v2642 = vadd.f32 %v2578, %v2626
        %v2643 = vadd.f32 %v2579, %v2598
        %v2644 = vadd.f32 %v2580, %v2602
        %v2645 = vadd.f32 %v2581, %v2606
        %v2646 = vadd.f32 %v2582, %v2610
        %v2647 = vadd.f32 %v2583, %v2614
        %v2648 = vadd.f32 %v2584, %v2618
        %v2649 = vadd.f32 %v2585, %v2622
        %v2650 = vadd.f32 %v2586, %v2626
        %v2651 = vadd.f32 %v2587, %v2598
        %v2652 = vadd.f32 %v2588, %v2602
        %v2653 = vadd.f32 %v2589, %v2606
        %v2654 = vadd.f32 %v2590, %v2610
        %v2655 = vadd.f32 %v2591, %v2614
        %v2656 = vadd.f32 %v2592, %v2618
        %v2657 = vadd.f32 %v2593, %v2622
        %v2658 = vadd.f32 %v2594, %v2626
        %v2659 = vmax.f32 %v2627, 0.0
        %v2660 = vmax.f32 %v2628, 0.0
        %v2661 = vmax.f32 %v2629, 0.0
        %v2662 = vmax.f32 %v2630, 0.0
        %v2663 = vmax.f32 %v2631, 0.0
        %v2664 = vmax.f32 %v2632, 0.0
        %v2665 = vmax.f32 %v2633, 0.0
        %v2666 = vmax.f32 %v2634, 0.0
        %v2667 = vmax.f32 %v2635, 0.0
        %v2668 = vmax.f32 %v2636, 0.0
        %v2669 = vmax.f32 %v2637, 0.0
        %v2670 = vmax.f32 %v2638, 0.0
        %v2671 = vmax.f32 %v2639, 0.0
        %v2672 = vmax.f32 %v2640, 0.0
        %v2673 = vmax.f32 %v2641, 0.0
        %v2674 = vmax.f32 %v2642, 0.0
        %v2675 = vmax.f32 %v2643, 0.0
        %v2676 = vmax.f32 %v2644, 0.0
        %v2677 = vmax.f32 %v2645, 0.0
        %v2678 = vmax.f32 %v2646, 0.0
        %v2679 = vmax.f32 %v2647, 0.0
        %v2680 = vmax.f32 %v2648, 0.0
        %v2681 = vmax.f32 %v2649, 0.0
        %v2682 = vmax.f32 %v2650, 0.0
        %v2683 = vmax.f32 %v2651, 0.0
        %v2684 = vmax.f32 %v2652, 0.0
        %v2685 = vmax.f32 %v2653, 0.0
        %v2686 = vmax.f32 %v2654, 0.0
        %v2687 = vmax.f32 %v2655, 0.0
        %v2688 = vmax.f32 %v2656, 0.0
        %v2689 = vmax.f32 %v2657, 0.0
        %v2690 = vmax.f32 %v2658, 0.0
        %v2691 = vpack.c.bf16 %v2667, %v2659
        %v2692 = vpack.c.bf16 %v2668, %v2660
        %v2693 = vpack.c.bf16 %v2669, %v2661
        %v2694 = vpack.c.bf16 %v2670, %v2662
        %v2695 = vpack.c.bf16 %v2671, %v2663
        %v2696 = vpack.c.bf16 %v2672, %v2664
        %v2697 = vpack.c.bf16 %v2673, %v2665
        %v2698 = vpack.c.bf16 %v2674, %v2666
        %v2699 = vpack.c.bf16 %v2683, %v2675
        %v2700 = vpack.c.bf16 %v2684, %v2676
        %v2701 = vpack.c.bf16 %v2685, %v2677
        %v2702 = vpack.c.bf16 %v2686, %v2678
        %v2703 = vpack.c.bf16 %v2687, %v2679
        %v2704 = vpack.c.bf16 %v2688, %v2680
        %v2705 = vpack.c.bf16 %v2689, %v2681
        %v2706 = vpack.c.bf16 %v2690, %v2682
        %v2707 = vpack.c.bf16 %v289, %v281
        %v2708 = vpack.c.bf16 %v290, %v282
        %v2709 = vpack.c.bf16 %v291, %v283
        %v2710 = vpack.c.bf16 %v292, %v284
        %v2711 = vpack.c.bf16 %v293, %v285
        %v2712 = vpack.c.bf16 %v294, %v286
        %v2713 = vpack.c.bf16 %v295, %v287
        %v2714 = vpack.c.bf16 %v296, %v288
        %v2715 = vpack.c.bf16 %v305, %v297
        %v2716 = vpack.c.bf16 %v306, %v298
        %v2717 = vpack.c.bf16 %v307, %v299
        %v2718 = vpack.c.bf16 %v308, %v300
        %v2719 = vpack.c.bf16 %v309, %v301
        %v2720 = vpack.c.bf16 %v310, %v302
        %v2721 = vpack.c.bf16 %v311, %v303
        %v2722 = vpack.c.bf16 %v312, %v304
        %v2731 = vunpack.c.l.b16 %v345
        %v2732 = vunpack.c.l.b16 %v346
        %v2733 = vunpack.c.l.b16 %v347
        %v2734 = vunpack.c.l.b16 %v348
        %v2735 = vunpack.c.l.b16 %v349
        %v2736 = vunpack.c.l.b16 %v350
        %v2737 = vunpack.c.l.b16 %v351
        %v2738 = vunpack.c.l.b16 %v352
        %v2739 = vpack.c.b16 %v2732, %v2731
        %v2740 = vpack.c.b16 %v2734, %v2733
        %v2741 = vpack.c.b16 %v2736, %v2735
        %v2742 = vpack.c.b16 %v2738, %v2737
        %v2744 = vsel %vm848, %v2739, 0
        %v2747 = vsel %vm848, %v2740, 0
        %v2750 = vsel %vm848, %v2741, 0
        %v2753 = vsel %vm848, %v2742, 0
        %2755 = vmatprep.subr.bf16.mxu0 %v2708
        %2756 = vmatpush1.bf16.msra.mxu0 %v2707
        %2757 = vmatprep.subr.bf16.mxu0 %v2716
        %2758 = vmatpush1.bf16.msra.mxu0 %v2715
        %2759 = vmatprep.subr.bf16.mxu0 0
        %2760 = vmatpush1.bf16.msra.mxu0 0
        %2761 = vmatprep.subr.bf16.mxu0 0
        %2762 = vmatpush1.bf16.msra.mxu0 0
        %2763 = vmatprep.subr.bf16.mxu0 0
        %2764 = vmatpush1.bf16.msra.mxu0 0
        %2765 = vmatprep.subr.bf16.mxu0 0
        %2766 = vmatpush1.bf16.msra.mxu0 0
        %2767 = vmatprep.subr.bf16.mxu0 0
        %2768 = vmatpush1.bf16.msra.mxu0 0
        %2769 = vmatprep.subr.bf16.mxu0 0
        %2770 = vmatpush1.bf16.msra.mxu0 0
        %2771 = vmatprep.subr.bf16.mxu0 0
        %2772 = vmatpush1.bf16.msra.mxu0 0
        %2773 = vmatprep.subr.bf16.mxu0 0
        %2774 = vmatpush1.bf16.msra.mxu0 0
        %2775 = vmatprep.subr.bf16.mxu0 0
        %2776 = vmatpush1.bf16.msra.mxu0 0
        %2777 = vmatprep.subr.bf16.mxu0 0
        %2778 = vmatpush1.bf16.msra.mxu0 0
        %2779 = vmatprep.subr.bf16.mxu0 0
        %2780 = vmatpush1.bf16.msra.mxu0 0
        %2781 = vmatprep.subr.bf16.mxu0 0
        %2782 = vmatpush1.bf16.msra.mxu0 0
        %2783 = vmatprep.subr.bf16.mxu0 0
        %2784 = vmatpush1.bf16.msra.mxu0 0
        %2785 = vmatprep.subr.bf16.mxu0 0
        %2786 = vmatpush1.bf16.msra.mxu0 0
        %2787 = vmatprep.mubr.bf16.mxu0 0
        %2788 = vmatmul.mubr.bf16.gmra.mrb[0].mxu0 %v2744
        %v2789 = vpop.f32.mrb[0].mxu0
        %v2790 = vadd.f32 0.0, %v2789
        %v2791 = vpop.f32.mrb[0].mxu0
        %v2792 = vadd.f32 0.0, %v2791
        %v2793 = vpop.f32.mrb[0].mxu0
        %v2794 = vadd.f32 0.0, %v2793
        %v2795 = vpop.f32.mrb[0].mxu0
        %v2796 = vadd.f32 0.0, %v2795
        %2797 = vmatprep.mubr.bf16.mxu0 0
        %2798 = vmatmul.mubr.bf16.gmra.mrb[0].mxu0 %v2747
        %v2799 = vpop.f32.mrb[0].mxu0
        %v2800 = vadd.f32 0.0, %v2799
        %v2801 = vpop.f32.mrb[0].mxu0
        %v2802 = vadd.f32 0.0, %v2801
        %v2803 = vpop.f32.mrb[0].mxu0
        %v2804 = vadd.f32 0.0, %v2803
        %v2805 = vpop.f32.mrb[0].mxu0
        %v2806 = vadd.f32 0.0, %v2805
        %2807 = vmatprep.mubr.bf16.mxu0 0
        %2808 = vmatmul.mubr.bf16.gmra.mrb[0].mxu0 %v2750
        %v2809 = vpop.f32.mrb[0].mxu0
        %v2810 = vadd.f32 0.0, %v2809
        %v2811 = vpop.f32.mrb[0].mxu0
        %v2812 = vadd.f32 0.0, %v2811
        %v2813 = vpop.f32.mrb[0].mxu0
        %v2814 = vadd.f32 0.0, %v2813
        %v2815 = vpop.f32.mrb[0].mxu0
        %v2816 = vadd.f32 0.0, %v2815
        %2817 = vmatprep.mubr.bf16.mxu0 0
        %2818 = vmatmul.mubr.bf16.gmra.mrb[0].mxu0 %v2753
        %v2819 = vpop.f32.mrb[0].mxu0
        %v2820 = vadd.f32 0.0, %v2819
        %v2821 = vpop.f32.mrb[0].mxu0
        %v2822 = vadd.f32 0.0, %v2821
        %v2823 = vpop.f32.mrb[0].mxu0
        %v2824 = vadd.f32 0.0, %v2823
        %v2825 = vpop.f32.mrb[0].mxu0
        %v2826 = vadd.f32 0.0, %v2825
        %2827 = vdwg.mxu0
        %2828 = vmatprep.subr.bf16.mxu0 %v2710
        %2829 = vmatpush1.bf16.msra.mxu0 %v2709
        %2830 = vmatprep.subr.bf16.mxu0 %v2718
        %2831 = vmatpush1.bf16.msra.mxu0 %v2717
        %2832 = vmatprep.subr.bf16.mxu0 0
        %2833 = vmatpush1.bf16.msra.mxu0 0
        %2834 = vmatprep.subr.bf16.mxu0 0
        %2835 = vmatpush1.bf16.msra.mxu0 0
        %2836 = vmatprep.subr.bf16.mxu0 0
        %2837 = vmatpush1.bf16.msra.mxu0 0
        %2838 = vmatprep.subr.bf16.mxu0 0
        %2839 = vmatpush1.bf16.msra.mxu0 0
        %2840 = vmatprep.subr.bf16.mxu0 0
        %2841 = vmatpush1.bf16.msra.mxu0 0
        %2842 = vmatprep.subr.bf16.mxu0 0
        %2843 = vmatpush1.bf16.msra.mxu0 0
        %2844 = vmatprep.subr.bf16.mxu0 0
        %2845 = vmatpush1.bf16.msra.mxu0 0
        %2846 = vmatprep.subr.bf16.mxu0 0
        %2847 = vmatpush1.bf16.msra.mxu0 0
        %2848 = vmatprep.subr.bf16.mxu0 0
        %2849 = vmatpush1.bf16.msra.mxu0 0
        %2850 = vmatprep.subr.bf16.mxu0 0
        %2851 = vmatpush1.bf16.msra.mxu0 0
        %2852 = vmatprep.subr.bf16.mxu0 0
        %2853 = vmatpush1.bf16.msra.mxu0 0
        %2854 = vmatprep.subr.bf16.mxu0 0
        %2855 = vmatpush1.bf16.msra.mxu0 0
        %2856 = vmatprep.subr.bf16.mxu0 0
        %2857 = vmatpush1.bf16.msra.mxu0 0
        %2858 = vmatprep.subr.bf16.mxu0 0
        %2859 = vmatpush1.bf16.msra.mxu0 0
        %2860 = vmatprep.mubr.bf16.mxu0 0
        %2861 = vmatmul.mubr.bf16.gmra.mrb[0].mxu0 %v2744
        %v2862 = vpop.f32.mrb[0].mxu0
        %v2863 = vadd.f32 0.0, %v2862
        %v2864 = vpop.f32.mrb[0].mxu0
        %v2865 = vadd.f32 0.0, %v2864
        %v2866 = vpop.f32.mrb[0].mxu0
        %v2867 = vadd.f32 0.0, %v2866
        %v2868 = vpop.f32.mrb[0].mxu0
        %v2869 = vadd.f32 0.0, %v2868
        %2870 = vmatprep.mubr.bf16.mxu0 0
        %2871 = vmatmul.mubr.bf16.gmra.mrb[0].mxu0 %v2747
        %v2872 = vpop.f32.mrb[0].mxu0
        %v2873 = vadd.f32 0.0, %v2872
        %v2874 = vpop.f32.mrb[0].mxu0
        %v2875 = vadd.f32 0.0, %v2874
        %v2876 = vpop.f32.mrb[0].mxu0
        %v2877 = vadd.f32 0.0, %v2876
        %v2878 = vpop.f32.mrb[0].mxu0
        %v2879 = vadd.f32 0.0, %v2878
        %2880 = vmatprep.mubr.bf16.mxu0 0
        %2881 = vmatmul.mubr.bf16.gmra.mrb[0].mxu0 %v2750
        %v2882 = vpop.f32.mrb[0].mxu0
        %v2883 = vadd.f32 0.0, %v2882
        %v2884 = vpop.f32.mrb[0].mxu0
        %v2885 = vadd.f32 0.0, %v2884
        %v2886 = vpop.f32.mrb[0].mxu0
        %v2887 = vadd.f32 0.0, %v2886
        %v2888 = vpop.f32.mrb[0].mxu0
        %v2889 = vadd.f32 0.0, %v2888
        %2890 = vmatprep.mubr.bf16.mxu0 0
        %2891 = vmatmul.mubr.bf16.gmra.mrb[0].mxu0 %v2753
        %v2892 = vpop.f32.mrb[0].mxu0
        %v2893 = vadd.f32 0.0, %v2892
        %v2894 = vpop.f32.mrb[0].mxu0
        %v2895 = vadd.f32 0.0, %v2894
        %v2896 = vpop.f32.mrb[0].mxu0
        %v2897 = vadd.f32 0.0, %v2896
        %v2898 = vpop.f32.mrb[0].mxu0
        %v2899 = vadd.f32 0.0, %v2898
        %2900 = vdwg.mxu0
        %2901 = vmatprep.subr.bf16.mxu0 %v2712
        %2902 = vmatpush1.bf16.msra.mxu0 %v2711
        %2903 = vmatprep.subr.bf16.mxu0 %v2720
        %2904 = vmatpush1.bf16.msra.mxu0 %v2719
        %2905 = vmatprep.subr.bf16.mxu0 0
        %2906 = vmatpush1.bf16.msra.mxu0 0
        %2907 = vmatprep.subr.bf16.mxu0 0
        %2908 = vmatpush1.bf16.msra.mxu0 0
        %2909 = vmatprep.subr.bf16.mxu0 0
        %2910 = vmatpush1.bf16.msra.mxu0 0
        %2911 = vmatprep.subr.bf16.mxu0 0
        %2912 = vmatpush1.bf16.msra.mxu0 0
        %2913 = vmatprep.subr.bf16.mxu0 0
        %2914 = vmatpush1.bf16.msra.mxu0 0
        %2915 = vmatprep.subr.bf16.mxu0 0
        %2916 = vmatpush1.bf16.msra.mxu0 0
        %2917 = vmatprep.subr.bf16.mxu0 0
        %2918 = vmatpush1.bf16.msra.mxu0 0
        %2919 = vmatprep.subr.bf16.mxu0 0
        %2920 = vmatpush1.bf16.msra.mxu0 0
        %2921 = vmatprep.subr.bf16.mxu0 0
        %2922 = vmatpush1.bf16.msra.mxu0 0
        %2923 = vmatprep.subr.bf16.mxu0 0
        %2924 = vmatpush1.bf16.msra.mxu0 0
        %2925 = vmatprep.subr.bf16.mxu0 0
        %2926 = vmatpush1.bf16.msra.mxu0 0
        %2927 = vmatprep.subr.bf16.mxu0 0
        %2928 = vmatpush1.bf16.msra.mxu0 0
        %2929 = vmatprep.subr.bf16.mxu0 0
        %2930 = vmatpush1.bf16.msra.mxu0 0
        %2931 = vmatprep.subr.bf16.mxu0 0
        %2932 = vmatpush1.bf16.msra.mxu0 0
        %2933 = vmatprep.mubr.bf16.mxu0 0
        %2934 = vmatmul.mubr.bf16.gmra.mrb[0].mxu0 %v2744
        %v2935 = vpop.f32.mrb[0].mxu0
        %v2936 = vadd.f32 0.0, %v2935
        %v2937 = vpop.f32.mrb[0].mxu0
        %v2938 = vadd.f32 0.0, %v2937
        %v2939 = vpop.f32.mrb[0].mxu0
        %v2940 = vadd.f32 0.0, %v2939
        %v2941 = vpop.f32.mrb[0].mxu0
        %v2942 = vadd.f32 0.0, %v2941
        %2943 = vmatprep.mubr.bf16.mxu0 0
        %2944 = vmatmul.mubr.bf16.gmra.mrb[0].mxu0 %v2747
        %v2945 = vpop.f32.mrb[0].mxu0
        %v2946 = vadd.f32 0.0, %v2945
        %v2947 = vpop.f32.mrb[0].mxu0
        %v2948 = vadd.f32 0.0, %v2947
        %v2949 = vpop.f32.mrb[0].mxu0
        %v2950 = vadd.f32 0.0, %v2949
        %v2951 = vpop.f32.mrb[0].mxu0
        %v2952 = vadd.f32 0.0, %v2951
        %2953 = vmatprep.mubr.bf16.mxu0 0
        %2954 = vmatmul.mubr.bf16.gmra.mrb[0].mxu0 %v2750
        %v2955 = vpop.f32.mrb[0].mxu0
        %v2956 = vadd.f32 0.0, %v2955
        %v2957 = vpop.f32.mrb[0].mxu0
        %v2958 = vadd.f32 0.0, %v2957
        %v2959 = vpop.f32.mrb[0].mxu0
        %v2960 = vadd.f32 0.0, %v2959
        %v2961 = vpop.f32.mrb[0].mxu0
        %v2962 = vadd.f32 0.0, %v2961
        %2963 = vmatprep.mubr.bf16.mxu0 0
        %2964 = vmatmul.mubr.bf16.gmra.mrb[0].mxu0 %v2753
        %v2965 = vpop.f32.mrb[0].mxu0
        %v2966 = vadd.f32 0.0, %v2965
        %v2967 = vpop.f32.mrb[0].mxu0
        %v2968 = vadd.f32 0.0, %v2967
        %v2969 = vpop.f32.mrb[0].mxu0
        %v2970 = vadd.f32 0.0, %v2969
        %v2971 = vpop.f32.mrb[0].mxu0
        %v2972 = vadd.f32 0.0, %v2971
        %2973 = vdwg.mxu0
        %2974 = vmatprep.subr.bf16.mxu0 %v2714
        %2975 = vmatpush1.bf16.msra.mxu0 %v2713
        %2976 = vmatprep.subr.bf16.mxu0 %v2722
        %2977 = vmatpush1.bf16.msra.mxu0 %v2721
        %2978 = vmatprep.subr.bf16.mxu0 0
        %2979 = vmatpush1.bf16.msra.mxu0 0
        %2980 = vmatprep.subr.bf16.mxu0 0
        %2981 = vmatpush1.bf16.msra.mxu0 0
        %2982 = vmatprep.subr.bf16.mxu0 0
        %2983 = vmatpush1.bf16.msra.mxu0 0
        %2984 = vmatprep.subr.bf16.mxu0 0
        %2985 = vmatpush1.bf16.msra.mxu0 0
        %2986 = vmatprep.subr.bf16.mxu0 0
        %2987 = vmatpush1.bf16.msra.mxu0 0
        %2988 = vmatprep.subr.bf16.mxu0 0
        %2989 = vmatpush1.bf16.msra.mxu0 0
        %2990 = vmatprep.subr.bf16.mxu0 0
        %2991 = vmatpush1.bf16.msra.mxu0 0
        %2992 = vmatprep.subr.bf16.mxu0 0
        %2993 = vmatpush1.bf16.msra.mxu0 0
        %2994 = vmatprep.subr.bf16.mxu0 0
        %2995 = vmatpush1.bf16.msra.mxu0 0
        %2996 = vmatprep.subr.bf16.mxu0 0
        %2997 = vmatpush1.bf16.msra.mxu0 0
        %2998 = vmatprep.subr.bf16.mxu0 0
        %2999 = vmatpush1.bf16.msra.mxu0 0
        %3000 = vmatprep.subr.bf16.mxu0 0
        %3001 = vmatpush1.bf16.msra.mxu0 0
        %3002 = vmatprep.subr.bf16.mxu0 0
        %3003 = vmatpush1.bf16.msra.mxu0 0
        %3004 = vmatprep.subr.bf16.mxu0 0
        %3005 = vmatpush1.bf16.msra.mxu0 0
        %3006 = vmatprep.mubr.bf16.mxu0 0
        %3007 = vmatmul.mubr.bf16.gmra.mrb[0].mxu0 %v2744
        %v3008 = vpop.f32.mrb[0].mxu0
        %v3009 = vadd.f32 0.0, %v3008
        %v3010 = vpop.f32.mrb[0].mxu0
        %v3011 = vadd.f32 0.0, %v3010
        %v3012 = vpop.f32.mrb[0].mxu0
        %v3013 = vadd.f32 0.0, %v3012
        %v3014 = vpop.f32.mrb[0].mxu0
        %v3015 = vadd.f32 0.0, %v3014
        %3016 = vmatprep.mubr.bf16.mxu0 0
        %3017 = vmatmul.mubr.bf16.gmra.mrb[0].mxu0 %v2747
        %v3018 = vpop.f32.mrb[0].mxu0
        %v3019 = vadd.f32 0.0, %v3018
        %v3020 = vpop.f32.mrb[0].mxu0
        %v3021 = vadd.f32 0.0, %v3020
        %v3022 = vpop.f32.mrb[0].mxu0
        %v3023 = vadd.f32 0.0, %v3022
        %v3024 = vpop.f32.mrb[0].mxu0
        %v3025 = vadd.f32 0.0, %v3024
        %3026 = vmatprep.mubr.bf16.mxu0 0
        %3027 = vmatmul.mubr.bf16.gmra.mrb[0].mxu0 %v2750
        %v3028 = vpop.f32.mrb[0].mxu0
        %v3029 = vadd.f32 0.0, %v3028
        %v3030 = vpop.f32.mrb[0].mxu0
        %v3031 = vadd.f32 0.0, %v3030
        %v3032 = vpop.f32.mrb[0].mxu0
        %v3033 = vadd.f32 0.0, %v3032
        %v3034 = vpop.f32.mrb[0].mxu0
        %v3035 = vadd.f32 0.0, %v3034
        %3036 = vmatprep.mubr.bf16.mxu0 0
        %3037 = vmatmul.mubr.bf16.gmra.mrb[0].mxu0 %v2753
        %v3038 = vpop.f32.mrb[0].mxu0
        %v3039 = vadd.f32 0.0, %v3038
        %v3040 = vpop.f32.mrb[0].mxu0
        %v3041 = vadd.f32 0.0, %v3040
        %v3042 = vpop.f32.mrb[0].mxu0
        %v3043 = vadd.f32 0.0, %v3042
        %v3044 = vpop.f32.mrb[0].mxu0
        %v3045 = vadd.f32 0.0, %v3044
        %3046 = vdwg.mxu0
        %v3055 = vunpack.c.l.b16 %v337
        %v3056 = vunpack.c.l.b16 %v338
        %v3057 = vunpack.c.l.b16 %v339
        %v3058 = vunpack.c.l.b16 %v340
        %v3059 = vunpack.c.l.b16 %v341
        %v3060 = vunpack.c.l.b16 %v342
        %v3061 = vunpack.c.l.b16 %v343
        %v3062 = vunpack.c.l.b16 %v344
        %v3063 = vpack.c.b16 %v3056, %v3055
        %v3064 = vpack.c.b16 %v3058, %v3057
        %v3065 = vpack.c.b16 %v3060, %v3059
        %v3066 = vpack.c.b16 %v3062, %v3061
        %v3068 = vsel %vm848, %v3063, 0
        %v3071 = vsel %vm848, %v3064, 0
        %v3074 = vsel %vm848, %v3065, 0
        %v3077 = vsel %vm848, %v3066, 0
        %3079 = vmatprep.subr.bf16.mxu0 %v2692
        %3080 = vmatpush1.bf16.msra.mxu0 %v2691
        %3081 = vmatprep.subr.bf16.mxu0 %v2700
        %3082 = vmatpush1.bf16.msra.mxu0 %v2699
        %3083 = vmatprep.subr.bf16.mxu0 0
        %3084 = vmatpush1.bf16.msra.mxu0 0
        %3085 = vmatprep.subr.bf16.mxu0 0
        %3086 = vmatpush1.bf16.msra.mxu0 0
        %3087 = vmatprep.subr.bf16.mxu0 0
        %3088 = vmatpush1.bf16.msra.mxu0 0
        %3089 = vmatprep.subr.bf16.mxu0 0
        %3090 = vmatpush1.bf16.msra.mxu0 0
        %3091 = vmatprep.subr.bf16.mxu0 0
        %3092 = vmatpush1.bf16.msra.mxu0 0
        %3093 = vmatprep.subr.bf16.mxu0 0
        %3094 = vmatpush1.bf16.msra.mxu0 0
        %3095 = vmatprep.subr.bf16.mxu0 0
        %3096 = vmatpush1.bf16.msra.mxu0 0
        %3097 = vmatprep.subr.bf16.mxu0 0
        %3098 = vmatpush1.bf16.msra.mxu0 0
        %3099 = vmatprep.subr.bf16.mxu0 0
        %3100 = vmatpush1.bf16.msra.mxu0 0
        %3101 = vmatprep.subr.bf16.mxu0 0
        %3102 = vmatpush1.bf16.msra.mxu0 0
        %3103 = vmatprep.subr.bf16.mxu0 0
        %3104 = vmatpush1.bf16.msra.mxu0 0
        %3105 = vmatprep.subr.bf16.mxu0 0
        %3106 = vmatpush1.bf16.msra.mxu0 0
        %3107 = vmatprep.subr.bf16.mxu0 0
        %3108 = vmatpush1.bf16.msra.mxu0 0
        %3109 = vmatprep.subr.bf16.mxu0 0
        %3110 = vmatpush1.bf16.msra.mxu0 0
        %3111 = vmatprep.mubr.bf16.mxu0 0
        %3112 = vmatmul.mubr.bf16.gmra.mrb[0].mxu0 %v3068
        %v3113 = vpop.f32.mrb[0].mxu0
        %v3114 = vadd.f32 %v2790, %v3113
        %v3115 = vpop.f32.mrb[0].mxu0
        %v3116 = vadd.f32 %v2792, %v3115
        %v3117 = vpop.f32.mrb[0].mxu0
        %v3118 = vadd.f32 %v2794, %v3117
        %v3119 = vpop.f32.mrb[0].mxu0
        %v3120 = vadd.f32 %v2796, %v3119
        %3121 = vmatprep.mubr.bf16.mxu0 0
        %3122 = vmatmul.mubr.bf16.gmra.mrb[0].mxu0 %v3071
        %v3123 = vpop.f32.mrb[0].mxu0
        %v3124 = vadd.f32 %v2800, %v3123
        %v3125 = vpop.f32.mrb[0].mxu0
        %v3126 = vadd.f32 %v2802, %v3125
        %v3127 = vpop.f32.mrb[0].mxu0
        %v3128 = vadd.f32 %v2804, %v3127
        %v3129 = vpop.f32.mrb[0].mxu0
        %v3130 = vadd.f32 %v2806, %v3129
        %3131 = vmatprep.mubr.bf16.mxu0 0
        %3132 = vmatmul.mubr.bf16.gmra.mrb[0].mxu0 %v3074
        %v3133 = vpop.f32.mrb[0].mxu0
        %v3134 = vadd.f32 %v2810, %v3133
        %v3135 = vpop.f32.mrb[0].mxu0
        %v3136 = vadd.f32 %v2812, %v3135
        %v3137 = vpop.f32.mrb[0].mxu0
        %v3138 = vadd.f32 %v2814, %v3137
        %v3139 = vpop.f32.mrb[0].mxu0
        %v3140 = vadd.f32 %v2816, %v3139
        %3141 = vmatprep.mubr.bf16.mxu0 0
        %3142 = vmatmul.mubr.bf16.gmra.mrb[0].mxu0 %v3077
        %v3143 = vpop.f32.mrb[0].mxu0
        %v3144 = vadd.f32 %v2820, %v3143
        %v3145 = vpop.f32.mrb[0].mxu0
        %v3146 = vadd.f32 %v2822, %v3145
        %v3147 = vpop.f32.mrb[0].mxu0
        %v3148 = vadd.f32 %v2824, %v3147
        %v3149 = vpop.f32.mrb[0].mxu0
        %v3150 = vadd.f32 %v2826, %v3149
        %3151 = vdwg.mxu0
        %3152 = vmatprep.subr.bf16.mxu0 %v2694
        %3153 = vmatpush1.bf16.msra.mxu0 %v2693
        %3154 = vmatprep.subr.bf16.mxu0 %v2702
        %3155 = vmatpush1.bf16.msra.mxu0 %v2701
        %3156 = vmatprep.subr.bf16.mxu0 0
        %3157 = vmatpush1.bf16.msra.mxu0 0
        %3158 = vmatprep.subr.bf16.mxu0 0
        %3159 = vmatpush1.bf16.msra.mxu0 0
        %3160 = vmatprep.subr.bf16.mxu0 0
        %3161 = vmatpush1.bf16.msra.mxu0 0
        %3162 = vmatprep.subr.bf16.mxu0 0
        %3163 = vmatpush1.bf16.msra.mxu0 0
        %3164 = vmatprep.subr.bf16.mxu0 0
        %3165 = vmatpush1.bf16.msra.mxu0 0
        %3166 = vmatprep.subr.bf16.mxu0 0
        %3167 = vmatpush1.bf16.msra.mxu0 0
        %3168 = vmatprep.subr.bf16.mxu0 0
        %3169 = vmatpush1.bf16.msra.mxu0 0
        %3170 = vmatprep.subr.bf16.mxu0 0
        %3171 = vmatpush1.bf16.msra.mxu0 0
        %3172 = vmatprep.subr.bf16.mxu0 0
        %3173 = vmatpush1.bf16.msra.mxu0 0
        %3174 = vmatprep.subr.bf16.mxu0 0
        %3175 = vmatpush1.bf16.msra.mxu0 0
        %3176 = vmatprep.subr.bf16.mxu0 0
        %3177 = vmatpush1.bf16.msra.mxu0 0
        %3178 = vmatprep.subr.bf16.mxu0 0
        %3179 = vmatpush1.bf16.msra.mxu0 0
        %3180 = vmatprep.subr.bf16.mxu0 0
        %3181 = vmatpush1.bf16.msra.mxu0 0
        %3182 = vmatprep.subr.bf16.mxu0 0
        %3183 = vmatpush1.bf16.msra.mxu0 0
        %3184 = vmatprep.mubr.bf16.mxu0 0
        %3185 = vmatmul.mubr.bf16.gmra.mrb[0].mxu0 %v3068
        %v3186 = vpop.f32.mrb[0].mxu0
        %v3187 = vadd.f32 %v2863, %v3186
        %v3188 = vpop.f32.mrb[0].mxu0
        %v3189 = vadd.f32 %v2865, %v3188
        %v3190 = vpop.f32.mrb[0].mxu0
        %v3191 = vadd.f32 %v2867, %v3190
        %v3192 = vpop.f32.mrb[0].mxu0
        %v3193 = vadd.f32 %v2869, %v3192
        %3194 = vmatprep.mubr.bf16.mxu0 0
        %3195 = vmatmul.mubr.bf16.gmra.mrb[0].mxu0 %v3071
        %v3196 = vpop.f32.mrb[0].mxu0
        %v3197 = vadd.f32 %v2873, %v3196
        %v3198 = vpop.f32.mrb[0].mxu0
        %v3199 = vadd.f32 %v2875, %v3198
        %v3200 = vpop.f32.mrb[0].mxu0
        %v3201 = vadd.f32 %v2877, %v3200
        %v3202 = vpop.f32.mrb[0].mxu0
        %v3203 = vadd.f32 %v2879, %v3202
        %3204 = vmatprep.mubr.bf16.mxu0 0
        %3205 = vmatmul.mubr.bf16.gmra.mrb[0].mxu0 %v3074
        %v3206 = vpop.f32.mrb[0].mxu0
        %v3207 = vadd.f32 %v2883, %v3206
        %v3208 = vpop.f32.mrb[0].mxu0
        %v3209 = vadd.f32 %v2885, %v3208
        %v3210 = vpop.f32.mrb[0].mxu0
        %v3211 = vadd.f32 %v2887, %v3210
        %v3212 = vpop.f32.mrb[0].mxu0
        %v3213 = vadd.f32 %v2889, %v3212
        %3214 = vmatprep.mubr.bf16.mxu0 0
        %3215 = vmatmul.mubr.bf16.gmra.mrb[0].mxu0 %v3077
        %v3216 = vpop.f32.mrb[0].mxu0
        %v3217 = vadd.f32 %v2893, %v3216
        %v3218 = vpop.f32.mrb[0].mxu0
        %v3219 = vadd.f32 %v2895, %v3218
        %v3220 = vpop.f32.mrb[0].mxu0
        %v3221 = vadd.f32 %v2897, %v3220
        %v3222 = vpop.f32.mrb[0].mxu0
        %v3223 = vadd.f32 %v2899, %v3222
        %3224 = vdwg.mxu0
        %3225 = vmatprep.subr.bf16.mxu0 %v2696
        %3226 = vmatpush1.bf16.msra.mxu0 %v2695
        %3227 = vmatprep.subr.bf16.mxu0 %v2704
        %3228 = vmatpush1.bf16.msra.mxu0 %v2703
        %3229 = vmatprep.subr.bf16.mxu0 0
        %3230 = vmatpush1.bf16.msra.mxu0 0
        %3231 = vmatprep.subr.bf16.mxu0 0
        %3232 = vmatpush1.bf16.msra.mxu0 0
        %3233 = vmatprep.subr.bf16.mxu0 0
        %3234 = vmatpush1.bf16.msra.mxu0 0
        %3235 = vmatprep.subr.bf16.mxu0 0
        %3236 = vmatpush1.bf16.msra.mxu0 0
        %3237 = vmatprep.subr.bf16.mxu0 0
        %3238 = vmatpush1.bf16.msra.mxu0 0
        %3239 = vmatprep.subr.bf16.mxu0 0
        %3240 = vmatpush1.bf16.msra.mxu0 0
        %3241 = vmatprep.subr.bf16.mxu0 0
        %3242 = vmatpush1.bf16.msra.mxu0 0
        %3243 = vmatprep.subr.bf16.mxu0 0
        %3244 = vmatpush1.bf16.msra.mxu0 0
        %3245 = vmatprep.subr.bf16.mxu0 0
        %3246 = vmatpush1.bf16.msra.mxu0 0
        %3247 = vmatprep.subr.bf16.mxu0 0
        %3248 = vmatpush1.bf16.msra.mxu0 0
        %3249 = vmatprep.subr.bf16.mxu0 0
        %3250 = vmatpush1.bf16.msra.mxu0 0
        %3251 = vmatprep.subr.bf16.mxu0 0
        %3252 = vmatpush1.bf16.msra.mxu0 0
        %3253 = vmatprep.subr.bf16.mxu0 0
        %3254 = vmatpush1.bf16.msra.mxu0 0
        %3255 = vmatprep.subr.bf16.mxu0 0
        %3256 = vmatpush1.bf16.msra.mxu0 0
        %3257 = vmatprep.mubr.bf16.mxu0 0
        %3258 = vmatmul.mubr.bf16.gmra.mrb[0].mxu0 %v3068
        %v3259 = vpop.f32.mrb[0].mxu0
        %v3260 = vadd.f32 %v2936, %v3259
        %v3261 = vpop.f32.mrb[0].mxu0
        %v3262 = vadd.f32 %v2938, %v3261
        %v3263 = vpop.f32.mrb[0].mxu0
        %v3264 = vadd.f32 %v2940, %v3263
        %v3265 = vpop.f32.mrb[0].mxu0
        %v3266 = vadd.f32 %v2942, %v3265
        %3267 = vmatprep.mubr.bf16.mxu0 0
        %3268 = vmatmul.mubr.bf16.gmra.mrb[0].mxu0 %v3071
        %v3269 = vpop.f32.mrb[0].mxu0
        %v3270 = vadd.f32 %v2946, %v3269
        %v3271 = vpop.f32.mrb[0].mxu0
        %v3272 = vadd.f32 %v2948, %v3271
        %v3273 = vpop.f32.mrb[0].mxu0
        %v3274 = vadd.f32 %v2950, %v3273
        %v3275 = vpop.f32.mrb[0].mxu0
        %v3276 = vadd.f32 %v2952, %v3275
        %3277 = vmatprep.mubr.bf16.mxu0 0
        %3278 = vmatmul.mubr.bf16.gmra.mrb[0].mxu0 %v3074
        %v3279 = vpop.f32.mrb[0].mxu0
        %v3280 = vadd.f32 %v2956, %v3279
        %v3281 = vpop.f32.mrb[0].mxu0
        %v3282 = vadd.f32 %v2958, %v3281
        %v3283 = vpop.f32.mrb[0].mxu0
        %v3284 = vadd.f32 %v2960, %v3283
        %v3285 = vpop.f32.mrb[0].mxu0
        %v3286 = vadd.f32 %v2962, %v3285
        %3287 = vmatprep.mubr.bf16.mxu0 0
        %3288 = vmatmul.mubr.bf16.gmra.mrb[0].mxu0 %v3077
        %v3289 = vpop.f32.mrb[0].mxu0
        %v3290 = vadd.f32 %v2966, %v3289
        %v3291 = vpop.f32.mrb[0].mxu0
        %v3292 = vadd.f32 %v2968, %v3291
        %v3293 = vpop.f32.mrb[0].mxu0
        %v3294 = vadd.f32 %v2970, %v3293
        %v3295 = vpop.f32.mrb[0].mxu0
        %v3296 = vadd.f32 %v2972, %v3295
        %3297 = vdwg.mxu0
        %3298 = vmatprep.subr.bf16.mxu0 %v2698
        %3299 = vmatpush1.bf16.msra.mxu0 %v2697
        %3300 = vmatprep.subr.bf16.mxu0 %v2706
        %3301 = vmatpush1.bf16.msra.mxu0 %v2705
        %3302 = vmatprep.subr.bf16.mxu0 0
        %3303 = vmatpush1.bf16.msra.mxu0 0
        %3304 = vmatprep.subr.bf16.mxu0 0
        %3305 = vmatpush1.bf16.msra.mxu0 0
        %3306 = vmatprep.subr.bf16.mxu0 0
        %3307 = vmatpush1.bf16.msra.mxu0 0
        %3308 = vmatprep.subr.bf16.mxu0 0
        %3309 = vmatpush1.bf16.msra.mxu0 0
        %3310 = vmatprep.subr.bf16.mxu0 0
        %3311 = vmatpush1.bf16.msra.mxu0 0
        %3312 = vmatprep.subr.bf16.mxu0 0
        %3313 = vmatpush1.bf16.msra.mxu0 0
        %3314 = vmatprep.subr.bf16.mxu0 0
        %3315 = vmatpush1.bf16.msra.mxu0 0
        %3316 = vmatprep.subr.bf16.mxu0 0
        %3317 = vmatpush1.bf16.msra.mxu0 0
        %3318 = vmatprep.subr.bf16.mxu0 0
        %3319 = vmatpush1.bf16.msra.mxu0 0
        %3320 = vmatprep.subr.bf16.mxu0 0
        %3321 = vmatpush1.bf16.msra.mxu0 0
        %3322 = vmatprep.subr.bf16.mxu0 0
        %3323 = vmatpush1.bf16.msra.mxu0 0
        %3324 = vmatprep.subr.bf16.mxu0 0
        %3325 = vmatpush1.bf16.msra.mxu0 0
        %3326 = vmatprep.subr.bf16.mxu0 0
        %3327 = vmatpush1.bf16.msra.mxu0 0
        %3328 = vmatprep.subr.bf16.mxu0 0
        %3329 = vmatpush1.bf16.msra.mxu0 0
        %3330 = vmatprep.mubr.bf16.mxu0 0
        %3331 = vmatmul.mubr.bf16.gmra.mrb[0].mxu0 %v3068
        %v3332 = vpop.f32.mrb[0].mxu0
        %v3333 = vadd.f32 %v3009, %v3332
        %v3334 = vpop.f32.mrb[0].mxu0
        %v3335 = vadd.f32 %v3011, %v3334
        %v3336 = vpop.f32.mrb[0].mxu0
        %v3337 = vadd.f32 %v3013, %v3336
        %v3338 = vpop.f32.mrb[0].mxu0
        %v3339 = vadd.f32 %v3015, %v3338
        %3340 = vmatprep.mubr.bf16.mxu0 0
        %3341 = vmatmul.mubr.bf16.gmra.mrb[0].mxu0 %v3071
        %v3342 = vpop.f32.mrb[0].mxu0
        %v3343 = vadd.f32 %v3019, %v3342
        %v3344 = vpop.f32.mrb[0].mxu0
        %v3345 = vadd.f32 %v3021, %v3344
        %v3346 = vpop.f32.mrb[0].mxu0
        %v3347 = vadd.f32 %v3023, %v3346
        %v3348 = vpop.f32.mrb[0].mxu0
        %v3349 = vadd.f32 %v3025, %v3348
        %3350 = vmatprep.mubr.bf16.mxu0 0
        %3351 = vmatmul.mubr.bf16.gmra.mrb[0].mxu0 %v3074
        %v3352 = vpop.f32.mrb[0].mxu0
        %v3353 = vadd.f32 %v3029, %v3352
        %v3354 = vpop.f32.mrb[0].mxu0
        %v3355 = vadd.f32 %v3031, %v3354
        %v3356 = vpop.f32.mrb[0].mxu0
        %v3357 = vadd.f32 %v3033, %v3356
        %v3358 = vpop.f32.mrb[0].mxu0
        %v3359 = vadd.f32 %v3035, %v3358
        %3360 = vmatprep.mubr.bf16.mxu0 0
        %3361 = vmatmul.mubr.bf16.gmra.mrb[0].mxu0 %v3077
        %v3362 = vpop.f32.mrb[0].mxu0
        %v3363 = vadd.f32 %v3039, %v3362
        %v3364 = vpop.f32.mrb[0].mxu0
        %v3365 = vadd.f32 %v3041, %v3364
        %v3366 = vpop.f32.mrb[0].mxu0
        %v3367 = vadd.f32 %v3043, %v3366
        %v3368 = vpop.f32.mrb[0].mxu0
        %v3369 = vadd.f32 %v3045, %v3368
        %3370 = vdwg.mxu0
        %3371 = vset.pattern.permute.xlu0 2
        %3372 = vperm.xlu0 %3371, %v353
        %v3373 = vpop.permute.xlu0 %3372
        %3375 = vset.pattern.permute.xlu0 2
        %3376 = vperm.xlu0 %3375, %v354
        %v3377 = vpop.permute.xlu0 %3376
        %3379 = vset.pattern.permute.xlu0 2
        %3380 = vperm.xlu0 %3379, %v355
        %v3381 = vpop.permute.xlu0 %3380
        %3383 = vset.pattern.permute.xlu0 2
        %3384 = vperm.xlu0 %3383, %v356
        %v3385 = vpop.permute.xlu0 %3384
        %3388 = vset.pattern.permute.xlu0 2
        %3389 = vperm.xlu0 %3388, %v357
        %v3390 = vpop.permute.xlu0 %3389
        %3393 = vset.pattern.permute.xlu0 2
        %3394 = vperm.xlu0 %3393, %v358
        %v3395 = vpop.permute.xlu0 %3394
        %3398 = vset.pattern.permute.xlu0 2
        %3399 = vperm.xlu0 %3398, %v359
        %v3400 = vpop.permute.xlu0 %3399
        %3403 = vset.pattern.permute.xlu0 2
        %3404 = vperm.xlu0 %3403, %v360
        %v3405 = vpop.permute.xlu0 %3404
        %v3407 = vadd.f32 %v3114, %v3373
        %v3408 = vadd.f32 %v3116, %v3373
        %v3409 = vadd.f32 %v3187, %v3373
        %v3410 = vadd.f32 %v3189, %v3373
        %v3411 = vadd.f32 %v3260, %v3373
        %v3412 = vadd.f32 %v3262, %v3373
        %v3413 = vadd.f32 %v3333, %v3373
        %v3414 = vadd.f32 %v3335, %v3373
        %v3415 = vadd.f32 %v3118, %v3377
        %v3416 = vadd.f32 %v3120, %v3377
        %v3417 = vadd.f32 %v3191, %v3377
        %v3418 = vadd.f32 %v3193, %v3377
        %v3419 = vadd.f32 %v3264, %v3377
        %v3420 = vadd.f32 %v3266, %v3377
        %v3421 = vadd.f32 %v3337, %v3377
        %v3422 = vadd.f32 %v3339, %v3377
        %v3423 = vadd.f32 %v3124, %v3381
        %v3424 = vadd.f32 %v3126, %v3381
        %v3425 = vadd.f32 %v3197, %v3381
        %v3426 = vadd.f32 %v3199, %v3381
        %v3427 = vadd.f32 %v3270, %v3381
        %v3428 = vadd.f32 %v3272, %v3381
        %v3429 = vadd.f32 %v3343, %v3381
        %v3430 = vadd.f32 %v3345, %v3381
        %v3431 = vadd.f32 %v3128, %v3385
        %v3432 = vadd.f32 %v3130, %v3385
        %v3433 = vadd.f32 %v3201, %v3385
        %v3434 = vadd.f32 %v3203, %v3385
        %v3435 = vadd.f32 %v3274, %v3385
        %v3436 = vadd.f32 %v3276, %v3385
        %v3437 = vadd.f32 %v3347, %v3385
        %v3438 = vadd.f32 %v3349, %v3385
        %v3439 = vadd.f32 %v3134, %v3390
        %v3440 = vadd.f32 %v3136, %v3390
        %v3441 = vadd.f32 %v3207, %v3390
        %v3442 = vadd.f32 %v3209, %v3390
        %v3443 = vadd.f32 %v3280, %v3390
        %v3444 = vadd.f32 %v3282, %v3390
        %v3445 = vadd.f32 %v3353, %v3390
        %v3446 = vadd.f32 %v3355, %v3390
        %v3447 = vadd.f32 %v3138, %v3395
        %v3448 = vadd.f32 %v3140, %v3395
        %v3449 = vadd.f32 %v3211, %v3395
        %v3450 = vadd.f32 %v3213, %v3395
        %v3451 = vadd.f32 %v3284, %v3395
        %v3452 = vadd.f32 %v3286, %v3395
        %v3453 = vadd.f32 %v3357, %v3395
        %v3454 = vadd.f32 %v3359, %v3395
        %v3455 = vadd.f32 %v3144, %v3400
        %v3456 = vadd.f32 %v3146, %v3400
        %v3457 = vadd.f32 %v3217, %v3400
        %v3458 = vadd.f32 %v3219, %v3400
        %v3459 = vadd.f32 %v3290, %v3400
        %v3460 = vadd.f32 %v3292, %v3400
        %v3461 = vadd.f32 %v3363, %v3400
        %v3462 = vadd.f32 %v3365, %v3400
        %v3463 = vadd.f32 %v3148, %v3405
        %v3464 = vadd.f32 %v3150, %v3405
        %v3465 = vadd.f32 %v3221, %v3405
        %v3466 = vadd.f32 %v3223, %v3405
        %v3467 = vadd.f32 %v3294, %v3405
        %v3468 = vadd.f32 %v3296, %v3405
        %v3469 = vadd.f32 %v3367, %v3405
        %v3470 = vadd.f32 %v3369, %v3405
        %3471 = vst [vmem:[%s277] sm:$0xff] %v3407
        %3472 = vst [vmem:[%s277 + $0x8] sm:$0xff] %v3408
        %3473 = vst [vmem:[%s277 + $0x10] sm:$0xff] %v3409
        %3474 = vst [vmem:[%s277 + $0x18] sm:$0xff] %v3410
        %3475 = vst [vmem:[%s277 + $0x20] sm:$0xff] %v3411
        %3476 = vst [vmem:[%s277 + $0x28] sm:$0xff] %v3412
        %3477 = vst [vmem:[%s277 + $0x30] sm:$0xff] %v3413
        %3478 = vst [vmem:[%s277 + $0x38] sm:$0xff] %v3414
        %3479 = vst [vmem:[%s277 + $0x40] sm:$0xff] %v3415
        %3480 = vst [vmem:[%s277 + $0x48] sm:$0xff] %v3416
        %3481 = vst [vmem:[%s277 + $0x50] sm:$0xff] %v3417
        %3482 = vst [vmem:[%s277 + $0x58] sm:$0xff] %v3418
        %3483 = vst [vmem:[%s277 + $0x60] sm:$0xff] %v3419
        %3484 = vst [vmem:[%s277 + $0x68] sm:$0xff] %v3420
        %3485 = vst [vmem:[%s277 + $0x70] sm:$0xff] %v3421
        %3486 = vst [vmem:[%s277 + $0x78] sm:$0xff] %v3422
        %3487 = vst [vmem:[%s277 + $0x80] sm:$0xff] %v3423
        %3488 = vst [vmem:[%s277 + $0x88] sm:$0xff] %v3424
        %3489 = vst [vmem:[%s277 + $0x90] sm:$0xff] %v3425
        %3490 = vst [vmem:[%s277 + $0x98] sm:$0xff] %v3426
        %3491 = vst [vmem:[%s277 + $0xa0] sm:$0xff] %v3427
        %3492 = vst [vmem:[%s277 + $0xa8] sm:$0xff] %v3428
        %3493 = vst [vmem:[%s277 + $0xb0] sm:$0xff] %v3429
        %3494 = vst [vmem:[%s277 + $0xb8] sm:$0xff] %v3430
        %3495 = vst [vmem:[%s277 + $0xc0] sm:$0xff] %v3431
        %3496 = vst [vmem:[%s277 + $0xc8] sm:$0xff] %v3432
        %3497 = vst [vmem:[%s277 + $0xd0] sm:$0xff] %v3433
        %3498 = vst [vmem:[%s277 + $0xd8] sm:$0xff] %v3434
        %3499 = vst [vmem:[%s277 + $0xe0] sm:$0xff] %v3435
        %3500 = vst [vmem:[%s277 + $0xe8] sm:$0xff] %v3436
        %3501 = vst [vmem:[%s277 + $0xf0] sm:$0xff] %v3437
        %3502 = vst [vmem:[%s277 + $0xf8] sm:$0xff] %v3438
        %3503 = vst [vmem:[%s277 + $0x100] sm:$0xff] %v3439
        %3504 = vst [vmem:[%s277 + $0x108] sm:$0xff] %v3440
        %3505 = vst [vmem:[%s277 + $0x110] sm:$0xff] %v3441
        %3506 = vst [vmem:[%s277 + $0x118] sm:$0xff] %v3442
        %3507 = vst [vmem:[%s277 + $0x120] sm:$0xff] %v3443
        %3508 = vst [vmem:[%s277 + $0x128] sm:$0xff] %v3444
        %3509 = vst [vmem:[%s277 + $0x130] sm:$0xff] %v3445
        %3510 = vst [vmem:[%s277 + $0x138] sm:$0xff] %v3446
        %3511 = vst [vmem:[%s277 + $0x140] sm:$0xff] %v3447
        %3512 = vst [vmem:[%s277 + $0x148] sm:$0xff] %v3448
        %3513 = vst [vmem:[%s277 + $0x150] sm:$0xff] %v3449
        %3514 = vst [vmem:[%s277 + $0x158] sm:$0xff] %v3450
        %3515 = vst [vmem:[%s277 + $0x160] sm:$0xff] %v3451
        %3516 = vst [vmem:[%s277 + $0x168] sm:$0xff] %v3452
        %3517 = vst [vmem:[%s277 + $0x170] sm:$0xff] %v3453
        %3518 = vst [vmem:[%s277 + $0x178] sm:$0xff] %v3454
        %3519 = vst [vmem:[%s277 + $0x180] sm:$0xff] %v3455
        %3520 = vst [vmem:[%s277 + $0x188] sm:$0xff] %v3456
        %3521 = vst [vmem:[%s277 + $0x190] sm:$0xff] %v3457
        %3522 = vst [vmem:[%s277 + $0x198] sm:$0xff] %v3458
        %3523 = vst [vmem:[%s277 + $0x1a0] sm:$0xff] %v3459
        %3524 = vst [vmem:[%s277 + $0x1a8] sm:$0xff] %v3460
        %3525 = vst [vmem:[%s277 + $0x1b0] sm:$0xff] %v3461
        %3526 = vst [vmem:[%s277 + $0x1b8] sm:$0xff] %v3462
        %3527 = vst [vmem:[%s277 + $0x1c0] sm:$0xff] %v3463
        %3528 = vst [vmem:[%s277 + $0x1c8] sm:$0xff] %v3464
        %3529 = vst [vmem:[%s277 + $0x1d0] sm:$0xff] %v3465
        %3530 = vst [vmem:[%s277 + $0x1d8] sm:$0xff] %v3466
        %3531 = vst [vmem:[%s277 + $0x1e0] sm:$0xff] %v3467
        %3532 = vst [vmem:[%s277 + $0x1e8] sm:$0xff] %v3468
        %3533 = vst [vmem:[%s277 + $0x1f0] sm:$0xff] %v3469
        %3534 = vst [vmem:[%s277 + $0x1f8] sm:$0xff] %v3470
        %s3535 = sand.u32 %s115, 1
        %s3536 = scalar_lea.sflag [#allocation4], %s3535
        %s3537 = sand.u32 %s115, 1
        %s3538 = smul.addr %s3537, 512
        %s3539 = scalar_lea.vmem [#allocation3], %s3538
        // Predicated region
        $region60: #{residual_forward.1} parent=54 // pred_check
          %p3540 = pneg %p125
        $region61: #{residual_forward.1} parent=54 // pred_check_branch
          %3542 = sbr.rel (%p3540) target = $region63
        $region62: #{residual_forward.1} parent=54 // pred_region
          %s3543 = smul.u32 8, %s18
          %s3545 = ssub.s32 8192, 8192
          %3546 = vsyncadd %s3536, %s3545
          %s3547 = smul.addr %s3543, 128
          %s3548 = scalar_lea.hbm %s4, %s3547
          %s3549 = sshll.u32 %s3539, 4
          %s3550 = int_to_ptr.vmem [resolvable:$true] %s3549
          %3555 = dma.vmem_to_hbm [thread:$0]  %s3550, 8192, %s3548, %s3536, 1024, 2048, 64
        $region63: #{residual_forward.1} parent=54 // pred_fallthru
          _
      $region55: #{residual_forward.1} parent=5 // pred_fallthru
        _
      %p3556 = scmp.le.s32.totalorder 2, %s13
      // Predicated region
      $region64: #{residual_forward.1} parent=5 // pred_check
        %p3557 = pneg %p3556
      $region65: #{residual_forward.1} parent=5 // pred_check_branch
        %3559 = sbr.rel (%p3557) target = $region67
      $region66: #{residual_forward.1} parent=5 // pred_region
        %s3560 = ssub.s32 %s13, 2
        // Predicated region
        $region68: #{residual_forward.1} parent=66 // pred_check
          %p3561 = pneg %p131
        $region69: #{residual_forward.1} parent=66 // pred_check_branch
          %3563 = sbr.rel (%p3561) target = $region71
        $region70: #{residual_forward.1} parent=66 // pred_region
          %s3564 = sand.u32 %s116, 1
          %s3565 = scalar_lea.sflag [#allocation4], %s3564
          %s3566 = sand.u32 %s116, 1
          %s3567 = smul.addr %s3566, 512
          %s3568 = scalar_lea.vmem [#allocation3], %s3567
          %3569 = dma.done %s3565, 8192
        $region71: #{residual_forward.1} parent=66 // pred_fallthru
          _
      $region67: #{residual_forward.1} parent=5 // pred_fallthru
        _
    $region6: #{residual_forward.1} parent=1 // loop_footer
      %s17 = sadd.s32 1, %s13
    $region7: #{residual_forward.1} parent=1 // loop_footer_branch
      %12 = sbr.rel target = $region3
    $region8: #{residual_forward.1} parent=1 // loop_exit
      _
    %3570 = vsyncpa [#allocation4], 1
    %s3571 = scalar_lea.sflag [#allocation4], 1
    %3572 = vsyncpa %s3571, 1

</llo_original>
